<compile_context>
chip_gen: v6e
topology: v6e:2x2x1
jax: 0.10.0
libtpu: 0.0.40
codegen_flags: <defaults>
</compile_context>

<pallas_src>
import functools

import jax
import jax.numpy as jnp
from jax.experimental import pallas as pl
from jax.experimental.pallas import tpu as pltpu


# --------------------------------------------------------------------------
# Fused conv1+pool1+conv2+pool2+conv3 kernel (per-sample, grid over batch)
# --------------------------------------------------------------------------

def _conv_stack_kernel(x_ref, w1_ref, b1_ref, w2_ref, b2_ref, w3_ref, b3_ref,
                       o_ref, s1_ref, s2_ref, *, L):
    f32 = jnp.float32
    K = 5
    L2 = L // 2
    L4 = L // 4

    # ---- conv1 (Cin=1): channels-major (32, L) = (32, 5) @ (5, L), lane-dense
    xr = x_ref[...].astype(f32)                                   # (1, L)
    zl = jnp.zeros((1, 2), f32)
    xp = jnp.concatenate([zl, xr, zl], axis=1)                    # (1, L+4)
    taps = jnp.concatenate([xp[:, k:k + L] for k in range(K)], axis=0)  # (5, L)
    y1 = jnp.dot(w1_ref[...], taps, preferred_element_type=f32)   # (32, L)
    y1 = jnp.maximum(y1 + b1_ref[...], 0.0)                       # bias (32,1)
    # one transpose to channels-last, then pool1 as sublane-strided max
    # TODO(synk): pool before the transpose (halves the XLU transpose volume)
    # once lane-strided slicing of (32, L) values is profiled on Mosaic.
    s1_ref[...] = y1.T                                            # (L, 32)
    p1 = jnp.maximum(s1_ref[pl.ds(0, L2, stride=2), :],
                     s1_ref[pl.ds(1, L2, stride=2), :])           # (L2, 32)

    # ---- conv2: K=5 accumulated shifted matmuls (L2,32)@(32,64) ------------
    z2 = jnp.zeros((2, 32), f32)
    xp2 = jnp.concatenate([z2, p1, z2], axis=0)                   # (L2+4, 32)
    y2 = jnp.zeros((L2, 64), f32)
    for k in range(K):
        y2 = y2 + jnp.dot(xp2[k:k + L2, :], w2_ref[k],
                          preferred_element_type=f32)
    s2_ref[...] = jnp.maximum(y2 + b2_ref[...], 0.0)              # (L2, 64)
    p2 = jnp.maximum(s2_ref[pl.ds(0, L4, stride=2), :],
                     s2_ref[pl.ds(1, L4, stride=2), :])           # (L4, 64)

    # ---- conv3: K=5 accumulated shifted matmuls (L4,64)@(64,128), no pool --
    z3 = jnp.zeros((2, 64), f32)
    xp3 = jnp.concatenate([z3, p2, z3], axis=0)                   # (L4+4, 64)
    y3 = jnp.zeros((L4, 128), f32)
    for k in range(K):
        y3 = y3 + jnp.dot(xp3[k:k + L4, :], w3_ref[k],
                          preferred_element_type=f32)
    o_ref[...] = jnp.maximum(y3 + b3_ref[...], 0.0).astype(o_ref.dtype)


def conv_stack(x_ncl, p, n_pad):
    """x_ncl: (N, 1, L) -> (n_pad, L//4, 128) channels-last bf16 features.

    Rows N..n_pad-1 of the output are never written (uninitialized); they only
    feed their own (discarded) logit rows in the head.
    """
    N, C, L = x_ncl.shape
    assert C == 1 and L % 4 == 0, "expects (N, 1, L) with L divisible by 4"
    L4 = L // 4
    kernel = functools.partial(_conv_stack_kernel, L=L)
    # TODO(synk): for L much beyond 10k, tile the length axis inside the
    # sample (inner pipeline with a 2-element halo) instead of growing
    # vmem_limit_bytes past v7x's 64 MiB ceiling.
    return pl.pallas_call(
        kernel,
        out_shape=jax.ShapeDtypeStruct((n_pad, L4, 128), jnp.bfloat16),
        grid=(N,),
        in_specs=[
            pl.BlockSpec((pl.Squeezed(), 1, L), lambda n: (n, 0, 0)),
            pl.BlockSpec((32, 5), lambda n: (0, 0)),
            pl.BlockSpec((32, 1), lambda n: (0, 0)),
            pl.BlockSpec((5, 32, 64), lambda n: (0, 0, 0)),
            pl.BlockSpec((1, 64), lambda n: (0, 0)),
            pl.BlockSpec((5, 64, 128), lambda n: (0, 0, 0)),
            pl.BlockSpec((1, 128), lambda n: (0, 0)),
        ],
        out_specs=pl.BlockSpec((pl.Squeezed(), L4, 128), lambda n: (n, 0, 0)),
        scratch_shapes=[
            pltpu.VMEM((L, 32), jnp.float32),       # conv1 output (pool1 source)
            pltpu.VMEM((L // 2, 64), jnp.float32),  # conv2 output (pool2 source)
        ],
        compiler_params=pltpu.CompilerParams(
            dimension_semantics=("parallel",),
            vmem_limit_bytes=48 * 1024 * 1024,      # fits v7x's 64 MiB too
        ),
    )(x_ncl, p["w1"], p["b1"], p["w2"], p["b2"], p["w3"], p["b3"])


# --------------------------------------------------------------------------
# Classifier head: column-split, K-tiled streaming fc1 (bf16) + ReLU + fc2
# --------------------------------------------------------------------------

def _head_kernel(x_ref, wf1_ref, bf1_ref, wf2_ref, o_ref, acc_ref):
    k = pl.program_id(1)

    @pl.when(k == 0)
    def _init():
        acc_ref[...] = jnp.zeros_like(acc_ref)

    # bf16 x bf16 straight into the MXU, f32 accumulate (no f32 upcast temp).
    acc_ref[...] += jnp.dot(x_ref[...], wf1_ref[...],
                            preferred_element_type=jnp.float32)

    @pl.when(k == pl.num_programs(1) - 1)
    def _finalize():
        # fc1 bias + ReLU for this 128-column half of the hidden layer.
        # Dropout(p=0.5) is identity at inference time (no scaling in eval).
        h = jnp.maximum(acc_ref[...] + bf1_ref[...], 0.0)          # (Np, 128)
        # partial fc2: this half's contribution to the logits (summed outside)
        o_ref[...] = jnp.dot(
            h, wf2_ref[...], preferred_element_type=jnp.float32
        ).astype(o_ref.dtype)


def _pick_fc1_tile(f_in, cap=32768):
    """Largest multiple of 128 that divides f_in and is <= cap (K-stream tile)."""
    best = None
    for tk in range(128, min(cap, f_in) + 1, 128):
        if f_in % tk == 0:
            best = tk
    return best if best is not None else f_in


def fc_head(a, p):
    """a: (Np, f_in) bf16, length-major flatten -> (2, Np, 5) partial logits.

    Grid: (2 hidden-column halves ["parallel"; engages both v7x TensorCores],
           f_in // tk K-stream steps ["arbitrary"]).
    """
    Np, f_in = a.shape
    tk = _pick_fc1_tile(f_in)
    assert f_in % tk == 0
    # TODO(synk): int8 (v5e/v6e) / fp8 (v7x) wf1 stream with per-tile scales,
    # pipeline_mode=pl.Buffered(3) on the wf1 spec, and an M (batch-row) grid
    # axis for large batches — all pending accuracy / trace validation.
    return pl.pallas_call(
        _head_kernel,
        out_shape=jax.ShapeDtypeStruct((2, Np, 5), jnp.float32),
        grid=(2, f_in // tk),
        in_specs=[
            pl.BlockSpec((Np, tk), lambda c, k: (0, k)),
            pl.BlockSpec((tk, 128), lambda c, k: (k, c)),
            pl.BlockSpec((1, 128), lambda c, k: (0, c)),
            pl.BlockSpec((128, 5), lambda c, k: (c, 0)),
        ],
        out_specs=pl.BlockSpec((pl.Squeezed(), Np, 5), lambda c, k: (c, 0, 0)),
        scratch_shapes=[pltpu.VMEM((Np, 128), jnp.float32)],
        compiler_params=pltpu.CompilerParams(
            dimension_semantics=("parallel", "arbitrary"),
            vmem_limit_bytes=32 * 1024 * 1024,   # fits v5e scoped-VMEM too
        ),
    )(a, p["wf1"], p["bf1"], p["wf2"])


# --------------------------------------------------------------------------
# Parameters (PyTorch-equivalent shapes; kernel-friendly layouts)
# --------------------------------------------------------------------------

def _fc_num(seq_len):
    num = seq_len
    for _ in range(2):
        num = (num + 1) // 2           # matches CNNModel.__init__ arithmetic
    return num


def init_params(key, seq_len):
    """Random init matching nn.Conv1d/nn.Linear defaults (kernel layouts).

    Conv weights are stored matmul-ready:
      w1[c, k]     = torch_conv1.weight[c, 0, k]
      w2[k, c, o]  = torch_conv2.weight[o, c, k]
      w3[k, c, o]  = torch_conv3.weight[o, c, k]
    wf1 is stored in the PyTorch (channel-major-flatten) row order here and is
    permuted once by prepare_params.
    """
    num = _fc_num(seq_len)
    f_in = 128 * num

    def uni(k, shape, fan_in):
        bound = 1.0 / jnp.sqrt(jnp.float32(fan_in))
        return jax.random.uniform(k, shape, jnp.float32, -bound, bound)

    ks = jax.random.split(key, 10)
    p = {}
    p["w1"], p["b1"] = uni(ks[0], (32, 5), 1 * 5), uni(ks[1], (32,), 1 * 5)
    p["w2"], p["b2"] = uni(ks[2], (5, 32, 64), 32 * 5), uni(ks[3], (64,), 32 * 5)
    p["w3"], p["b3"] = uni(ks[4], (5, 64, 128), 64 * 5), uni(ks[5], (128,), 64 * 5)
    p["wf1"], p["bf1"] = uni(ks[6], (f_in, 256), f_in), uni(ks[7], (256,), f_in)
    p["wf2"], p["bf2"] = uni(ks[8], (256, 5), 256), uni(ks[9], (5,), 256)
    return p


def prepare_params(p, seq_len):
    """One-time (off the hot path) weight prep:
       * permute wf1 rows from PyTorch channel-major flatten (c*num + l) to the
         kernel's length-major flatten (l*128 + c) -> no runtime transpose;
       * store wf1 in bf16 (fc1 is pure weight streaming; halves HBM traffic
         and feeds the MXU's native bf16 path);
       * reshape biases to broadcast-ready 2-D."""
    assert seq_len % 4 == 0, "kernel path assumes L divisible by 4"
    num = _fc_num(seq_len)
    wf1 = p["wf1"].reshape(128, num, 256).transpose(1, 0, 2).reshape(num * 128, 256)
    return {
        "w1": p["w1"], "b1": p["b1"].reshape(32, 1),
        "w2": p["w2"], "b2": p["b2"].reshape(1, 64),
        "w3": p["w3"], "b3": p["b3"].reshape(1, 128),
        "wf1": wf1.astype(jnp.bfloat16),
        "bf1": p["bf1"].reshape(1, 256),
        "wf2": p["wf2"], "bf2": p["bf2"].reshape(1, 5),
    }


# --------------------------------------------------------------------------
# Full forward
# --------------------------------------------------------------------------

@jax.jit
def cnn_forward(x_ncl, params):
    N, C, L = x_ncl.shape
    n_pad = max(8, ((N + 7) // 8) * 8)           # 8-sublane-aligned batch rows
    feats = conv_stack(x_ncl, params, n_pad)     # (n_pad, L//4, 128) bf16
    a = feats.reshape(n_pad, -1)                 # length-major flatten (free)
    partial = fc_head(a, params)                 # (2, n_pad, 5) column-half partials
    logits = partial[0] + partial[1] + params["bf2"]
    return logits[:N]


# --------------------------------------------------------------------------
# Pure-JAX reference (same prepared params, incl. bf16 wf1 / bf16 features)
# --------------------------------------------------------------------------

def _reference_forward(x_ncl, p):
    P = jax.lax.Precision.HIGHEST
    N, _, L = x_ncl.shape
    L2, L4 = L // 2, L // 4
    x = x_ncl[:, 0, :]                                            # (N, L)
    xp = jnp.pad(x, ((0, 0), (2, 2)))
    cols = jnp.stack([xp[:, k:k + L] for k in range(5)], axis=1)  # (N, 5, L)
    y1 = jnp.einsum("ck,nkl->ncl", p["w1"], cols, precision=P) + p["b1"][None]
    y1 = jnp.maximum(y1, 0.0)
    p1 = jnp.maximum(y1[:, :, 0::2], y1[:, :, 1::2])              # (N, 32, L2)

    w2 = p["w2"].reshape(5 * 32, 64)
    p1p = jnp.pad(p1, ((0, 0), (0, 0), (2, 2)))
    cols2 = jnp.concatenate([p1p[:, :, k:k + L2] for k in range(5)], axis=1)
    y2 = jnp.einsum("nrl,ro->nol", cols2, w2, precision=P) + p["b2"].reshape(1, 64, 1)
    y2 = jnp.maximum(y2, 0.0)
    p2 = jnp.maximum(y2[:, :, 0::2], y2[:, :, 1::2])              # (N, 64, L4)

    w3 = p["w3"].reshape(5 * 64, 128)
    p2p = jnp.pad(p2, ((0, 0), (0, 0), (2, 2)))
    cols3 = jnp.concatenate([p2p[:, :, k:k + L4] for k in range(5)], axis=1)
    y3 = jnp.einsum("nrl,ro->nol", cols3, w3, precision=P) + p["b3"].reshape(1, 128, 1)
    y3 = jnp.maximum(y3, 0.0)                                     # (N, 128, L4)

    a = jnp.transpose(y3, (0, 2, 1)).reshape(N, -1)               # length-major flatten
    a = a.astype(jnp.bfloat16).astype(jnp.float32)                # kernel emits bf16 feats
    h = jnp.maximum(jnp.dot(a, p["wf1"].astype(jnp.float32), precision=P) + p["bf1"], 0.0)
    return jnp.dot(h, p["wf2"], precision=P) + p["bf2"]


if __name__ == "__main__":
    key = jax.random.PRNGKey(0)
    k_x, k_p = jax.random.split(key)
    N, L = 2, 64     # small stand-in for the original (N, 1, 10000) EMG windows
    x = jax.random.normal(k_x, (N, 1, L), jnp.float32)
    params = prepare_params(init_params(k_p, L), L)

    out = jax.block_until_ready(cnn_forward(x, params))
    assert out.shape == (N, 5) and out.dtype == jnp.float32

    ref = jax.block_until_ready(_reference_forward(x, params))
    assert jnp.allclose(out, ref, rtol=5e-2, atol=5e-2), (out, ref)

    print("KERNEL_OK")
</pallas_src>

<mosaic_0001>
module attributes {stable_mosaic.version = 11 : i64} {
  func.func @_conv_stack_kernel(%arg0: i32, %arg1: memref<1x1x64xf32, #tpu.memory_space<vmem>>, %arg2: memref<32x5xf32, #tpu.memory_space<vmem>>, %arg3: memref<32x1xf32, #tpu.memory_space<vmem>>, %arg4: memref<5x32x64xf32, #tpu.memory_space<vmem>>, %arg5: memref<1x64xf32, #tpu.memory_space<vmem>>, %arg6: memref<5x64x128xf32, #tpu.memory_space<vmem>>, %arg7: memref<1x128xf32, #tpu.memory_space<vmem>>, %arg8: memref<1x16x128xbf16, #tpu.memory_space<vmem>>, %arg9: memref<64x32xf32, #tpu.memory_space<vmem>>, %arg10: memref<32x64xf32, #tpu.memory_space<vmem>>) attributes {dimension_semantics = [#tpu.dimension_semantics<parallel>], iteration_bounds = array<i64: 2>, scalar_prefetch = 0 : i64, scratch_operands = 2 : i64, tpu.core_type = #tpu.core_type<tc>, window_params = [{transform_indices = @transform_0, window_bounds = array<i64: 1, 1, 64>}, {pipeline_mode = #tpu.pipeline_mode<synchronous>, transform_indices = @transform_1, window_bounds = array<i64: 32, 5>}, {pipeline_mode = #tpu.pipeline_mode<synchronous>, transform_indices = @transform_2, window_bounds = array<i64: 32, 1>}, {pipeline_mode = #tpu.pipeline_mode<synchronous>, transform_indices = @transform_3, window_bounds = array<i64: 5, 32, 64>}, {pipeline_mode = #tpu.pipeline_mode<synchronous>, transform_indices = @transform_4, window_bounds = array<i64: 1, 64>}, {pipeline_mode = #tpu.pipeline_mode<synchronous>, transform_indices = @transform_5, window_bounds = array<i64: 5, 64, 128>}, {pipeline_mode = #tpu.pipeline_mode<synchronous>, transform_indices = @transform_6, window_bounds = array<i64: 1, 128>}, {transform_indices = @transform_7, window_bounds = array<i64: 1, 16, 128>}]} {
    %c0 = arith.constant 0 : index
    %c0_0 = arith.constant 0 : index
    %c0_1 = arith.constant 0 : index
    %0 = vector.load %arg1[%c0, %c0_0, %c0_1] : memref<1x1x64xf32, #tpu.memory_space<vmem>>, vector<1x1x64xf32>
    %1 = vector.shape_cast %0 : vector<1x1x64xf32> to vector<1x64xf32>
    %cst = arith.constant 0.000000e+00 : f32
    %2 = vector.broadcast %cst : f32 to vector<1x2xf32>
    %3 = tpu.concatenate %2, %1, %2 in 1 : vector<1x2xf32>, vector<1x64xf32>, vector<1x2xf32> -> vector<1x68xf32>
    %4 = vector.extract_strided_slice %3 {offsets = [0, 0], sizes = [1, 64], strides = [1, 1]} : vector<1x68xf32> to vector<1x64xf32>
    %5 = vector.extract_strided_slice %3 {offsets = [0, 1], sizes = [1, 64], strides = [1, 1]} : vector<1x68xf32> to vector<1x64xf32>
    %6 = vector.extract_strided_slice %3 {offsets = [0, 2], sizes = [1, 64], strides = [1, 1]} : vector<1x68xf32> to vector<1x64xf32>
    %7 = vector.extract_strided_slice %3 {offsets = [0, 3], sizes = [1, 64], strides = [1, 1]} : vector<1x68xf32> to vector<1x64xf32>
    %8 = vector.extract_strided_slice %3 {offsets = [0, 4], sizes = [1, 64], strides = [1, 1]} : vector<1x68xf32> to vector<1x64xf32>
    %9 = tpu.concatenate %4, %5, %6, %7, %8 in 0 : vector<1x64xf32>, vector<1x64xf32>, vector<1x64xf32>, vector<1x64xf32>, vector<1x64xf32> -> vector<5x64xf32>
    %c0_2 = arith.constant 0 : index
    %c0_3 = arith.constant 0 : index
    %10 = vector.load %arg2[%c0_2, %c0_3] : memref<32x5xf32, #tpu.memory_space<vmem>>, vector<32x5xf32>
    %cst_4 = arith.constant dense<0.000000e+00> : vector<32x64xf32>
    %11 = tpu.matmul %10, %9, %cst_4 {dimension_numbers = #tpu.dot_dimension_numbers<[1], [0], [0], [1], [0, 0, 1, 1], [], []>} : vector<32x5xf32>, vector<5x64xf32>, vector<32x64xf32> -> vector<32x64xf32>
    %c0_5 = arith.constant 0 : index
    %c0_6 = arith.constant 0 : index
    %12 = vector.load %arg3[%c0_5, %c0_6] : memref<32x1xf32, #tpu.memory_space<vmem>>, vector<32x1xf32>
    %13 = vector.broadcast %12 : vector<32x1xf32> to vector<32x64xf32>
    %14 = arith.addf %11, %13 : vector<32x64xf32>
    %cst_7 = arith.constant 0.000000e+00 : f32
    %15 = vector.broadcast %cst_7 : f32 to vector<32x64xf32>
    %16 = arith.maximumf %14, %15 : vector<32x64xf32>
    %17 = tpu.transpose %16, [1, 0] : vector<32x64xf32> -> vector<64x32xf32>
    %c0_8 = arith.constant 0 : index
    %c0_9 = arith.constant 0 : index
    %18 = vector.load %arg9[%c0_8, %c0_9] : memref<64x32xf32, #tpu.memory_space<vmem>>, vector<64x32xf32>
    tpu.vector_store %arg9[%c0_8, %c0_9], %17 {strides = array<i32>} : memref<64x32xf32, #tpu.memory_space<vmem>>, vector<64x32xf32>,
    %c0_10 = arith.constant 0 : index
    %c0_11 = arith.constant 0 : index
    %19 = tpu.strided_load %arg9[%c0_10, %c0_11] {strides = array<i32: 2, 1>} : memref<64x32xf32, #tpu.memory_space<vmem>>, vector<32x32xf32>
    %c1 = arith.constant 1 : index
    %c0_12 = arith.constant 0 : index
    %20 = tpu.strided_load %arg9[%c1, %c0_12] {strides = array<i32: 2, 1>} : memref<64x32xf32, #tpu.memory_space<vmem>>, vector<32x32xf32>
    %21 = arith.maximumf %19, %20 : vector<32x32xf32>
    %cst_13 = arith.constant 0.000000e+00 : f32
    %22 = vector.broadcast %cst_13 : f32 to vector<2x32xf32>
    %23 = tpu.concatenate %22, %21, %22 in 0 : vector<2x32xf32>, vector<32x32xf32>, vector<2x32xf32> -> vector<36x32xf32>
    %cst_14 = arith.constant 0.000000e+00 : f32
    %24 = vector.broadcast %cst_14 : f32 to vector<32x64xf32>
    %25 = vector.extract_strided_slice %23 {offsets = [0, 0], sizes = [32, 32], strides = [1, 1]} : vector<36x32xf32> to vector<32x32xf32>
    %c0_15 = arith.constant 0 : index
    %c0_16 = arith.constant 0 : index
    %c0_17 = arith.constant 0 : index
    %26 = vector.load %arg4[%c0_15, %c0_16, %c0_17] : memref<5x32x64xf32, #tpu.memory_space<vmem>>, vector<1x32x64xf32>
    %27 = vector.shape_cast %26 : vector<1x32x64xf32> to vector<32x64xf32>
    %cst_18 = arith.constant dense<0.000000e+00> : vector<32x64xf32>
    %28 = tpu.matmul %25, %27, %cst_18 {dimension_numbers = #tpu.dot_dimension_numbers<[1], [0], [0], [1], [0, 0, 1, 1], [], []>} : vector<32x32xf32>, vector<32x64xf32>, vector<32x64xf32> -> vector<32x64xf32>
    %29 = arith.addf %24, %28 : vector<32x64xf32>
    %30 = vector.extract_strided_slice %23 {offsets = [1, 0], sizes = [32, 32], strides = [1, 1]} : vector<36x32xf32> to vector<32x32xf32>
    %c1_19 = arith.constant 1 : index
    %c0_20 = arith.constant 0 : index
    %c0_21 = arith.constant 0 : index
    %31 = vector.load %arg4[%c1_19, %c0_20, %c0_21] : memref<5x32x64xf32, #tpu.memory_space<vmem>>, vector<1x32x64xf32>
    %32 = vector.shape_cast %31 : vector<1x32x64xf32> to vector<32x64xf32>
    %cst_22 = arith.constant dense<0.000000e+00> : vector<32x64xf32>
    %33 = tpu.matmul %30, %32, %cst_22 {dimension_numbers = #tpu.dot_dimension_numbers<[1], [0], [0], [1], [0, 0, 1, 1], [], []>} : vector<32x32xf32>, vector<32x64xf32>, vector<32x64xf32> -> vector<32x64xf32>
    %34 = arith.addf %29, %33 : vector<32x64xf32>
    %35 = vector.extract_strided_slice %23 {offsets = [2, 0], sizes = [32, 32], strides = [1, 1]} : vector<36x32xf32> to vector<32x32xf32>
    %c2 = arith.constant 2 : index
    %c0_23 = arith.constant 0 : index
    %c0_24 = arith.constant 0 : index
    %36 = vector.load %arg4[%c2, %c0_23, %c0_24] : memref<5x32x64xf32, #tpu.memory_space<vmem>>, vector<1x32x64xf32>
    %37 = vector.shape_cast %36 : vector<1x32x64xf32> to vector<32x64xf32>
    %cst_25 = arith.constant dense<0.000000e+00> : vector<32x64xf32>
    %38 = tpu.matmul %35, %37, %cst_25 {dimension_numbers = #tpu.dot_dimension_numbers<[1], [0], [0], [1], [0, 0, 1, 1], [], []>} : vector<32x32xf32>, vector<32x64xf32>, vector<32x64xf32> -> vector<32x64xf32>
    %39 = arith.addf %34, %38 : vector<32x64xf32>
    %40 = vector.extract_strided_slice %23 {offsets = [3, 0], sizes = [32, 32], strides = [1, 1]} : vector<36x32xf32> to vector<32x32xf32>
    %c3 = arith.constant 3 : index
    %c0_26 = arith.constant 0 : index
    %c0_27 = arith.constant 0 : index
    %41 = vector.load %arg4[%c3, %c0_26, %c0_27] : memref<5x32x64xf32, #tpu.memory_space<vmem>>, vector<1x32x64xf32>
    %42 = vector.shape_cast %41 : vector<1x32x64xf32> to vector<32x64xf32>
    %cst_28 = arith.constant dense<0.000000e+00> : vector<32x64xf32>
    %43 = tpu.matmul %40, %42, %cst_28 {dimension_numbers = #tpu.dot_dimension_numbers<[1], [0], [0], [1], [0, 0, 1, 1], [], []>} : vector<32x32xf32>, vector<32x64xf32>, vector<32x64xf32> -> vector<32x64xf32>
    %44 = arith.addf %39, %43 : vector<32x64xf32>
    %45 = vector.extract_strided_slice %23 {offsets = [4, 0], sizes = [32, 32], strides = [1, 1]} : vector<36x32xf32> to vector<32x32xf32>
    %c4 = arith.constant 4 : index
    %c0_29 = arith.constant 0 : index
    %c0_30 = arith.constant 0 : index
    %46 = vector.load %arg4[%c4, %c0_29, %c0_30] : memref<5x32x64xf32, #tpu.memory_space<vmem>>, vector<1x32x64xf32>
    %47 = vector.shape_cast %46 : vector<1x32x64xf32> to vector<32x64xf32>
    %cst_31 = arith.constant dense<0.000000e+00> : vector<32x64xf32>
    %48 = tpu.matmul %45, %47, %cst_31 {dimension_numbers = #tpu.dot_dimension_numbers<[1], [0], [0], [1], [0, 0, 1, 1], [], []>} : vector<32x32xf32>, vector<32x64xf32>, vector<32x64xf32> -> vector<32x64xf32>
    %49 = arith.addf %44, %48 : vector<32x64xf32>
    %c0_32 = arith.constant 0 : index
    %c0_33 = arith.constant 0 : index
    %50 = vector.load %arg5[%c0_32, %c0_33] : memref<1x64xf32, #tpu.memory_space<vmem>>, vector<1x64xf32>
    %51 = vector.broadcast %50 : vector<1x64xf32> to vector<32x64xf32>
    %52 = arith.addf %49, %51 : vector<32x64xf32>
    %cst_34 = arith.constant 0.000000e+00 : f32
    %53 = vector.broadcast %cst_34 : f32 to vector<32x64xf32>
    %54 = arith.maximumf %52, %53 : vector<32x64xf32>
    %c0_35 = arith.constant 0 : index
    %c0_36 = arith.constant 0 : index
    %55 = vector.load %arg10[%c0_35, %c0_36] : memref<32x64xf32, #tpu.memory_space<vmem>>, vector<32x64xf32>
    tpu.vector_store %arg10[%c0_35, %c0_36], %54 {strides = array<i32>} : memref<32x64xf32, #tpu.memory_space<vmem>>, vector<32x64xf32>,
    %c0_37 = arith.constant 0 : index
    %c0_38 = arith.constant 0 : index
    %56 = tpu.strided_load %arg10[%c0_37, %c0_38] {strides = array<i32: 2, 1>} : memref<32x64xf32, #tpu.memory_space<vmem>>, vector<16x64xf32>
    %c1_39 = arith.constant 1 : index
    %c0_40 = arith.constant 0 : index
    %57 = tpu.strided_load %arg10[%c1_39, %c0_40] {strides = array<i32: 2, 1>} : memref<32x64xf32, #tpu.memory_space<vmem>>, vector<16x64xf32>
    %58 = arith.maximumf %56, %57 : vector<16x64xf32>
    %cst_41 = arith.constant 0.000000e+00 : f32
    %59 = vector.broadcast %cst_41 : f32 to vector<2x64xf32>
    %60 = tpu.concatenate %59, %58, %59 in 0 : vector<2x64xf32>, vector<16x64xf32>, vector<2x64xf32> -> vector<20x64xf32>
    %cst_42 = arith.constant 0.000000e+00 : f32
    %61 = vector.broadcast %cst_42 : f32 to vector<16x128xf32>
    %62 = vector.extract_strided_slice %60 {offsets = [0, 0], sizes = [16, 64], strides = [1, 1]} : vector<20x64xf32> to vector<16x64xf32>
    %c0_43 = arith.constant 0 : index
    %c0_44 = arith.constant 0 : index
    %c0_45 = arith.constant 0 : index
    %63 = vector.load %arg6[%c0_43, %c0_44, %c0_45] : memref<5x64x128xf32, #tpu.memory_space<vmem>>, vector<1x64x128xf32>
    %64 = vector.shape_cast %63 : vector<1x64x128xf32> to vector<64x128xf32>
    %cst_46 = arith.constant dense<0.000000e+00> : vector<16x128xf32>
    %65 = tpu.matmul %62, %64, %cst_46 {dimension_numbers = #tpu.dot_dimension_numbers<[1], [0], [0], [1], [0, 0, 1, 1], [], []>} : vector<16x64xf32>, vector<64x128xf32>, vector<16x128xf32> -> vector<16x128xf32>
    %66 = arith.addf %61, %65 : vector<16x128xf32>
    %67 = vector.extract_strided_slice %60 {offsets = [1, 0], sizes = [16, 64], strides = [1, 1]} : vector<20x64xf32> to vector<16x64xf32>
    %c1_47 = arith.constant 1 : index
    %c0_48 = arith.constant 0 : index
    %c0_49 = arith.constant 0 : index
    %68 = vector.load %arg6[%c1_47, %c0_48, %c0_49] : memref<5x64x128xf32, #tpu.memory_space<vmem>>, vector<1x64x128xf32>
    %69 = vector.shape_cast %68 : vector<1x64x128xf32> to vector<64x128xf32>
    %cst_50 = arith.constant dense<0.000000e+00> : vector<16x128xf32>
    %70 = tpu.matmul %67, %69, %cst_50 {dimension_numbers = #tpu.dot_dimension_numbers<[1], [0], [0], [1], [0, 0, 1, 1], [], []>} : vector<16x64xf32>, vector<64x128xf32>, vector<16x128xf32> -> vector<16x128xf32>
    %71 = arith.addf %66, %70 : vector<16x128xf32>
    %72 = vector.extract_strided_slice %60 {offsets = [2, 0], sizes = [16, 64], strides = [1, 1]} : vector<20x64xf32> to vector<16x64xf32>
    %c2_51 = arith.constant 2 : index
    %c0_52 = arith.constant 0 : index
    %c0_53 = arith.constant 0 : index
    %73 = vector.load %arg6[%c2_51, %c0_52, %c0_53] : memref<5x64x128xf32, #tpu.memory_space<vmem>>, vector<1x64x128xf32>
    %74 = vector.shape_cast %73 : vector<1x64x128xf32> to vector<64x128xf32>
    %cst_54 = arith.constant dense<0.000000e+00> : vector<16x128xf32>
    %75 = tpu.matmul %72, %74, %cst_54 {dimension_numbers = #tpu.dot_dimension_numbers<[1], [0], [0], [1], [0, 0, 1, 1], [], []>} : vector<16x64xf32>, vector<64x128xf32>, vector<16x128xf32> -> vector<16x128xf32>
    %76 = arith.addf %71, %75 : vector<16x128xf32>
    %77 = vector.extract_strided_slice %60 {offsets = [3, 0], sizes = [16, 64], strides = [1, 1]} : vector<20x64xf32> to vector<16x64xf32>
    %c3_55 = arith.constant 3 : index
    %c0_56 = arith.constant 0 : index
    %c0_57 = arith.constant 0 : index
    %78 = vector.load %arg6[%c3_55, %c0_56, %c0_57] : memref<5x64x128xf32, #tpu.memory_space<vmem>>, vector<1x64x128xf32>
    %79 = vector.shape_cast %78 : vector<1x64x128xf32> to vector<64x128xf32>
    %cst_58 = arith.constant dense<0.000000e+00> : vector<16x128xf32>
    %80 = tpu.matmul %77, %79, %cst_58 {dimension_numbers = #tpu.dot_dimension_numbers<[1], [0], [0], [1], [0, 0, 1, 1], [], []>} : vector<16x64xf32>, vector<64x128xf32>, vector<16x128xf32> -> vector<16x128xf32>
    %81 = arith.addf %76, %80 : vector<16x128xf32>
    %82 = vector.extract_strided_slice %60 {offsets = [4, 0], sizes = [16, 64], strides = [1, 1]} : vector<20x64xf32> to vector<16x64xf32>
    %c4_59 = arith.constant 4 : index
    %c0_60 = arith.constant 0 : index
    %c0_61 = arith.constant 0 : index
    %83 = vector.load %arg6[%c4_59, %c0_60, %c0_61] : memref<5x64x128xf32, #tpu.memory_space<vmem>>, vector<1x64x128xf32>
    %84 = vector.shape_cast %83 : vector<1x64x128xf32> to vector<64x128xf32>
    %cst_62 = arith.constant dense<0.000000e+00> : vector<16x128xf32>
    %85 = tpu.matmul %82, %84, %cst_62 {dimension_numbers = #tpu.dot_dimension_numbers<[1], [0], [0], [1], [0, 0, 1, 1], [], []>} : vector<16x64xf32>, vector<64x128xf32>, vector<16x128xf32> -> vector<16x128xf32>
    %86 = arith.addf %81, %85 : vector<16x128xf32>
    %c0_63 = arith.constant 0 : index
    %c0_64 = arith.constant 0 : index
    %87 = vector.load %arg7[%c0_63, %c0_64] : memref<1x128xf32, #tpu.memory_space<vmem>>, vector<1x128xf32>
    %88 = vector.broadcast %87 : vector<1x128xf32> to vector<16x128xf32>
    %89 = arith.addf %86, %88 : vector<16x128xf32>
    %cst_65 = arith.constant 0.000000e+00 : f32
    %90 = vector.broadcast %cst_65 : f32 to vector<16x128xf32>
    %91 = arith.maximumf %89, %90 : vector<16x128xf32>
    %92 = arith.truncf %91 : vector<16x128xf32> to vector<16x128xbf16>
    %c0_66 = arith.constant 0 : index
    %c0_67 = arith.constant 0 : index
    %c0_68 = arith.constant 0 : index
    %93 = vector.load %arg8[%c0_66, %c0_67, %c0_68] : memref<1x16x128xbf16, #tpu.memory_space<vmem>>, vector<1x16x128xbf16>
    %94 = vector.shape_cast %93 : vector<1x16x128xbf16> to vector<16x128xbf16>
    %95 = vector.shape_cast %92 : vector<16x128xbf16> to vector<1x16x128xbf16>
    tpu.vector_store %arg8[%c0_66, %c0_67, %c0_68], %95 {strides = array<i32>} : memref<1x16x128xbf16, #tpu.memory_space<vmem>>, vector<1x16x128xbf16>,
    return
  }
  func.func @transform_0(%arg0: i32) -> (i32, i32, i32) {
    %c0_i32 = arith.constant 0 : i32
    %c0_i32_0 = arith.constant 0 : i32
    %c0_i32_1 = arith.constant 0 : i32
    return %arg0, %c0_i32, %c0_i32_0 : i32, i32, i32
  }
  func.func @transform_1(%arg0: i32) -> (i32, i32) {
    %c0_i32 = arith.constant 0 : i32
    %c0_i32_0 = arith.constant 0 : i32
    %c0_i32_1 = arith.constant 0 : i32
    return %c0_i32, %c0_i32_0 : i32, i32
  }
  func.func @transform_2(%arg0: i32) -> (i32, i32) {
    %c0_i32 = arith.constant 0 : i32
    %c0_i32_0 = arith.constant 0 : i32
    %c0_i32_1 = arith.constant 0 : i32
    return %c0_i32, %c0_i32_0 : i32, i32
  }
  func.func @transform_3(%arg0: i32) -> (i32, i32, i32) {
    %c0_i32 = arith.constant 0 : i32
    %c0_i32_0 = arith.constant 0 : i32
    %c0_i32_1 = arith.constant 0 : i32
    %c0_i32_2 = arith.constant 0 : i32
    return %c0_i32, %c0_i32_0, %c0_i32_1 : i32, i32, i32
  }
  func.func @transform_4(%arg0: i32) -> (i32, i32) {
    %c0_i32 = arith.constant 0 : i32
    %c0_i32_0 = arith.constant 0 : i32
    %c0_i32_1 = arith.constant 0 : i32
    return %c0_i32, %c0_i32_0 : i32, i32
  }
  func.func @transform_5(%arg0: i32) -> (i32, i32, i32) {
    %c0_i32 = arith.constant 0 : i32
    %c0_i32_0 = arith.constant 0 : i32
    %c0_i32_1 = arith.constant 0 : i32
    %c0_i32_2 = arith.constant 0 : i32
    return %c0_i32, %c0_i32_0, %c0_i32_1 : i32, i32, i32
  }
  func.func @transform_6(%arg0: i32) -> (i32, i32) {
    %c0_i32 = arith.constant 0 : i32
    %c0_i32_0 = arith.constant 0 : i32
    %c0_i32_1 = arith.constant 0 : i32
    return %c0_i32, %c0_i32_0 : i32, i32
  }
  func.func @transform_7(%arg0: i32) -> (i32, i32, i32) {
    %c0_i32 = arith.constant 0 : i32
    %c0_i32_0 = arith.constant 0 : i32
    %c0_i32_1 = arith.constant 0 : i32
    return %arg0, %c0_i32, %c0_i32_0 : i32, i32, i32
  }
}

module attributes {stable_mosaic.version = 11 : i64} {
  func.func @_head_kernel(%arg0: i32, %arg1: i32, %arg2: memref<8x2048xbf16, #tpu.memory_space<vmem>>, %arg3: memref<2048x128xbf16, #tpu.memory_space<vmem>>, %arg4: memref<1x128xf32, #tpu.memory_space<vmem>>, %arg5: memref<128x5xf32, #tpu.memory_space<vmem>>, %arg6: memref<1x8x5xf32, #tpu.memory_space<vmem>>, %arg7: memref<8x128xf32, #tpu.memory_space<vmem>>) attributes {dimension_semantics = [#tpu.dimension_semantics<parallel>, #tpu.dimension_semantics<arbitrary>], iteration_bounds = array<i64: 2, 1>, scalar_prefetch = 0 : i64, scratch_operands = 1 : i64, tpu.core_type = #tpu.core_type<tc>, window_params = [{transform_indices = @transform_0, window_bounds = array<i64: 8, 2048>}, {transform_indices = @transform_1, window_bounds = array<i64: 2048, 128>}, {transform_indices = @transform_2, window_bounds = array<i64: 1, 128>}, {transform_indices = @transform_3, window_bounds = array<i64: 128, 5>}, {transform_indices = @transform_4, window_bounds = array<i64: 1, 8, 5>}]} {
    %c0_i32 = arith.constant 0 : i32
    %0 = arith.cmpi eq, %arg1, %c0_i32 : i32
    %1 = arith.extui %0 : i1 to i32
    %c0_i32_0 = arith.constant 0 : i32
    %2 = arith.cmpi ne, %1, %c0_i32_0 : i32
    scf.if %2 {
      %cst_10 = arith.constant 0.000000e+00 : f32
      %12 = vector.broadcast %cst_10 : f32 to vector<8x128xf32>
      %c0_11 = arith.constant 0 : index
      %c0_12 = arith.constant 0 : index
      %13 = vector.load %arg7[%c0_11, %c0_12] : memref<8x128xf32, #tpu.memory_space<vmem>>, vector<8x128xf32>
      tpu.vector_store %arg7[%c0_11, %c0_12], %12 {strides = array<i32>} : memref<8x128xf32, #tpu.memory_space<vmem>>, vector<8x128xf32>,
    } else {
    }
    %c0 = arith.constant 0 : index
    %c0_1 = arith.constant 0 : index
    %3 = vector.load %arg7[%c0, %c0_1] : memref<8x128xf32, #tpu.memory_space<vmem>>, vector<8x128xf32>
    %c0_2 = arith.constant 0 : index
    %c0_3 = arith.constant 0 : index
    %4 = vector.load %arg2[%c0_2, %c0_3] : memref<8x2048xbf16, #tpu.memory_space<vmem>>, vector<8x2048xbf16>
    %c0_4 = arith.constant 0 : index
    %c0_5 = arith.constant 0 : index
    %5 = vector.load %arg3[%c0_4, %c0_5] : memref<2048x128xbf16, #tpu.memory_space<vmem>>, vector<2048x128xbf16>
    %cst = arith.constant dense<0.000000e+00> : vector<8x128xf32>
    %6 = tpu.matmul %4, %5, %cst {dimension_numbers = #tpu.dot_dimension_numbers<[1], [0], [0], [1], [0, 0, 1, 1], [], []>} : vector<8x2048xbf16>, vector<2048x128xbf16>, vector<8x128xf32> -> vector<8x128xf32>
    %7 = arith.addf %3, %6 : vector<8x128xf32>
    %c0_6 = arith.constant 0 : index
    %c0_7 = arith.constant 0 : index
    %8 = vector.load %arg7[%c0_6, %c0_7] : memref<8x128xf32, #tpu.memory_space<vmem>>, vector<8x128xf32>
    tpu.vector_store %arg7[%c0_6, %c0_7], %7 {strides = array<i32>} : memref<8x128xf32, #tpu.memory_space<vmem>>, vector<8x128xf32>,
    %c0_i32_8 = arith.constant 0 : i32
    %9 = arith.cmpi eq, %arg1, %c0_i32_8 : i32
    %10 = arith.extui %9 : i1 to i32
    %c0_i32_9 = arith.constant 0 : i32
    %11 = arith.cmpi ne, %10, %c0_i32_9 : i32
    scf.if %11 {
      %c0_10 = arith.constant 0 : index
      %c0_11 = arith.constant 0 : index
      %12 = vector.load %arg7[%c0_10, %c0_11] : memref<8x128xf32, #tpu.memory_space<vmem>>, vector<8x128xf32>
      %c0_12 = arith.constant 0 : index
      %c0_13 = arith.constant 0 : index
      %13 = vector.load %arg4[%c0_12, %c0_13] : memref<1x128xf32, #tpu.memory_space<vmem>>, vector<1x128xf32>
      %14 = vector.broadcast %13 : vector<1x128xf32> to vector<8x128xf32>
      %15 = arith.addf %12, %14 : vector<8x128xf32>
      %cst_14 = arith.constant 0.000000e+00 : f32
      %16 = vector.broadcast %cst_14 : f32 to vector<8x128xf32>
      %17 = arith.maximumf %15, %16 : vector<8x128xf32>
      %c0_15 = arith.constant 0 : index
      %c0_16 = arith.constant 0 : index
      %18 = vector.load %arg5[%c0_15, %c0_16] : memref<128x5xf32, #tpu.memory_space<vmem>>, vector<128x5xf32>
      %cst_17 = arith.constant dense<0.000000e+00> : vector<8x5xf32>
      %19 = tpu.matmul %17, %18, %cst_17 {dimension_numbers = #tpu.dot_dimension_numbers<[1], [0], [0], [1], [0, 0, 1, 1], [], []>} : vector<8x128xf32>, vector<128x5xf32>, vector<8x5xf32> -> vector<8x5xf32>
      %c0_18 = arith.constant 0 : index
      %c0_19 = arith.constant 0 : index
      %c0_20 = arith.constant 0 : index
      %20 = vector.load %arg6[%c0_18, %c0_19, %c0_20] : memref<1x8x5xf32, #tpu.memory_space<vmem>>, vector<1x8x5xf32>
      %21 = vector.shape_cast %20 : vector<1x8x5xf32> to vector<8x5xf32>
      %22 = vector.shape_cast %19 : vector<8x5xf32> to vector<1x8x5xf32>
      tpu.vector_store %arg6[%c0_18, %c0_19, %c0_20], %22 {strides = array<i32>} : memref<1x8x5xf32, #tpu.memory_space<vmem>>, vector<1x8x5xf32>,
    } else {
    }
    return
  }
  func.func @transform_0(%arg0: i32, %arg1: i32) -> (i32, i32) {
    %c0_i32 = arith.constant 0 : i32
    %c0_i32_0 = arith.constant 0 : i32
    return %c0_i32, %arg1 : i32, i32
  }
  func.func @transform_1(%arg0: i32, %arg1: i32) -> (i32, i32) {
    %c0_i32 = arith.constant 0 : i32
    return %arg1, %arg0 : i32, i32
  }
  func.func @transform_2(%arg0: i32, %arg1: i32) -> (i32, i32) {
    %c0_i32 = arith.constant 0 : i32
    %c0_i32_0 = arith.constant 0 : i32
    return %c0_i32, %arg0 : i32, i32
  }
  func.func @transform_3(%arg0: i32, %arg1: i32) -> (i32, i32) {
    %c0_i32 = arith.constant 0 : i32
    %c0_i32_0 = arith.constant 0 : i32
    return %arg0, %c0_i32 : i32, i32
  }
  func.func @transform_4(%arg0: i32, %arg1: i32) -> (i32, i32, i32) {
    %c0_i32 = arith.constant 0 : i32
    %c0_i32_0 = arith.constant 0 : i32
    %c0_i32_1 = arith.constant 0 : i32
    return %arg0, %c0_i32, %c0_i32_0 : i32, i32, i32
  }
}

</mosaic_0001>

<llo_original>
// kernel: cnn_forward.2
$region0: #{cnn_forward.2}
  #allocation0 [shape = 'u32[]', space=smem, size = 0x4, offset = 0x4, fixed_abs, tag = 'smem constant byte address 0x4 - core index']
  #allocation1 [shape = 'u32[144,128]{1,0:T(1,128)}', space=vmem, size = 0x12000, scoped, tag = 'internal scratch']
  #allocation2 [shape = 'f32[64,32]{1,0:T(8,128)}', space=vmem, size = 0x8000, scoped, tag = 'scratch operand']
  #allocation3 [shape = 'f32[32,64]{1,0:T(8,128)}', space=vmem, size = 0x4000, scoped, tag = 'scratch operand']
  %s0 = inlined_call_operand.vmem [shape: f32[2,1,64], index: 0, kind: input, shape index: {}]
  %s1 = inlined_call_operand.vmem [shape: f32[32,5], index: 1, kind: input, shape index: {}]
  %s2 = inlined_call_operand.vmem [shape: f32[32,1], index: 2, kind: input, shape index: {}]
  %s3 = inlined_call_operand.hbm [shape: f32[5,32,64], index: 3, kind: input, shape index: {}]
  %s4 = inlined_call_operand.vmem [shape: f32[1,64], index: 4, kind: input, shape index: {}]
  %s5 = inlined_call_operand.hbm [shape: f32[5,64,128], index: 5, kind: input, shape index: {}]
  %s6 = inlined_call_operand.vmem [shape: f32[1,128], index: 6, kind: input, shape index: {}]
  %s7 = inlined_call_operand.vmem [shape: bf16[8,16,128], index: 7, kind: output, shape index: {}]
  %s8 = sld [smem:[#allocation0]]
  $region69: #{cnn_forward.2} parent=0
    _
  %s10 = ssub.s32 1, %s8
  %s11 = scalar_select 0, %s10, %s8
  $region1: #{cnn_forward.2} parent=0
    #allocation4 [shape = 'u8[81920]{0}', space=vmem, size = 0x14000, scoped, tag = 'input window, operand 3, single buffered']
    #allocation5 [shape = 's32[2]{0}', space=sflag, size = 0x8, scoped, tag = 'scoped memory for cnn_forward.2']
    #allocation6 [shape = 'u8[163840]{0}', space=vmem, size = 0x28000, scoped, tag = 'input window, operand 5, single buffered']
    #allocation7 [shape = 's32[1]{0}', space=sflag, size = 0x4, scoped, tag = 'scoped memory for cnn_forward.2']
    %12 = vsyncpa [#allocation5], 0
    %13 = vsyncpa [#allocation7], 0
    loop: start=0, step=1, limit=4
    $region2: #{cnn_forward.2} parent=1 // loop_pre_header
      _
    $region3: #{cnn_forward.2} parent=1 // loop_header
      %s15 = sphi 0, %s19
      %p16 = scmp.ge.s32.totalorder %s15, 4
      %s25 = sphi 0, %s27
      %s28 = sphi 0, %s25
      %s29 = sphi 0, %s28
      %s45 = sphi 0, %s29
      %s49 = sphi 0, %s49
      %s51 = sphi 0, %s49
      %s52 = sphi 0, %s51
      %s66 = sphi 0, %s52
      %s70 = sphi 0, %s70
      %s72 = sphi 0, %s70
      %s73 = sphi 0, %s72
      %s87 = sphi 0, %s73
      %s91 = sphi 0, %s91
      %s93 = sphi 0, %s91
      %s94 = sphi 0, %s93
      %s108 = sphi 0, %s94
      %s112 = sphi 0, %s112
      %s114 = sphi 0, %s112
      %s115 = sphi 0, %s114
      %s129 = sphi 0, %s115
      %s133 = sphi 0, %s133
      %s135 = sphi 0, %s133
      %s136 = sphi 0, %s135
      %s150 = sphi 0, %s136
      %s154 = sphi 0, %s154
      %s156 = sphi 0, %s154
      %s157 = sphi 0, %s156
      %s171 = sphi 0, %s157
      %s177 = sphi 0, %s179
      %s180 = sphi 0, %s177
      %s181 = sphi 0, %s180
      %s197 = sphi 0, %s181
    $region4: #{cnn_forward.2} parent=1 // loop_header_branch
      %18 = sbr.rel (%p16) target = $region8
    $region5: #{cnn_forward.2} parent=1 // loop_body
      %s20 = ssub.s32 %s15, 1
      %s21 = ssub.s32 %s15, 2
      %s22 = sadd.s32 %s15, 1
      %s23 = ssub.s32 %s15, %s22
      %p24 = scmp.eq.s32.totalorder %s23, 0
      %s26 = sadd.s32 %s25, 1
      %s27 = scalar_select %p24, %s25, %s26
      %p30 = pneg %p24
      %p31 = scmp.eq.s32.totalorder %s15, 1
      %p32 = por %p30, %p31
      %p33 = scmp.ne.s32.totalorder %s25, %s28
      %p34 = scmp.eq.s32.totalorder %s15, 0
      %p35 = por %p33, %p34
      %p36 = scmp.ne.s32.totalorder %s25, %s28
      %p37 = scmp.eq.s32.totalorder %s20, 1
      %p38 = por %p36, %p37
      %p39 = scmp.ne.s32.totalorder %s28, %s29
      %p40 = scmp.eq.s32.totalorder %s20, 0
      %p41 = por %p39, %p40
      %p42 = scmp.ne.s32.totalorder %s28, %s29
      %p43 = scmp.eq.s32.totalorder %s21, 1
      %p44 = por %p42, %p43
      %p46 = scmp.ne.s32.totalorder %s29, %s45
      %p47 = scmp.eq.s32.totalorder %s21, 0
      %p48 = por %p46, %p47
      %s50 = sadd.s32 %s49, 1
      %p53 = scmp.eq.s32.totalorder %s15, 1
      %p54 = scmp.ne.s32.totalorder %s49, %s51
      %p55 = scmp.eq.s32.totalorder %s15, 0
      %p56 = por %p54, %p55
      %p57 = scmp.ne.s32.totalorder %s49, %s51
      %p58 = scmp.eq.s32.totalorder %s20, 1
      %p59 = por %p57, %p58
      %p60 = scmp.ne.s32.totalorder %s51, %s52
      %p61 = scmp.eq.s32.totalorder %s20, 0
      %p62 = por %p60, %p61
      %p63 = scmp.ne.s32.totalorder %s51, %s52
      %p64 = scmp.eq.s32.totalorder %s21, 1
      %p65 = por %p63, %p64
      %p67 = scmp.ne.s32.totalorder %s52, %s66
      %p68 = scmp.eq.s32.totalorder %s21, 0
      %p69 = por %p67, %p68
      %s71 = sadd.s32 %s70, 1
      %p74 = scmp.eq.s32.totalorder %s15, 1
      %p75 = scmp.ne.s32.totalorder %s70, %s72
      %p76 = scmp.eq.s32.totalorder %s15, 0
      %p77 = por %p75, %p76
      %p78 = scmp.ne.s32.totalorder %s70, %s72
      %p79 = scmp.eq.s32.totalorder %s20, 1
      %p80 = por %p78, %p79
      %p81 = scmp.ne.s32.totalorder %s72, %s73
      %p82 = scmp.eq.s32.totalorder %s20, 0
      %p83 = por %p81, %p82
      %p84 = scmp.ne.s32.totalorder %s72, %s73
      %p85 = scmp.eq.s32.totalorder %s21, 1
      %p86 = por %p84, %p85
      %p88 = scmp.ne.s32.totalorder %s73, %s87
      %p89 = scmp.eq.s32.totalorder %s21, 0
      %p90 = por %p88, %p89
      %s92 = sadd.s32 %s91, 1
      %p95 = scmp.eq.s32.totalorder %s15, 1
      %p96 = scmp.ne.s32.totalorder %s91, %s93
      %p97 = scmp.eq.s32.totalorder %s15, 0
      %p98 = por %p96, %p97
      %p99 = scmp.ne.s32.totalorder %s91, %s93
      %p100 = scmp.eq.s32.totalorder %s20, 1
      %p101 = por %p99, %p100
      %p102 = scmp.ne.s32.totalorder %s93, %s94
      %p103 = scmp.eq.s32.totalorder %s20, 0
      %p104 = por %p102, %p103
      %p105 = scmp.ne.s32.totalorder %s93, %s94
      %p106 = scmp.eq.s32.totalorder %s21, 1
      %p107 = por %p105, %p106
      %p109 = scmp.ne.s32.totalorder %s94, %s108
      %p110 = scmp.eq.s32.totalorder %s21, 0
      %p111 = por %p109, %p110
      %s113 = sadd.s32 %s112, 1
      %p116 = scmp.eq.s32.totalorder %s15, 1
      %p117 = scmp.ne.s32.totalorder %s112, %s114
      %p118 = scmp.eq.s32.totalorder %s15, 0
      %p119 = por %p117, %p118
      %p120 = scmp.ne.s32.totalorder %s112, %s114
      %p121 = scmp.eq.s32.totalorder %s20, 1
      %p122 = por %p120, %p121
      %p123 = scmp.ne.s32.totalorder %s114, %s115
      %p124 = scmp.eq.s32.totalorder %s20, 0
      %p125 = por %p123, %p124
      %p126 = scmp.ne.s32.totalorder %s114, %s115
      %p127 = scmp.eq.s32.totalorder %s21, 1
      %p128 = por %p126, %p127
      %p130 = scmp.ne.s32.totalorder %s115, %s129
      %p131 = scmp.eq.s32.totalorder %s21, 0
      %p132 = por %p130, %p131
      %s134 = sadd.s32 %s133, 1
      %p137 = scmp.eq.s32.totalorder %s15, 1
      %p138 = scmp.ne.s32.totalorder %s133, %s135
      %p139 = scmp.eq.s32.totalorder %s15, 0
      %p140 = por %p138, %p139
      %p141 = scmp.ne.s32.totalorder %s133, %s135
      %p142 = scmp.eq.s32.totalorder %s20, 1
      %p143 = por %p141, %p142
      %p144 = scmp.ne.s32.totalorder %s135, %s136
      %p145 = scmp.eq.s32.totalorder %s20, 0
      %p146 = por %p144, %p145
      %p147 = scmp.ne.s32.totalorder %s135, %s136
      %p148 = scmp.eq.s32.totalorder %s21, 1
      %p149 = por %p147, %p148
      %p151 = scmp.ne.s32.totalorder %s136, %s150
      %p152 = scmp.eq.s32.totalorder %s21, 0
      %p153 = por %p151, %p152
      %s155 = sadd.s32 %s154, 1
      %p158 = scmp.eq.s32.totalorder %s15, 1
      %p159 = scmp.ne.s32.totalorder %s154, %s156
      %p160 = scmp.eq.s32.totalorder %s15, 0
      %p161 = por %p159, %p160
      %p162 = scmp.ne.s32.totalorder %s154, %s156
      %p163 = scmp.eq.s32.totalorder %s20, 1
      %p164 = por %p162, %p163
      %p165 = scmp.ne.s32.totalorder %s156, %s157
      %p166 = scmp.eq.s32.totalorder %s20, 0
      %p167 = por %p165, %p166
      %p168 = scmp.ne.s32.totalorder %s156, %s157
      %p169 = scmp.eq.s32.totalorder %s21, 1
      %p170 = por %p168, %p169
      %p172 = scmp.ne.s32.totalorder %s157, %s171
      %p173 = scmp.eq.s32.totalorder %s21, 0
      %p174 = por %p172, %p173
      %s175 = ssub.s32 %s15, %s22
      %p176 = scmp.eq.s32.totalorder %s175, 0
      %s178 = sadd.s32 %s177, 1
      %s179 = scalar_select %p176, %s177, %s178
      %p182 = pneg %p176
      %p183 = scmp.eq.s32.totalorder %s15, 1
      %p184 = por %p182, %p183
      %p185 = scmp.ne.s32.totalorder %s177, %s180
      %p186 = scmp.eq.s32.totalorder %s15, 0
      %p187 = por %p185, %p186
      %p188 = scmp.ne.s32.totalorder %s177, %s180
      %p189 = scmp.eq.s32.totalorder %s20, 1
      %p190 = por %p188, %p189
      %p191 = scmp.ne.s32.totalorder %s180, %s181
      %p192 = scmp.eq.s32.totalorder %s20, 0
      %p193 = por %p191, %p192
      %p194 = scmp.ne.s32.totalorder %s180, %s181
      %p195 = scmp.eq.s32.totalorder %s21, 1
      %p196 = por %p194, %p195
      %p198 = scmp.ne.s32.totalorder %s181, %s197
      %p199 = scmp.eq.s32.totalorder %s21, 0
      %p200 = por %p198, %p199
      %p201 = scmp.le.s32.totalorder 1, %s15
      %p202 = scmp.lt.s32.totalorder %s15, 3
      %p203 = pnand %p201, %p202
      %p204 = pneg %p203
      // Predicated region
      $region9: #{cnn_forward.2} parent=5 // pred_check
        _
      $region10: #{cnn_forward.2} parent=5 // pred_check_branch
        %206 = sbr.rel (%p203) target = $region12
      $region11: #{cnn_forward.2} parent=5 // pred_region
        %s207 = ssub.s32 %s15, 1
        // Predicated region
        $region13: #{cnn_forward.2} parent=11 // pred_check
          %p208 = pneg %p62
        $region14: #{cnn_forward.2} parent=11 // pred_check_branch
          %210 = sbr.rel (%p208) target = $region16
        $region15: #{cnn_forward.2} parent=11 // pred_region
          _
        $region16: #{cnn_forward.2} parent=11 // pred_fallthru
          _
        // Predicated region
        $region17: #{cnn_forward.2} parent=11 // pred_check
          %p211 = pneg %p83
        $region18: #{cnn_forward.2} parent=11 // pred_check_branch
          %213 = sbr.rel (%p211) target = $region20
        $region19: #{cnn_forward.2} parent=11 // pred_region
          _
        $region20: #{cnn_forward.2} parent=11 // pred_fallthru
          _
        // Predicated region
        $region21: #{cnn_forward.2} parent=11 // pred_check
          %p214 = pneg %p104
        $region22: #{cnn_forward.2} parent=11 // pred_check_branch
          %216 = sbr.rel (%p214) target = $region24
        $region23: #{cnn_forward.2} parent=11 // pred_region
          %s218 = ssub.s32 2560, 2560
          %219 = vsyncadd [#allocation5], %s218
          %s220 = sshll.u32 [#allocation4], 4
          %s221 = int_to_ptr.vmem [resolvable:$true] %s220
          %226 = dma.hbm_to_vmem [thread:$0]  %s3, 2560, %s221, [#allocation5], 128, 128, 8
        $region24: #{cnn_forward.2} parent=11 // pred_fallthru
          _
        // Predicated region
        $region25: #{cnn_forward.2} parent=11 // pred_check
          %p227 = pneg %p125
        $region26: #{cnn_forward.2} parent=11 // pred_check_branch
          %229 = sbr.rel (%p227) target = $region28
        $region27: #{cnn_forward.2} parent=11 // pred_region
          _
        $region28: #{cnn_forward.2} parent=11 // pred_fallthru
          _
        // Predicated region
        $region29: #{cnn_forward.2} parent=11 // pred_check
          %p230 = pneg %p146
        $region30: #{cnn_forward.2} parent=11 // pred_check_branch
          %232 = sbr.rel (%p230) target = $region32
        $region31: #{cnn_forward.2} parent=11 // pred_region
          %s234 = ssub.s32 5120, 5120
          %235 = vsyncadd [#allocation7], %s234
          %s236 = sshll.u32 [#allocation6], 4
          %s237 = int_to_ptr.vmem [resolvable:$true] %s236
          %242 = dma.hbm_to_vmem [thread:$0]  %s5, 5120, %s237, [#allocation7], 128, 128, 8
        $region32: #{cnn_forward.2} parent=11 // pred_fallthru
          _
        // Predicated region
        $region33: #{cnn_forward.2} parent=11 // pred_check
          %p243 = pneg %p167
        $region34: #{cnn_forward.2} parent=11 // pred_check_branch
          %245 = sbr.rel (%p243) target = $region36
        $region35: #{cnn_forward.2} parent=11 // pred_region
          _
        $region36: #{cnn_forward.2} parent=11 // pred_fallthru
          _
      $region12: #{cnn_forward.2} parent=5 // pred_fallthru
        _
      %p246 = scmp.lt.s32.totalorder %s15, 2
      // Predicated region
      $region37: #{cnn_forward.2} parent=5 // pred_check
        %p247 = pneg %p246
      $region38: #{cnn_forward.2} parent=5 // pred_check_branch
        %249 = sbr.rel (%p247) target = $region40
      $region39: #{cnn_forward.2} parent=5 // pred_region
        // Predicated region
        $region41: #{cnn_forward.2} parent=39 // pred_check
          %p250 = pneg %p35
        $region42: #{cnn_forward.2} parent=39 // pred_check_branch
          %252 = sbr.rel (%p250) target = $region44
        $region43: #{cnn_forward.2} parent=39 // pred_region
          %p253 = scmp.lt.s32.totalorder %s15, 1
          %s254 = scalar_select %p253, %s15, 1
          %s255 = scalar_lea.vmem %s0, %s254
        $region44: #{cnn_forward.2} parent=39 // pred_fallthru
          _
      $region40: #{cnn_forward.2} parent=5 // pred_fallthru
        _
      %p256 = scmp.le.s32.totalorder 1, %s15
      %p257 = scmp.lt.s32.totalorder %s15, 3
      %p258 = pnand %p256, %p257
      %p259 = pneg %p258
      // Predicated region
      $region45: #{cnn_forward.2} parent=5 // pred_check
        _
      $region46: #{cnn_forward.2} parent=5 // pred_check_branch
        %261 = sbr.rel (%p258) target = $region48
      $region47: #{cnn_forward.2} parent=5 // pred_region
        %s262 = ssub.s32 %s15, 1
        // Predicated region
        $region49: #{cnn_forward.2} parent=47 // pred_check
          %p263 = pneg %p104
        $region50: #{cnn_forward.2} parent=47 // pred_check_branch
          %265 = sbr.rel (%p263) target = $region52
        $region51: #{cnn_forward.2} parent=47 // pred_region
          %266 = dma.done [#allocation5], 2560
        $region52: #{cnn_forward.2} parent=47 // pred_fallthru
          _
        // Predicated region
        $region53: #{cnn_forward.2} parent=47 // pred_check
          %p267 = pneg %p146
        $region54: #{cnn_forward.2} parent=47 // pred_check_branch
          %269 = sbr.rel (%p267) target = $region56
        $region55: #{cnn_forward.2} parent=47 // pred_region
          %270 = dma.done [#allocation7], 5120
        $region56: #{cnn_forward.2} parent=47 // pred_fallthru
          _
        %p271 = scmp.lt.s32.totalorder %s20, 1
        %s272 = scalar_select %p271, %s20, 1
        %s273 = scalar_lea.vmem %s0, %s272
        %p274 = pneg %p41
        %p275 = pneg %p38
        %p276 = pneg %p62
        %p277 = pneg %p59
        %p278 = pneg %p83
        %p279 = pneg %p80
        %p280 = pneg %p104
        %p281 = pneg %p101
        %p282 = pneg %p125
        %p283 = pneg %p122
        %p284 = pneg %p146
        %p285 = pneg %p143
        %p286 = pneg %p167
        %p287 = pneg %p164
        %p288 = pneg %p193
        %p289 = pneg %p190
        %p290 = scmp.lt.s32.totalorder %s20, 7
        %s291 = scalar_select %p290, %s20, 7
        %s292 = smul.addr %s291, 2
        %s293 = smul.addr %s292, 4
        %s294 = scalar_lea.vmem %s7, %s293
        %p295 = scmp.lt.s32.totalorder %s20, 1
        %s296 = scalar_select %p295, %s20, 1
        %s297 = scalar_lea.vmem %s0, %s296
        %p298 = scmp.lt.s32.totalorder %s20, 7
        %s299 = scalar_select %p298, %s20, 7
        %s300 = smul.addr %s299, 2
        %s301 = smul.addr %s300, 4
        %s302 = scalar_lea.vmem %s7, %s301
        %v303 = vld [vmem:[%s297] sm:$0x1]
        %v305 = vlaneseq
        %v306 = vshrl.u32 %v305, 7
        %v307 = vsub.s32 0, %v306
        %v308 = vrot.slane %v303, %v307
        %309 = vrot.lane.b32.xlu0 %v308, 2
        %v310 = vpop.permute.xlu0 %309
        %vm312 = vcmask 15360
        %v313 = vsel %vm312, 0.0, %v310
        %vm314 = vcmask 539648
        %v315 = vsel %vm314, %v313, 0.0
        %v317 = vrot.slane %v315, 7
        %318 = vrot.lane.b32.xlu0 %v317, 127
        %v319 = vpop.permute.xlu0 %318
        %v321 = vrot.slane %v315, 6
        %322 = vrot.lane.b32.xlu0 %v321, 126
        %v323 = vpop.permute.xlu0 %322
        %v325 = vrot.slane %v315, 5
        %326 = vrot.lane.b32.xlu0 %v325, 125
        %v327 = vpop.permute.xlu0 %326
        %v329 = vrot.slane %v315, 4
        %330 = vrot.lane.b32.xlu0 %v329, 124
        %v331 = vpop.permute.xlu0 %330
        %vm333 = vcmask 1040384
        %v334 = vsel %vm333, %v315, %v319
        %vm335 = vcmask 1041408
        %v336 = vsel %vm335, %v334, %v323
        %vm337 = vcmask 1042432
        %v338 = vsel %vm337, %v336, %v327
        %vm339 = vcmask 1043456
        %v340 = vsel %vm339, %v338, %v331
        %v341 = vld [vmem:[%s1] sm:$0xff]
        %v342 = vld [vmem:[%s1 + $0x8] sm:$0xff]
        %v343 = vld [vmem:[%s1 + $0x10] sm:$0xff]
        %v344 = vld [vmem:[%s1 + $0x18] sm:$0xff]
        %v345 = vld [vmem:[%s2] sm:$0xff]
        %v346 = vld [vmem:[%s2 + $0x8] sm:$0xff]
        %v347 = vld [vmem:[%s2 + $0x10] sm:$0xff]
        %v348 = vld [vmem:[%s2 + $0x18] sm:$0xff]
        %350 = vset.pattern.permute.xlu0 0
        %351 = vperm.xlu0 %350, %v345
        %v352 = vpop.permute.xlu0 %351
        %355 = vset.pattern.permute.xlu0 0
        %356 = vperm.xlu0 %355, %v346
        %v357 = vpop.permute.xlu0 %356
        %360 = vset.pattern.permute.xlu0 0
        %361 = vperm.xlu0 %360, %v347
        %v362 = vpop.permute.xlu0 %361
        %365 = vset.pattern.permute.xlu0 0
        %366 = vperm.xlu0 %365, %v348
        %v367 = vpop.permute.xlu0 %366
        %vm369 = vcmask 39936
        %v371 = vsel %vm369, %v341, 0
        %v374 = vsel %vm369, %v342, 0
        %v377 = vsel %vm369, %v343, 0
        %v380 = vsel %vm369, %v344, 0
        %vm382 = vcmask 1044480
        %v384 = vsel %vm382, %v340, 0
        %386 = vmatprep.subr.mxu0 0.0
        %387 = vmatpush1.msra.mxu0 0.0
        %388 = vmatprep.subr.mxu0 0.0
        %389 = vmatpush1.msra.mxu0 0.0
        %390 = vmatprep.subr.mxu0 0.0
        %391 = vmatpush1.msra.mxu0 0.0
        %392 = vmatprep.subr.mxu0 0.0
        %393 = vmatpush1.msra.mxu0 0.0
        %394 = vmatprep.subr.mxu0 0.0
        %395 = vmatpush1.msra.mxu0 0.0
        %396 = vmatprep.subr.mxu0 0.0
        %397 = vmatpush1.msra.mxu0 0.0
        %398 = vmatprep.subr.mxu0 0.0
        %399 = vmatpush1.msra.mxu0 0.0
        %400 = vmatprep.subr.mxu0 0.0
        %401 = vmatpush1.msra.mxu0 0.0
        %402 = vmatprep.subr.mxu0 0.0
        %403 = vmatpush1.msra.mxu0 0.0
        %404 = vmatprep.subr.mxu0 0.0
        %405 = vmatpush1.msra.mxu0 0.0
        %406 = vmatprep.subr.mxu0 0.0
        %407 = vmatpush1.msra.mxu0 0.0
        %408 = vmatprep.subr.mxu0 0.0
        %409 = vmatpush1.msra.mxu0 0.0
        %410 = vmatprep.subr.mxu0 0.0
        %411 = vmatpush1.msra.mxu0 0.0
        %412 = vmatprep.subr.mxu0 0.0
        %413 = vmatpush1.msra.mxu0 0.0
        %414 = vmatprep.subr.mxu0 0.0
        %415 = vmatpush1.msra.mxu0 0.0
        %416 = vmatprep.subr.mxu0 0.0
        %417 = vmatpush1.msra.mxu0 %v384
        %418 = vmatprep.subr.mxu0 0.0
        %419 = vmatpush2.msra.mxu0 0.0
        %420 = vmatprep.subr.mxu0 0.0
        %421 = vmatpush2.msra.mxu0 0.0
        %422 = vmatprep.subr.mxu0 0.0
        %423 = vmatpush2.msra.mxu0 0.0
        %424 = vmatprep.subr.mxu0 0.0
        %425 = vmatpush2.msra.mxu0 0.0
        %426 = vmatprep.subr.mxu0 0.0
        %427 = vmatpush2.msra.mxu0 0.0
        %428 = vmatprep.subr.mxu0 0.0
        %429 = vmatpush2.msra.mxu0 0.0
        %430 = vmatprep.subr.mxu0 0.0
        %431 = vmatpush2.msra.mxu0 0.0
        %432 = vmatprep.subr.mxu0 0.0
        %433 = vmatpush2.msra.mxu0 0.0
        %434 = vmatprep.subr.mxu0 0.0
        %435 = vmatpush2.msra.mxu0 0.0
        %436 = vmatprep.subr.mxu0 0.0
        %437 = vmatpush2.msra.mxu0 0.0
        %438 = vmatprep.subr.mxu0 0.0
        %439 = vmatpush2.msra.mxu0 0.0
        %440 = vmatprep.subr.mxu0 0.0
        %441 = vmatpush2.msra.mxu0 0.0
        %442 = vmatprep.subr.mxu0 0.0
        %443 = vmatpush2.msra.mxu0 0.0
        %444 = vmatprep.subr.mxu0 0.0
        %445 = vmatpush2.msra.mxu0 0.0
        %446 = vmatprep.subr.mxu0 0.0
        %447 = vmatpush2.msra.mxu0 0.0
        %448 = vmatprep.subr.mxu0 0.0
        %449 = vmatpush2.msra.mxu0 0.0
        %450 = vmatprep.mubr.f32.mxu0 0.0
        %451 = vmatmul.mubr.f32.gmra.mxu0 %v371
        %v452 = vpop.f32.mrf.mxu0
        %v453 = vadd.f32 %v352, %v452
        %v454 = vpop.f32.mrf.mxu0
        %455 = vmatprep.mubr.f32.mxu0 0.0
        %456 = vmatmul.mubr.f32.gmra.mxu0 %v374
        %v457 = vpop.f32.mrf.mxu0
        %v458 = vadd.f32 %v357, %v457
        %v459 = vpop.f32.mrf.mxu0
        %460 = vmatprep.mubr.f32.mxu0 0.0
        %461 = vmatmul.mubr.f32.gmra.mxu0 %v377
        %v462 = vpop.f32.mrf.mxu0
        %v463 = vadd.f32 %v362, %v462
        %v464 = vpop.f32.mrf.mxu0
        %465 = vmatprep.mubr.f32.mxu0 0.0
        %466 = vmatmul.mubr.f32.gmra.mxu0 %v380
        %v467 = vpop.f32.mrf.mxu0
        %v468 = vadd.f32 %v367, %v467
        %v469 = vpop.f32.mrf.mxu0
        %470 = vdwg.mxu0
        %v471 = vmax.f32 %v453, 0.0
        %v472 = vmax.f32 %v458, 0.0
        %v473 = vmax.f32 %v463, 0.0
        %v474 = vmax.f32 %v468, 0.0
        %475 = vxpose.xlu0.b32.start [1/16] %v471, 128
        %476 = vxpose.xlu0.b32.cont [2/16] %v472, 128
        %477 = vxpose.xlu0.b32.cont [3/16] %v473, 128
        %478 = vxpose.xlu0.b32.cont [4/16] %v474, 128
        %479 = vxpose.xlu0.b32.cont [5/16] 0.0, 128
        %480 = vxpose.xlu0.b32.cont [6/16] 0.0, 128
        %481 = vxpose.xlu0.b32.cont [7/16] 0.0, 128
        %482 = vxpose.xlu0.b32.cont [8/16] 0.0, 128
        %483 = vxpose.xlu0.b32.cont [9/16] 0.0, 128
        %484 = vxpose.xlu0.b32.cont [10/16] 0.0, 128
        %485 = vxpose.xlu0.b32.cont [11/16] 0.0, 128
        %486 = vxpose.xlu0.b32.cont [12/16] 0.0, 128
        %487 = vxpose.xlu0.b32.cont [13/16] 0.0, 128
        %488 = vxpose.xlu0.b32.cont [14/16] 0.0, 128
        %489 = vxpose.xlu0.b32.cont [15/16] 0.0, 128
        %490 = vxpose.xlu0.b32.end [16/16] 0.0, 128
        %v491 = vpop.trf.xlu0
        %v492 = vpop.trf.xlu0
        %v493 = vpop.trf.xlu0
        %v494 = vpop.trf.xlu0
        %v495 = vpop.trf.xlu0
        %v496 = vpop.trf.xlu0
        %v497 = vpop.trf.xlu0
        %v498 = vpop.trf.xlu0
        %v499 = vpop.trf.xlu0
        %v500 = vpop.trf.xlu0
        %v501 = vpop.trf.xlu0
        %v502 = vpop.trf.xlu0
        %v503 = vpop.trf.xlu0
        %v504 = vpop.trf.xlu0
        %v505 = vpop.trf.xlu0
        %v506 = vpop.trf.xlu0
        %vm507 = vcmask 261120
        %508 = vst.msk [vmem:[#allocation2] sm:$0xff] %vm507, %v491
        %509 = vst.msk [vmem:[#allocation2 + $0x8] sm:$0xff] %vm507, %v492
        %510 = vst.msk [vmem:[#allocation2 + $0x10] sm:$0xff] %vm507, %v493
        %511 = vst.msk [vmem:[#allocation2 + $0x18] sm:$0xff] %vm507, %v494
        %512 = vst.msk [vmem:[#allocation2 + $0x20] sm:$0xff] %vm507, %v495
        %513 = vst.msk [vmem:[#allocation2 + $0x28] sm:$0xff] %vm507, %v496
        %514 = vst.msk [vmem:[#allocation2 + $0x30] sm:$0xff] %vm507, %v497
        %515 = vst.msk [vmem:[#allocation2 + $0x38] sm:$0xff] %vm507, %v498
        %v516 = vld [vmem:[#allocation2] ss:$2 sm:$0xff]
        %s517 = scalar_lea.vmem [#allocation2], 16
        %v518 = vld [vmem:[%s517] ss:$2 sm:$0xff]
        %s519 = scalar_lea.vmem [#allocation2], 32
        %v520 = vld [vmem:[%s519] ss:$2 sm:$0xff]
        %s521 = scalar_lea.vmem [#allocation2], 48
        %v522 = vld [vmem:[%s521] ss:$2 sm:$0xff]
        %s523 = scalar_lea.vmem [#allocation2], 1
        %v524 = vld [vmem:[%s523] ss:$2 sm:$0xff]
        %s525 = scalar_lea.vmem [#allocation2], 17
        %v526 = vld [vmem:[%s525] ss:$2 sm:$0xff]
        %s527 = scalar_lea.vmem [#allocation2], 33
        %v528 = vld [vmem:[%s527] ss:$2 sm:$0xff]
        %s529 = scalar_lea.vmem [#allocation2], 49
        %v530 = vld [vmem:[%s529] ss:$2 sm:$0xff]
        %v531 = vmax.f32 %v516, %v524
        %v532 = vmax.f32 %v518, %v526
        %v533 = vmax.f32 %v520, %v528
        %v534 = vmax.f32 %v522, %v530
        %v539 = vrot.slane %v531, 6
        %v540 = vrot.slane %v532, 6
        %v541 = vsel %vm335, %v539, %v540
        %v542 = vrot.slane %v533, 6
        %v543 = vsel %vm335, %v540, %v542
        %v544 = vrot.slane %v534, 6
        %v545 = vsel %vm335, %v542, %v544
        %v548 = vsel %vm335, 0.0, %v539
        %v549 = vsel %vm335, %v544, 0.0
        %v550 = vld [vmem:[#allocation4] sm:$0xff]
        %v551 = vld [vmem:[#allocation4 + $0x8] sm:$0xff]
        %v552 = vld [vmem:[#allocation4 + $0x10] sm:$0xff]
        %v553 = vld [vmem:[#allocation4 + $0x18] sm:$0xff]
        %s554 = scalar_lea.vmem [#allocation4], 32
        %v555 = vld [vmem:[%s554] sm:$0xff]
        %v556 = vld [vmem:[%s554 + $0x8] sm:$0xff]
        %v557 = vld [vmem:[%s554 + $0x10] sm:$0xff]
        %v558 = vld [vmem:[%s554 + $0x18] sm:$0xff]
        %vm561 = vcmask 1046528
        %v562 = vrot.slane %v548, 1
        %v563 = vrot.slane %v541, 1
        %v564 = vsel %vm561, %v562, %v563
        %v565 = vrot.slane %v543, 1
        %v566 = vsel %vm561, %v563, %v565
        %v567 = vrot.slane %v545, 1
        %v568 = vsel %vm561, %v565, %v567
        %v569 = vrot.slane %v549, 1
        %v570 = vsel %vm561, %v567, %v569
        %v571 = vsel %vm507, %v564, 0
        %v573 = vsel %vm507, %v566, 0
        %v575 = vsel %vm507, %v568, 0
        %v577 = vsel %vm507, %v570, 0
        %579 = vmatprep.subr.mxu0 0.0
        %580 = vmatpush1.msra.mxu0 0.0
        %581 = vmatprep.subr.mxu0 0.0
        %582 = vmatpush1.msra.mxu0 0.0
        %583 = vmatprep.subr.mxu0 0.0
        %584 = vmatpush1.msra.mxu0 0.0
        %585 = vmatprep.subr.mxu0 0.0
        %586 = vmatpush1.msra.mxu0 0.0
        %587 = vmatprep.subr.mxu0 0.0
        %588 = vmatpush1.msra.mxu0 0.0
        %589 = vmatprep.subr.mxu0 0.0
        %590 = vmatpush1.msra.mxu0 0.0
        %591 = vmatprep.subr.mxu0 0.0
        %592 = vmatpush1.msra.mxu0 0.0
        %593 = vmatprep.subr.mxu0 0.0
        %594 = vmatpush1.msra.mxu0 0.0
        %595 = vmatprep.subr.mxu0 0.0
        %596 = vmatpush1.msra.mxu0 0.0
        %597 = vmatprep.subr.mxu0 0.0
        %598 = vmatpush1.msra.mxu0 0.0
        %599 = vmatprep.subr.mxu0 0.0
        %600 = vmatpush1.msra.mxu0 0.0
        %601 = vmatprep.subr.mxu0 0.0
        %602 = vmatpush1.msra.mxu0 0.0
        %603 = vmatprep.subr.mxu0 0.0
        %604 = vmatpush1.msra.mxu0 %v558
        %605 = vmatprep.subr.mxu0 0.0
        %606 = vmatpush1.msra.mxu0 %v557
        %607 = vmatprep.subr.mxu0 0.0
        %608 = vmatpush1.msra.mxu0 %v556
        %609 = vmatprep.subr.mxu0 0.0
        %610 = vmatpush1.msra.mxu0 %v555
        %611 = vmatprep.subr.mxu0 0.0
        %612 = vmatpush2.msra.mxu0 0.0
        %613 = vmatprep.subr.mxu0 0.0
        %614 = vmatpush2.msra.mxu0 0.0
        %615 = vmatprep.subr.mxu0 0.0
        %616 = vmatpush2.msra.mxu0 0.0
        %617 = vmatprep.subr.mxu0 0.0
        %618 = vmatpush2.msra.mxu0 0.0
        %619 = vmatprep.subr.mxu0 0.0
        %620 = vmatpush2.msra.mxu0 0.0
        %621 = vmatprep.subr.mxu0 0.0
        %622 = vmatpush2.msra.mxu0 0.0
        %623 = vmatprep.subr.mxu0 0.0
        %624 = vmatpush2.msra.mxu0 0.0
        %625 = vmatprep.subr.mxu0 0.0
        %626 = vmatpush2.msra.mxu0 0.0
        %627 = vmatprep.subr.mxu0 0.0
        %628 = vmatpush2.msra.mxu0 0.0
        %629 = vmatprep.subr.mxu0 0.0
        %630 = vmatpush2.msra.mxu0 0.0
        %631 = vmatprep.subr.mxu0 0.0
        %632 = vmatpush2.msra.mxu0 0.0
        %633 = vmatprep.subr.mxu0 0.0
        %634 = vmatpush2.msra.mxu0 0.0
        %635 = vmatprep.subr.mxu0 0.0
        %636 = vmatpush2.msra.mxu0 0.0
        %637 = vmatprep.subr.mxu0 0.0
        %638 = vmatpush2.msra.mxu0 0.0
        %639 = vmatprep.subr.mxu0 0.0
        %640 = vmatpush2.msra.mxu0 0.0
        %641 = vmatprep.subr.mxu0 0.0
        %642 = vmatpush2.msra.mxu0 0.0
        %643 = vmatprep.mubr.f32.mxu0 0.0
        %644 = vmatmul.mubr.f32.gmra.mxu0 %v571
        %v645 = vpop.f32.mrf.mxu0
        %v646 = vadd.f32 0.0, %v645
        %v647 = vpop.f32.mrf.mxu0
        %648 = vmatprep.mubr.f32.mxu0 0.0
        %649 = vmatmul.mubr.f32.gmra.mxu0 %v573
        %v650 = vpop.f32.mrf.mxu0
        %v651 = vadd.f32 0.0, %v650
        %v652 = vpop.f32.mrf.mxu0
        %653 = vmatprep.mubr.f32.mxu0 0.0
        %654 = vmatmul.mubr.f32.gmra.mxu0 %v575
        %v655 = vpop.f32.mrf.mxu0
        %v656 = vadd.f32 0.0, %v655
        %v657 = vpop.f32.mrf.mxu0
        %658 = vmatprep.mubr.f32.mxu0 0.0
        %659 = vmatmul.mubr.f32.gmra.mxu0 %v577
        %v660 = vpop.f32.mrf.mxu0
        %v661 = vadd.f32 0.0, %v660
        %v662 = vpop.f32.mrf.mxu0
        %663 = vdwg.mxu0
        %v664 = vsel %vm507, %v548, 0
        %v666 = vsel %vm507, %v541, 0
        %v668 = vsel %vm507, %v543, 0
        %v670 = vsel %vm507, %v545, 0
        %672 = vmatprep.subr.mxu0 0.0
        %673 = vmatpush1.msra.mxu0 0.0
        %674 = vmatprep.subr.mxu0 0.0
        %675 = vmatpush1.msra.mxu0 0.0
        %676 = vmatprep.subr.mxu0 0.0
        %677 = vmatpush1.msra.mxu0 0.0
        %678 = vmatprep.subr.mxu0 0.0
        %679 = vmatpush1.msra.mxu0 0.0
        %680 = vmatprep.subr.mxu0 0.0
        %681 = vmatpush1.msra.mxu0 0.0
        %682 = vmatprep.subr.mxu0 0.0
        %683 = vmatpush1.msra.mxu0 0.0
        %684 = vmatprep.subr.mxu0 0.0
        %685 = vmatpush1.msra.mxu0 0.0
        %686 = vmatprep.subr.mxu0 0.0
        %687 = vmatpush1.msra.mxu0 0.0
        %688 = vmatprep.subr.mxu0 0.0
        %689 = vmatpush1.msra.mxu0 0.0
        %690 = vmatprep.subr.mxu0 0.0
        %691 = vmatpush1.msra.mxu0 0.0
        %692 = vmatprep.subr.mxu0 0.0
        %693 = vmatpush1.msra.mxu0 0.0
        %694 = vmatprep.subr.mxu0 0.0
        %695 = vmatpush1.msra.mxu0 0.0
        %696 = vmatprep.subr.mxu0 0.0
        %697 = vmatpush1.msra.mxu0 %v553
        %698 = vmatprep.subr.mxu0 0.0
        %699 = vmatpush1.msra.mxu0 %v552
        %700 = vmatprep.subr.mxu0 0.0
        %701 = vmatpush1.msra.mxu0 %v551
        %702 = vmatprep.subr.mxu0 0.0
        %703 = vmatpush1.msra.mxu0 %v550
        %704 = vmatprep.subr.mxu0 0.0
        %705 = vmatpush2.msra.mxu0 0.0
        %706 = vmatprep.subr.mxu0 0.0
        %707 = vmatpush2.msra.mxu0 0.0
        %708 = vmatprep.subr.mxu0 0.0
        %709 = vmatpush2.msra.mxu0 0.0
        %710 = vmatprep.subr.mxu0 0.0
        %711 = vmatpush2.msra.mxu0 0.0
        %712 = vmatprep.subr.mxu0 0.0
        %713 = vmatpush2.msra.mxu0 0.0
        %714 = vmatprep.subr.mxu0 0.0
        %715 = vmatpush2.msra.mxu0 0.0
        %716 = vmatprep.subr.mxu0 0.0
        %717 = vmatpush2.msra.mxu0 0.0
        %718 = vmatprep.subr.mxu0 0.0
        %719 = vmatpush2.msra.mxu0 0.0
        %720 = vmatprep.subr.mxu0 0.0
        %721 = vmatpush2.msra.mxu0 0.0
        %722 = vmatprep.subr.mxu0 0.0
        %723 = vmatpush2.msra.mxu0 0.0
        %724 = vmatprep.subr.mxu0 0.0
        %725 = vmatpush2.msra.mxu0 0.0
        %726 = vmatprep.subr.mxu0 0.0
        %727 = vmatpush2.msra.mxu0 0.0
        %728 = vmatprep.subr.mxu0 0.0
        %729 = vmatpush2.msra.mxu0 0.0
        %730 = vmatprep.subr.mxu0 0.0
        %731 = vmatpush2.msra.mxu0 0.0
        %732 = vmatprep.subr.mxu0 0.0
        %733 = vmatpush2.msra.mxu0 0.0
        %734 = vmatprep.subr.mxu0 0.0
        %735 = vmatpush2.msra.mxu0 0.0
        %736 = vmatprep.mubr.f32.mxu0 0.0
        %737 = vmatmul.mubr.f32.gmra.mxu0 %v664
        %v738 = vpop.f32.mrf.mxu0
        %v739 = vadd.f32 %v646, %v738
        %v740 = vpop.f32.mrf.mxu0
        %741 = vmatprep.mubr.f32.mxu0 0.0
        %742 = vmatmul.mubr.f32.gmra.mxu0 %v666
        %v743 = vpop.f32.mrf.mxu0
        %v744 = vadd.f32 %v651, %v743
        %v745 = vpop.f32.mrf.mxu0
        %746 = vmatprep.mubr.f32.mxu0 0.0
        %747 = vmatmul.mubr.f32.gmra.mxu0 %v668
        %v748 = vpop.f32.mrf.mxu0
        %v749 = vadd.f32 %v656, %v748
        %v750 = vpop.f32.mrf.mxu0
        %751 = vmatprep.mubr.f32.mxu0 0.0
        %752 = vmatmul.mubr.f32.gmra.mxu0 %v670
        %v753 = vpop.f32.mrf.mxu0
        %v754 = vadd.f32 %v661, %v753
        %v755 = vpop.f32.mrf.mxu0
        %756 = vdwg.mxu0
        %s757 = scalar_lea.vmem [#allocation4], 64
        %v758 = vld [vmem:[%s757] sm:$0xff]
        %v759 = vld [vmem:[%s757 + $0x8] sm:$0xff]
        %v760 = vld [vmem:[%s757 + $0x10] sm:$0xff]
        %v761 = vld [vmem:[%s757 + $0x18] sm:$0xff]
        %vm762 = vcmask 1045504
        %v763 = vrot.slane %v548, 2
        %v764 = vrot.slane %v541, 2
        %v765 = vsel %vm762, %v763, %v764
        %v766 = vrot.slane %v543, 2
        %v767 = vsel %vm762, %v764, %v766
        %v768 = vrot.slane %v545, 2
        %v769 = vsel %vm762, %v766, %v768
        %v770 = vrot.slane %v549, 2
        %v771 = vsel %vm762, %v768, %v770
        %v772 = vsel %vm507, %v765, 0
        %v774 = vsel %vm507, %v767, 0
        %v776 = vsel %vm507, %v769, 0
        %v778 = vsel %vm507, %v771, 0
        %780 = vmatprep.subr.mxu0 0.0
        %781 = vmatpush1.msra.mxu0 0.0
        %782 = vmatprep.subr.mxu0 0.0
        %783 = vmatpush1.msra.mxu0 0.0
        %784 = vmatprep.subr.mxu0 0.0
        %785 = vmatpush1.msra.mxu0 0.0
        %786 = vmatprep.subr.mxu0 0.0
        %787 = vmatpush1.msra.mxu0 0.0
        %788 = vmatprep.subr.mxu0 0.0
        %789 = vmatpush1.msra.mxu0 0.0
        %790 = vmatprep.subr.mxu0 0.0
        %791 = vmatpush1.msra.mxu0 0.0
        %792 = vmatprep.subr.mxu0 0.0
        %793 = vmatpush1.msra.mxu0 0.0
        %794 = vmatprep.subr.mxu0 0.0
        %795 = vmatpush1.msra.mxu0 0.0
        %796 = vmatprep.subr.mxu0 0.0
        %797 = vmatpush1.msra.mxu0 0.0
        %798 = vmatprep.subr.mxu0 0.0
        %799 = vmatpush1.msra.mxu0 0.0
        %800 = vmatprep.subr.mxu0 0.0
        %801 = vmatpush1.msra.mxu0 0.0
        %802 = vmatprep.subr.mxu0 0.0
        %803 = vmatpush1.msra.mxu0 0.0
        %804 = vmatprep.subr.mxu0 0.0
        %805 = vmatpush1.msra.mxu0 %v761
        %806 = vmatprep.subr.mxu0 0.0
        %807 = vmatpush1.msra.mxu0 %v760
        %808 = vmatprep.subr.mxu0 0.0
        %809 = vmatpush1.msra.mxu0 %v759
        %810 = vmatprep.subr.mxu0 0.0
        %811 = vmatpush1.msra.mxu0 %v758
        %812 = vmatprep.subr.mxu0 0.0
        %813 = vmatpush2.msra.mxu0 0.0
        %814 = vmatprep.subr.mxu0 0.0
        %815 = vmatpush2.msra.mxu0 0.0
        %816 = vmatprep.subr.mxu0 0.0
        %817 = vmatpush2.msra.mxu0 0.0
        %818 = vmatprep.subr.mxu0 0.0
        %819 = vmatpush2.msra.mxu0 0.0
        %820 = vmatprep.subr.mxu0 0.0
        %821 = vmatpush2.msra.mxu0 0.0
        %822 = vmatprep.subr.mxu0 0.0
        %823 = vmatpush2.msra.mxu0 0.0
        %824 = vmatprep.subr.mxu0 0.0
        %825 = vmatpush2.msra.mxu0 0.0
        %826 = vmatprep.subr.mxu0 0.0
        %827 = vmatpush2.msra.mxu0 0.0
        %828 = vmatprep.subr.mxu0 0.0
        %829 = vmatpush2.msra.mxu0 0.0
        %830 = vmatprep.subr.mxu0 0.0
        %831 = vmatpush2.msra.mxu0 0.0
        %832 = vmatprep.subr.mxu0 0.0
        %833 = vmatpush2.msra.mxu0 0.0
        %834 = vmatprep.subr.mxu0 0.0
        %835 = vmatpush2.msra.mxu0 0.0
        %836 = vmatprep.subr.mxu0 0.0
        %837 = vmatpush2.msra.mxu0 0.0
        %838 = vmatprep.subr.mxu0 0.0
        %839 = vmatpush2.msra.mxu0 0.0
        %840 = vmatprep.subr.mxu0 0.0
        %841 = vmatpush2.msra.mxu0 0.0
        %842 = vmatprep.subr.mxu0 0.0
        %843 = vmatpush2.msra.mxu0 0.0
        %844 = vmatprep.mubr.f32.mxu0 0.0
        %845 = vmatmul.mubr.f32.gmra.mxu0 %v772
        %v846 = vpop.f32.mrf.mxu0
        %v847 = vadd.f32 0.0, %v846
        %v848 = vpop.f32.mrf.mxu0
        %849 = vmatprep.mubr.f32.mxu0 0.0
        %850 = vmatmul.mubr.f32.gmra.mxu0 %v774
        %v851 = vpop.f32.mrf.mxu0
        %v852 = vadd.f32 0.0, %v851
        %v853 = vpop.f32.mrf.mxu0
        %854 = vmatprep.mubr.f32.mxu0 0.0
        %855 = vmatmul.mubr.f32.gmra.mxu0 %v776
        %v856 = vpop.f32.mrf.mxu0
        %v857 = vadd.f32 0.0, %v856
        %v858 = vpop.f32.mrf.mxu0
        %859 = vmatprep.mubr.f32.mxu0 0.0
        %860 = vmatmul.mubr.f32.gmra.mxu0 %v778
        %v861 = vpop.f32.mrf.mxu0
        %v862 = vadd.f32 0.0, %v861
        %v863 = vpop.f32.mrf.mxu0
        %864 = vdwg.mxu0
        %v865 = vadd.f32 %v739, %v847
        %v866 = vadd.f32 %v744, %v852
        %v867 = vadd.f32 %v749, %v857
        %v868 = vadd.f32 %v754, %v862
        %s869 = scalar_lea.vmem [#allocation4], 96
        %v870 = vld [vmem:[%s869] sm:$0xff]
        %v871 = vld [vmem:[%s869 + $0x8] sm:$0xff]
        %v872 = vld [vmem:[%s869 + $0x10] sm:$0xff]
        %v873 = vld [vmem:[%s869 + $0x18] sm:$0xff]
        %v874 = vrot.slane %v548, 3
        %v875 = vrot.slane %v541, 3
        %v876 = vsel %vm382, %v874, %v875
        %v877 = vrot.slane %v543, 3
        %v878 = vsel %vm382, %v875, %v877
        %v879 = vrot.slane %v545, 3
        %v880 = vsel %vm382, %v877, %v879
        %v881 = vrot.slane %v549, 3
        %v882 = vsel %vm382, %v879, %v881
        %v883 = vsel %vm507, %v876, 0
        %v885 = vsel %vm507, %v878, 0
        %v887 = vsel %vm507, %v880, 0
        %v889 = vsel %vm507, %v882, 0
        %891 = vmatprep.subr.mxu0 0.0
        %892 = vmatpush1.msra.mxu0 0.0
        %893 = vmatprep.subr.mxu0 0.0
        %894 = vmatpush1.msra.mxu0 0.0
        %895 = vmatprep.subr.mxu0 0.0
        %896 = vmatpush1.msra.mxu0 0.0
        %897 = vmatprep.subr.mxu0 0.0
        %898 = vmatpush1.msra.mxu0 0.0
        %899 = vmatprep.subr.mxu0 0.0
        %900 = vmatpush1.msra.mxu0 0.0
        %901 = vmatprep.subr.mxu0 0.0
        %902 = vmatpush1.msra.mxu0 0.0
        %903 = vmatprep.subr.mxu0 0.0
        %904 = vmatpush1.msra.mxu0 0.0
        %905 = vmatprep.subr.mxu0 0.0
        %906 = vmatpush1.msra.mxu0 0.0
        %907 = vmatprep.subr.mxu0 0.0
        %908 = vmatpush1.msra.mxu0 0.0
        %909 = vmatprep.subr.mxu0 0.0
        %910 = vmatpush1.msra.mxu0 0.0
        %911 = vmatprep.subr.mxu0 0.0
        %912 = vmatpush1.msra.mxu0 0.0
        %913 = vmatprep.subr.mxu0 0.0
        %914 = vmatpush1.msra.mxu0 0.0
        %915 = vmatprep.subr.mxu0 0.0
        %916 = vmatpush1.msra.mxu0 %v873
        %917 = vmatprep.subr.mxu0 0.0
        %918 = vmatpush1.msra.mxu0 %v872
        %919 = vmatprep.subr.mxu0 0.0
        %920 = vmatpush1.msra.mxu0 %v871
        %921 = vmatprep.subr.mxu0 0.0
        %922 = vmatpush1.msra.mxu0 %v870
        %923 = vmatprep.subr.mxu0 0.0
        %924 = vmatpush2.msra.mxu0 0.0
        %925 = vmatprep.subr.mxu0 0.0
        %926 = vmatpush2.msra.mxu0 0.0
        %927 = vmatprep.subr.mxu0 0.0
        %928 = vmatpush2.msra.mxu0 0.0
        %929 = vmatprep.subr.mxu0 0.0
        %930 = vmatpush2.msra.mxu0 0.0
        %931 = vmatprep.subr.mxu0 0.0
        %932 = vmatpush2.msra.mxu0 0.0
        %933 = vmatprep.subr.mxu0 0.0
        %934 = vmatpush2.msra.mxu0 0.0
        %935 = vmatprep.subr.mxu0 0.0
        %936 = vmatpush2.msra.mxu0 0.0
        %937 = vmatprep.subr.mxu0 0.0
        %938 = vmatpush2.msra.mxu0 0.0
        %939 = vmatprep.subr.mxu0 0.0
        %940 = vmatpush2.msra.mxu0 0.0
        %941 = vmatprep.subr.mxu0 0.0
        %942 = vmatpush2.msra.mxu0 0.0
        %943 = vmatprep.subr.mxu0 0.0
        %944 = vmatpush2.msra.mxu0 0.0
        %945 = vmatprep.subr.mxu0 0.0
        %946 = vmatpush2.msra.mxu0 0.0
        %947 = vmatprep.subr.mxu0 0.0
        %948 = vmatpush2.msra.mxu0 0.0
        %949 = vmatprep.subr.mxu0 0.0
        %950 = vmatpush2.msra.mxu0 0.0
        %951 = vmatprep.subr.mxu0 0.0
        %952 = vmatpush2.msra.mxu0 0.0
        %953 = vmatprep.subr.mxu0 0.0
        %954 = vmatpush2.msra.mxu0 0.0
        %955 = vmatprep.mubr.f32.mxu0 0.0
        %956 = vmatmul.mubr.f32.gmra.mxu0 %v883
        %v957 = vpop.f32.mrf.mxu0
        %v958 = vadd.f32 0.0, %v957
        %v959 = vpop.f32.mrf.mxu0
        %960 = vmatprep.mubr.f32.mxu0 0.0
        %961 = vmatmul.mubr.f32.gmra.mxu0 %v885
        %v962 = vpop.f32.mrf.mxu0
        %v963 = vadd.f32 0.0, %v962
        %v964 = vpop.f32.mrf.mxu0
        %965 = vmatprep.mubr.f32.mxu0 0.0
        %966 = vmatmul.mubr.f32.gmra.mxu0 %v887
        %v967 = vpop.f32.mrf.mxu0
        %v968 = vadd.f32 0.0, %v967
        %v969 = vpop.f32.mrf.mxu0
        %970 = vmatprep.mubr.f32.mxu0 0.0
        %971 = vmatmul.mubr.f32.gmra.mxu0 %v889
        %v972 = vpop.f32.mrf.mxu0
        %v973 = vadd.f32 0.0, %v972
        %v974 = vpop.f32.mrf.mxu0
        %975 = vdwg.mxu0
        %v976 = vadd.f32 %v865, %v958
        %v977 = vadd.f32 %v866, %v963
        %v978 = vadd.f32 %v867, %v968
        %v979 = vadd.f32 %v868, %v973
        %s980 = scalar_lea.vmem [#allocation4], 128
        %v981 = vld [vmem:[%s980] sm:$0xff]
        %v982 = vld [vmem:[%s980 + $0x8] sm:$0xff]
        %v983 = vld [vmem:[%s980 + $0x10] sm:$0xff]
        %v984 = vld [vmem:[%s980 + $0x18] sm:$0xff]
        %v985 = vrot.slane %v548, 4
        %v986 = vrot.slane %v541, 4
        %v987 = vsel %vm339, %v985, %v986
        %v988 = vrot.slane %v543, 4
        %v989 = vsel %vm339, %v986, %v988
        %v990 = vrot.slane %v545, 4
        %v991 = vsel %vm339, %v988, %v990
        %v992 = vrot.slane %v549, 4
        %v993 = vsel %vm339, %v990, %v992
        %v994 = vsel %vm507, %v987, 0
        %v996 = vsel %vm507, %v989, 0
        %v998 = vsel %vm507, %v991, 0
        %v1000 = vsel %vm507, %v993, 0
        %1002 = vmatprep.subr.mxu0 0.0
        %1003 = vmatpush1.msra.mxu0 0.0
        %1004 = vmatprep.subr.mxu0 0.0
        %1005 = vmatpush1.msra.mxu0 0.0
        %1006 = vmatprep.subr.mxu0 0.0
        %1007 = vmatpush1.msra.mxu0 0.0
        %1008 = vmatprep.subr.mxu0 0.0
        %1009 = vmatpush1.msra.mxu0 0.0
        %1010 = vmatprep.subr.mxu0 0.0
        %1011 = vmatpush1.msra.mxu0 0.0
        %1012 = vmatprep.subr.mxu0 0.0
        %1013 = vmatpush1.msra.mxu0 0.0
        %1014 = vmatprep.subr.mxu0 0.0
        %1015 = vmatpush1.msra.mxu0 0.0
        %1016 = vmatprep.subr.mxu0 0.0
        %1017 = vmatpush1.msra.mxu0 0.0
        %1018 = vmatprep.subr.mxu0 0.0
        %1019 = vmatpush1.msra.mxu0 0.0
        %1020 = vmatprep.subr.mxu0 0.0
        %1021 = vmatpush1.msra.mxu0 0.0
        %1022 = vmatprep.subr.mxu0 0.0
        %1023 = vmatpush1.msra.mxu0 0.0
        %1024 = vmatprep.subr.mxu0 0.0
        %1025 = vmatpush1.msra.mxu0 0.0
        %1026 = vmatprep.subr.mxu0 0.0
        %1027 = vmatpush1.msra.mxu0 %v984
        %1028 = vmatprep.subr.mxu0 0.0
        %1029 = vmatpush1.msra.mxu0 %v983
        %1030 = vmatprep.subr.mxu0 0.0
        %1031 = vmatpush1.msra.mxu0 %v982
        %1032 = vmatprep.subr.mxu0 0.0
        %1033 = vmatpush1.msra.mxu0 %v981
        %1034 = vmatprep.subr.mxu0 0.0
        %1035 = vmatpush2.msra.mxu0 0.0
        %1036 = vmatprep.subr.mxu0 0.0
        %1037 = vmatpush2.msra.mxu0 0.0
        %1038 = vmatprep.subr.mxu0 0.0
        %1039 = vmatpush2.msra.mxu0 0.0
        %1040 = vmatprep.subr.mxu0 0.0
        %1041 = vmatpush2.msra.mxu0 0.0
        %1042 = vmatprep.subr.mxu0 0.0
        %1043 = vmatpush2.msra.mxu0 0.0
        %1044 = vmatprep.subr.mxu0 0.0
        %1045 = vmatpush2.msra.mxu0 0.0
        %1046 = vmatprep.subr.mxu0 0.0
        %1047 = vmatpush2.msra.mxu0 0.0
        %1048 = vmatprep.subr.mxu0 0.0
        %1049 = vmatpush2.msra.mxu0 0.0
        %1050 = vmatprep.subr.mxu0 0.0
        %1051 = vmatpush2.msra.mxu0 0.0
        %1052 = vmatprep.subr.mxu0 0.0
        %1053 = vmatpush2.msra.mxu0 0.0
        %1054 = vmatprep.subr.mxu0 0.0
        %1055 = vmatpush2.msra.mxu0 0.0
        %1056 = vmatprep.subr.mxu0 0.0
        %1057 = vmatpush2.msra.mxu0 0.0
        %1058 = vmatprep.subr.mxu0 0.0
        %1059 = vmatpush2.msra.mxu0 0.0
        %1060 = vmatprep.subr.mxu0 0.0
        %1061 = vmatpush2.msra.mxu0 0.0
        %1062 = vmatprep.subr.mxu0 0.0
        %1063 = vmatpush2.msra.mxu0 0.0
        %1064 = vmatprep.subr.mxu0 0.0
        %1065 = vmatpush2.msra.mxu0 0.0
        %1066 = vmatprep.mubr.f32.mxu0 0.0
        %1067 = vmatmul.mubr.f32.gmra.mxu0 %v994
        %v1068 = vpop.f32.mrf.mxu0
        %v1069 = vadd.f32 0.0, %v1068
        %v1070 = vpop.f32.mrf.mxu0
        %1071 = vmatprep.mubr.f32.mxu0 0.0
        %1072 = vmatmul.mubr.f32.gmra.mxu0 %v996
        %v1073 = vpop.f32.mrf.mxu0
        %v1074 = vadd.f32 0.0, %v1073
        %v1075 = vpop.f32.mrf.mxu0
        %1076 = vmatprep.mubr.f32.mxu0 0.0
        %1077 = vmatmul.mubr.f32.gmra.mxu0 %v998
        %v1078 = vpop.f32.mrf.mxu0
        %v1079 = vadd.f32 0.0, %v1078
        %v1080 = vpop.f32.mrf.mxu0
        %1081 = vmatprep.mubr.f32.mxu0 0.0
        %1082 = vmatmul.mubr.f32.gmra.mxu0 %v1000
        %v1083 = vpop.f32.mrf.mxu0
        %v1084 = vadd.f32 0.0, %v1083
        %v1085 = vpop.f32.mrf.mxu0
        %1086 = vdwg.mxu0
        %v1087 = vadd.f32 %v976, %v1069
        %v1088 = vadd.f32 %v977, %v1074
        %v1089 = vadd.f32 %v978, %v1079
        %v1090 = vadd.f32 %v979, %v1084
        %v1091 = vld [vmem:[%s4] sm:$0x1]
        %v1093 = vlaneseq
        %v1094 = vshrl.u32 %v1093, 7
        %v1095 = vsub.s32 0, %v1094
        %v1096 = vrot.slane %v1091, %v1095
        %v1098 = vadd.f32 %v1087, %v1096
        %v1099 = vadd.f32 %v1088, %v1096
        %v1100 = vadd.f32 %v1089, %v1096
        %v1101 = vadd.f32 %v1090, %v1096
        %v1102 = vmax.f32 %v1098, 0.0
        %v1103 = vmax.f32 %v1099, 0.0
        %v1104 = vmax.f32 %v1100, 0.0
        %v1105 = vmax.f32 %v1101, 0.0
        %vm1106 = vcmask 523264
        %1107 = vst.msk [vmem:[#allocation3] sm:$0xff] %vm1106, %v1102
        %1108 = vst.msk [vmem:[#allocation3 + $0x8] sm:$0xff] %vm1106, %v1103
        %1109 = vst.msk [vmem:[#allocation3 + $0x10] sm:$0xff] %vm1106, %v1104
        %1110 = vst.msk [vmem:[#allocation3 + $0x18] sm:$0xff] %vm1106, %v1105
        %v1111 = vld [vmem:[#allocation3] ss:$2 sm:$0xff]
        %s1112 = scalar_lea.vmem [#allocation3], 16
        %v1113 = vld [vmem:[%s1112] ss:$2 sm:$0xff]
        %s1114 = scalar_lea.vmem [#allocation3], 1
        %v1115 = vld [vmem:[%s1114] ss:$2 sm:$0xff]
        %s1116 = scalar_lea.vmem [#allocation3], 17
        %v1117 = vld [vmem:[%s1116] ss:$2 sm:$0xff]
        %v1118 = vmax.f32 %v1111, %v1115
        %v1119 = vmax.f32 %v1113, %v1117
        %v1122 = vrot.slane %v1118, 6
        %v1123 = vrot.slane %v1119, 6
        %v1124 = vsel %vm335, %v1122, %v1123
        %v1127 = vsel %vm335, 0.0, %v1122
        %v1128 = vsel %vm335, %v1123, 0.0
        %v1129 = vld [vmem:[#allocation6] sm:$0xff]
        %v1130 = vld [vmem:[#allocation6 + $0x8] sm:$0xff]
        %v1131 = vld [vmem:[#allocation6 + $0x10] sm:$0xff]
        %v1132 = vld [vmem:[#allocation6 + $0x18] sm:$0xff]
        %v1133 = vld [vmem:[#allocation6 + $0x20] sm:$0xff]
        %v1134 = vld [vmem:[#allocation6 + $0x28] sm:$0xff]
        %v1135 = vld [vmem:[#allocation6 + $0x30] sm:$0xff]
        %v1136 = vld [vmem:[#allocation6 + $0x38] sm:$0xff]
        %s1137 = scalar_lea.vmem [#allocation6], 64
        %v1138 = vld [vmem:[%s1137] sm:$0xff]
        %v1139 = vld [vmem:[%s1137 + $0x8] sm:$0xff]
        %v1140 = vld [vmem:[%s1137 + $0x10] sm:$0xff]
        %v1141 = vld [vmem:[%s1137 + $0x18] sm:$0xff]
        %v1142 = vld [vmem:[%s1137 + $0x20] sm:$0xff]
        %v1143 = vld [vmem:[%s1137 + $0x28] sm:$0xff]
        %v1144 = vld [vmem:[%s1137 + $0x30] sm:$0xff]
        %v1145 = vld [vmem:[%s1137 + $0x38] sm:$0xff]
        %v1148 = vrot.slane %v1127, 1
        %v1149 = vrot.slane %v1124, 1
        %v1150 = vsel %vm561, %v1148, %v1149
        %v1151 = vrot.slane %v1128, 1
        %v1152 = vsel %vm561, %v1149, %v1151
        %v1153 = vsel %vm1106, %v1150, 0
        %v1155 = vsel %vm1106, %v1152, 0
        %1157 = vmatprep.subr.mxu0 0.0
        %1158 = vmatpush1.msra.mxu0 0.0
        %1159 = vmatprep.subr.mxu0 0.0
        %1160 = vmatpush1.msra.mxu0 0.0
        %1161 = vmatprep.subr.mxu0 0.0
        %1162 = vmatpush1.msra.mxu0 0.0
        %1163 = vmatprep.subr.mxu0 0.0
        %1164 = vmatpush1.msra.mxu0 0.0
        %1165 = vmatprep.subr.mxu0 0.0
        %1166 = vmatpush1.msra.mxu0 0.0
        %1167 = vmatprep.subr.mxu0 0.0
        %1168 = vmatpush1.msra.mxu0 0.0
        %1169 = vmatprep.subr.mxu0 0.0
        %1170 = vmatpush1.msra.mxu0 0.0
        %1171 = vmatprep.subr.mxu0 0.0
        %1172 = vmatpush1.msra.mxu0 0.0
        %1173 = vmatprep.subr.mxu0 0.0
        %1174 = vmatpush1.msra.mxu0 %v1145
        %1175 = vmatprep.subr.mxu0 0.0
        %1176 = vmatpush1.msra.mxu0 %v1144
        %1177 = vmatprep.subr.mxu0 0.0
        %1178 = vmatpush1.msra.mxu0 %v1143
        %1179 = vmatprep.subr.mxu0 0.0
        %1180 = vmatpush1.msra.mxu0 %v1142
        %1181 = vmatprep.subr.mxu0 0.0
        %1182 = vmatpush1.msra.mxu0 %v1141
        %1183 = vmatprep.subr.mxu0 0.0
        %1184 = vmatpush1.msra.mxu0 %v1140
        %1185 = vmatprep.subr.mxu0 0.0
        %1186 = vmatpush1.msra.mxu0 %v1139
        %1187 = vmatprep.subr.mxu0 0.0
        %1188 = vmatpush1.msra.mxu0 %v1138
        %1189 = vmatprep.subr.mxu0 0.0
        %1190 = vmatpush2.msra.mxu0 0.0
        %1191 = vmatprep.subr.mxu0 0.0
        %1192 = vmatpush2.msra.mxu0 0.0
        %1193 = vmatprep.subr.mxu0 0.0
        %1194 = vmatpush2.msra.mxu0 0.0
        %1195 = vmatprep.subr.mxu0 0.0
        %1196 = vmatpush2.msra.mxu0 0.0
        %1197 = vmatprep.subr.mxu0 0.0
        %1198 = vmatpush2.msra.mxu0 0.0
        %1199 = vmatprep.subr.mxu0 0.0
        %1200 = vmatpush2.msra.mxu0 0.0
        %1201 = vmatprep.subr.mxu0 0.0
        %1202 = vmatpush2.msra.mxu0 0.0
        %1203 = vmatprep.subr.mxu0 0.0
        %1204 = vmatpush2.msra.mxu0 0.0
        %1205 = vmatprep.subr.mxu0 0.0
        %1206 = vmatpush2.msra.mxu0 0.0
        %1207 = vmatprep.subr.mxu0 0.0
        %1208 = vmatpush2.msra.mxu0 0.0
        %1209 = vmatprep.subr.mxu0 0.0
        %1210 = vmatpush2.msra.mxu0 0.0
        %1211 = vmatprep.subr.mxu0 0.0
        %1212 = vmatpush2.msra.mxu0 0.0
        %1213 = vmatprep.subr.mxu0 0.0
        %1214 = vmatpush2.msra.mxu0 0.0
        %1215 = vmatprep.subr.mxu0 0.0
        %1216 = vmatpush2.msra.mxu0 0.0
        %1217 = vmatprep.subr.mxu0 0.0
        %1218 = vmatpush2.msra.mxu0 0.0
        %1219 = vmatprep.subr.mxu0 0.0
        %1220 = vmatpush2.msra.mxu0 0.0
        %1221 = vmatprep.mubr.f32.mxu0 0.0
        %1222 = vmatmul.mubr.f32.gmra.mxu0 %v1153
        %v1223 = vpop.f32.mrf.mxu0
        %v1224 = vadd.f32 0.0, %v1223
        %v1225 = vpop.f32.mrf.mxu0
        %1226 = vmatprep.mubr.f32.mxu0 0.0
        %1227 = vmatmul.mubr.f32.gmra.mxu0 %v1155
        %v1228 = vpop.f32.mrf.mxu0
        %v1229 = vadd.f32 0.0, %v1228
        %v1230 = vpop.f32.mrf.mxu0
        %1231 = vdwg.mxu0
        %v1232 = vsel %vm1106, %v1127, 0
        %v1234 = vsel %vm1106, %v1124, 0
        %1236 = vmatprep.subr.mxu0 0.0
        %1237 = vmatpush1.msra.mxu0 0.0
        %1238 = vmatprep.subr.mxu0 0.0
        %1239 = vmatpush1.msra.mxu0 0.0
        %1240 = vmatprep.subr.mxu0 0.0
        %1241 = vmatpush1.msra.mxu0 0.0
        %1242 = vmatprep.subr.mxu0 0.0
        %1243 = vmatpush1.msra.mxu0 0.0
        %1244 = vmatprep.subr.mxu0 0.0
        %1245 = vmatpush1.msra.mxu0 0.0
        %1246 = vmatprep.subr.mxu0 0.0
        %1247 = vmatpush1.msra.mxu0 0.0
        %1248 = vmatprep.subr.mxu0 0.0
        %1249 = vmatpush1.msra.mxu0 0.0
        %1250 = vmatprep.subr.mxu0 0.0
        %1251 = vmatpush1.msra.mxu0 0.0
        %1252 = vmatprep.subr.mxu0 0.0
        %1253 = vmatpush1.msra.mxu0 %v1136
        %1254 = vmatprep.subr.mxu0 0.0
        %1255 = vmatpush1.msra.mxu0 %v1135
        %1256 = vmatprep.subr.mxu0 0.0
        %1257 = vmatpush1.msra.mxu0 %v1134
        %1258 = vmatprep.subr.mxu0 0.0
        %1259 = vmatpush1.msra.mxu0 %v1133
        %1260 = vmatprep.subr.mxu0 0.0
        %1261 = vmatpush1.msra.mxu0 %v1132
        %1262 = vmatprep.subr.mxu0 0.0
        %1263 = vmatpush1.msra.mxu0 %v1131
        %1264 = vmatprep.subr.mxu0 0.0
        %1265 = vmatpush1.msra.mxu0 %v1130
        %1266 = vmatprep.subr.mxu0 0.0
        %1267 = vmatpush1.msra.mxu0 %v1129
        %1268 = vmatprep.subr.mxu0 0.0
        %1269 = vmatpush2.msra.mxu0 0.0
        %1270 = vmatprep.subr.mxu0 0.0
        %1271 = vmatpush2.msra.mxu0 0.0
        %1272 = vmatprep.subr.mxu0 0.0
        %1273 = vmatpush2.msra.mxu0 0.0
        %1274 = vmatprep.subr.mxu0 0.0
        %1275 = vmatpush2.msra.mxu0 0.0
        %1276 = vmatprep.subr.mxu0 0.0
        %1277 = vmatpush2.msra.mxu0 0.0
        %1278 = vmatprep.subr.mxu0 0.0
        %1279 = vmatpush2.msra.mxu0 0.0
        %1280 = vmatprep.subr.mxu0 0.0
        %1281 = vmatpush2.msra.mxu0 0.0
        %1282 = vmatprep.subr.mxu0 0.0
        %1283 = vmatpush2.msra.mxu0 0.0
        %1284 = vmatprep.subr.mxu0 0.0
        %1285 = vmatpush2.msra.mxu0 0.0
        %1286 = vmatprep.subr.mxu0 0.0
        %1287 = vmatpush2.msra.mxu0 0.0
        %1288 = vmatprep.subr.mxu0 0.0
        %1289 = vmatpush2.msra.mxu0 0.0
        %1290 = vmatprep.subr.mxu0 0.0
        %1291 = vmatpush2.msra.mxu0 0.0
        %1292 = vmatprep.subr.mxu0 0.0
        %1293 = vmatpush2.msra.mxu0 0.0
        %1294 = vmatprep.subr.mxu0 0.0
        %1295 = vmatpush2.msra.mxu0 0.0
        %1296 = vmatprep.subr.mxu0 0.0
        %1297 = vmatpush2.msra.mxu0 0.0
        %1298 = vmatprep.subr.mxu0 0.0
        %1299 = vmatpush2.msra.mxu0 0.0
        %1300 = vmatprep.mubr.f32.mxu0 0.0
        %1301 = vmatmul.mubr.f32.gmra.mxu0 %v1232
        %v1302 = vpop.f32.mrf.mxu0
        %v1303 = vadd.f32 %v1224, %v1302
        %v1304 = vpop.f32.mrf.mxu0
        %1305 = vmatprep.mubr.f32.mxu0 0.0
        %1306 = vmatmul.mubr.f32.gmra.mxu0 %v1234
        %v1307 = vpop.f32.mrf.mxu0
        %v1308 = vadd.f32 %v1229, %v1307
        %v1309 = vpop.f32.mrf.mxu0
        %1310 = vdwg.mxu0
        %s1311 = scalar_lea.vmem [#allocation6], 128
        %v1312 = vld [vmem:[%s1311] sm:$0xff]
        %v1313 = vld [vmem:[%s1311 + $0x8] sm:$0xff]
        %v1314 = vld [vmem:[%s1311 + $0x10] sm:$0xff]
        %v1315 = vld [vmem:[%s1311 + $0x18] sm:$0xff]
        %v1316 = vld [vmem:[%s1311 + $0x20] sm:$0xff]
        %v1317 = vld [vmem:[%s1311 + $0x28] sm:$0xff]
        %v1318 = vld [vmem:[%s1311 + $0x30] sm:$0xff]
        %v1319 = vld [vmem:[%s1311 + $0x38] sm:$0xff]
        %v1320 = vrot.slane %v1127, 2
        %v1321 = vrot.slane %v1124, 2
        %v1322 = vsel %vm762, %v1320, %v1321
        %v1323 = vrot.slane %v1128, 2
        %v1324 = vsel %vm762, %v1321, %v1323
        %v1325 = vsel %vm1106, %v1322, 0
        %v1327 = vsel %vm1106, %v1324, 0
        %1329 = vmatprep.subr.mxu0 0.0
        %1330 = vmatpush1.msra.mxu0 0.0
        %1331 = vmatprep.subr.mxu0 0.0
        %1332 = vmatpush1.msra.mxu0 0.0
        %1333 = vmatprep.subr.mxu0 0.0
        %1334 = vmatpush1.msra.mxu0 0.0
        %1335 = vmatprep.subr.mxu0 0.0
        %1336 = vmatpush1.msra.mxu0 0.0
        %1337 = vmatprep.subr.mxu0 0.0
        %1338 = vmatpush1.msra.mxu0 0.0
        %1339 = vmatprep.subr.mxu0 0.0
        %1340 = vmatpush1.msra.mxu0 0.0
        %1341 = vmatprep.subr.mxu0 0.0
        %1342 = vmatpush1.msra.mxu0 0.0
        %1343 = vmatprep.subr.mxu0 0.0
        %1344 = vmatpush1.msra.mxu0 0.0
        %1345 = vmatprep.subr.mxu0 0.0
        %1346 = vmatpush1.msra.mxu0 %v1319
        %1347 = vmatprep.subr.mxu0 0.0
        %1348 = vmatpush1.msra.mxu0 %v1318
        %1349 = vmatprep.subr.mxu0 0.0
        %1350 = vmatpush1.msra.mxu0 %v1317
        %1351 = vmatprep.subr.mxu0 0.0
        %1352 = vmatpush1.msra.mxu0 %v1316
        %1353 = vmatprep.subr.mxu0 0.0
        %1354 = vmatpush1.msra.mxu0 %v1315
        %1355 = vmatprep.subr.mxu0 0.0
        %1356 = vmatpush1.msra.mxu0 %v1314
        %1357 = vmatprep.subr.mxu0 0.0
        %1358 = vmatpush1.msra.mxu0 %v1313
        %1359 = vmatprep.subr.mxu0 0.0
        %1360 = vmatpush1.msra.mxu0 %v1312
        %1361 = vmatprep.subr.mxu0 0.0
        %1362 = vmatpush2.msra.mxu0 0.0
        %1363 = vmatprep.subr.mxu0 0.0
        %1364 = vmatpush2.msra.mxu0 0.0
        %1365 = vmatprep.subr.mxu0 0.0
        %1366 = vmatpush2.msra.mxu0 0.0
        %1367 = vmatprep.subr.mxu0 0.0
        %1368 = vmatpush2.msra.mxu0 0.0
        %1369 = vmatprep.subr.mxu0 0.0
        %1370 = vmatpush2.msra.mxu0 0.0
        %1371 = vmatprep.subr.mxu0 0.0
        %1372 = vmatpush2.msra.mxu0 0.0
        %1373 = vmatprep.subr.mxu0 0.0
        %1374 = vmatpush2.msra.mxu0 0.0
        %1375 = vmatprep.subr.mxu0 0.0
        %1376 = vmatpush2.msra.mxu0 0.0
        %1377 = vmatprep.subr.mxu0 0.0
        %1378 = vmatpush2.msra.mxu0 0.0
        %1379 = vmatprep.subr.mxu0 0.0
        %1380 = vmatpush2.msra.mxu0 0.0
        %1381 = vmatprep.subr.mxu0 0.0
        %1382 = vmatpush2.msra.mxu0 0.0
        %1383 = vmatprep.subr.mxu0 0.0
        %1384 = vmatpush2.msra.mxu0 0.0
        %1385 = vmatprep.subr.mxu0 0.0
        %1386 = vmatpush2.msra.mxu0 0.0
        %1387 = vmatprep.subr.mxu0 0.0
        %1388 = vmatpush2.msra.mxu0 0.0
        %1389 = vmatprep.subr.mxu0 0.0
        %1390 = vmatpush2.msra.mxu0 0.0
        %1391 = vmatprep.subr.mxu0 0.0
        %1392 = vmatpush2.msra.mxu0 0.0
        %1393 = vmatprep.mubr.f32.mxu0 0.0
        %1394 = vmatmul.mubr.f32.gmra.mxu0 %v1325
        %v1395 = vpop.f32.mrf.mxu0
        %v1396 = vadd.f32 0.0, %v1395
        %v1397 = vpop.f32.mrf.mxu0
        %1398 = vmatprep.mubr.f32.mxu0 0.0
        %1399 = vmatmul.mubr.f32.gmra.mxu0 %v1327
        %v1400 = vpop.f32.mrf.mxu0
        %v1401 = vadd.f32 0.0, %v1400
        %v1402 = vpop.f32.mrf.mxu0
        %1403 = vdwg.mxu0
        %v1404 = vadd.f32 %v1303, %v1396
        %v1405 = vadd.f32 %v1308, %v1401
        %s1406 = scalar_lea.vmem [#allocation6], 192
        %v1407 = vld [vmem:[%s1406] sm:$0xff]
        %v1408 = vld [vmem:[%s1406 + $0x8] sm:$0xff]
        %v1409 = vld [vmem:[%s1406 + $0x10] sm:$0xff]
        %v1410 = vld [vmem:[%s1406 + $0x18] sm:$0xff]
        %v1411 = vld [vmem:[%s1406 + $0x20] sm:$0xff]
        %v1412 = vld [vmem:[%s1406 + $0x28] sm:$0xff]
        %v1413 = vld [vmem:[%s1406 + $0x30] sm:$0xff]
        %v1414 = vld [vmem:[%s1406 + $0x38] sm:$0xff]
        %v1415 = vrot.slane %v1127, 3
        %v1416 = vrot.slane %v1124, 3
        %v1417 = vsel %vm382, %v1415, %v1416
        %v1418 = vrot.slane %v1128, 3
        %v1419 = vsel %vm382, %v1416, %v1418
        %v1420 = vsel %vm1106, %v1417, 0
        %v1422 = vsel %vm1106, %v1419, 0
        %1424 = vmatprep.subr.mxu0 0.0
        %1425 = vmatpush1.msra.mxu0 0.0
        %1426 = vmatprep.subr.mxu0 0.0
        %1427 = vmatpush1.msra.mxu0 0.0
        %1428 = vmatprep.subr.mxu0 0.0
        %1429 = vmatpush1.msra.mxu0 0.0
        %1430 = vmatprep.subr.mxu0 0.0
        %1431 = vmatpush1.msra.mxu0 0.0
        %1432 = vmatprep.subr.mxu0 0.0
        %1433 = vmatpush1.msra.mxu0 0.0
        %1434 = vmatprep.subr.mxu0 0.0
        %1435 = vmatpush1.msra.mxu0 0.0
        %1436 = vmatprep.subr.mxu0 0.0
        %1437 = vmatpush1.msra.mxu0 0.0
        %1438 = vmatprep.subr.mxu0 0.0
        %1439 = vmatpush1.msra.mxu0 0.0
        %1440 = vmatprep.subr.mxu0 0.0
        %1441 = vmatpush1.msra.mxu0 %v1414
        %1442 = vmatprep.subr.mxu0 0.0
        %1443 = vmatpush1.msra.mxu0 %v1413
        %1444 = vmatprep.subr.mxu0 0.0
        %1445 = vmatpush1.msra.mxu0 %v1412
        %1446 = vmatprep.subr.mxu0 0.0
        %1447 = vmatpush1.msra.mxu0 %v1411
        %1448 = vmatprep.subr.mxu0 0.0
        %1449 = vmatpush1.msra.mxu0 %v1410
        %1450 = vmatprep.subr.mxu0 0.0
        %1451 = vmatpush1.msra.mxu0 %v1409
        %1452 = vmatprep.subr.mxu0 0.0
        %1453 = vmatpush1.msra.mxu0 %v1408
        %1454 = vmatprep.subr.mxu0 0.0
        %1455 = vmatpush1.msra.mxu0 %v1407
        %1456 = vmatprep.subr.mxu0 0.0
        %1457 = vmatpush2.msra.mxu0 0.0
        %1458 = vmatprep.subr.mxu0 0.0
        %1459 = vmatpush2.msra.mxu0 0.0
        %1460 = vmatprep.subr.mxu0 0.0
        %1461 = vmatpush2.msra.mxu0 0.0
        %1462 = vmatprep.subr.mxu0 0.0
        %1463 = vmatpush2.msra.mxu0 0.0
        %1464 = vmatprep.subr.mxu0 0.0
        %1465 = vmatpush2.msra.mxu0 0.0
        %1466 = vmatprep.subr.mxu0 0.0
        %1467 = vmatpush2.msra.mxu0 0.0
        %1468 = vmatprep.subr.mxu0 0.0
        %1469 = vmatpush2.msra.mxu0 0.0
        %1470 = vmatprep.subr.mxu0 0.0
        %1471 = vmatpush2.msra.mxu0 0.0
        %1472 = vmatprep.subr.mxu0 0.0
        %1473 = vmatpush2.msra.mxu0 0.0
        %1474 = vmatprep.subr.mxu0 0.0
        %1475 = vmatpush2.msra.mxu0 0.0
        %1476 = vmatprep.subr.mxu0 0.0
        %1477 = vmatpush2.msra.mxu0 0.0
        %1478 = vmatprep.subr.mxu0 0.0
        %1479 = vmatpush2.msra.mxu0 0.0
        %1480 = vmatprep.subr.mxu0 0.0
        %1481 = vmatpush2.msra.mxu0 0.0
        %1482 = vmatprep.subr.mxu0 0.0
        %1483 = vmatpush2.msra.mxu0 0.0
        %1484 = vmatprep.subr.mxu0 0.0
        %1485 = vmatpush2.msra.mxu0 0.0
        %1486 = vmatprep.subr.mxu0 0.0
        %1487 = vmatpush2.msra.mxu0 0.0
        %1488 = vmatprep.mubr.f32.mxu0 0.0
        %1489 = vmatmul.mubr.f32.gmra.mxu0 %v1420
        %v1490 = vpop.f32.mrf.mxu0
        %v1491 = vadd.f32 0.0, %v1490
        %v1492 = vpop.f32.mrf.mxu0
        %1493 = vmatprep.mubr.f32.mxu0 0.0
        %1494 = vmatmul.mubr.f32.gmra.mxu0 %v1422
        %v1495 = vpop.f32.mrf.mxu0
        %v1496 = vadd.f32 0.0, %v1495
        %v1497 = vpop.f32.mrf.mxu0
        %1498 = vdwg.mxu0
        %v1499 = vadd.f32 %v1404, %v1491
        %v1500 = vadd.f32 %v1405, %v1496
        %s1501 = scalar_lea.vmem [#allocation6], 256
        %v1502 = vld [vmem:[%s1501] sm:$0xff]
        %v1503 = vld [vmem:[%s1501 + $0x8] sm:$0xff]
        %v1504 = vld [vmem:[%s1501 + $0x10] sm:$0xff]
        %v1505 = vld [vmem:[%s1501 + $0x18] sm:$0xff]
        %v1506 = vld [vmem:[%s1501 + $0x20] sm:$0xff]
        %v1507 = vld [vmem:[%s1501 + $0x28] sm:$0xff]
        %v1508 = vld [vmem:[%s1501 + $0x30] sm:$0xff]
        %v1509 = vld [vmem:[%s1501 + $0x38] sm:$0xff]
        %v1510 = vrot.slane %v1127, 4
        %v1511 = vrot.slane %v1124, 4
        %v1512 = vsel %vm339, %v1510, %v1511
        %v1513 = vrot.slane %v1128, 4
        %v1514 = vsel %vm339, %v1511, %v1513
        %v1515 = vsel %vm1106, %v1512, 0
        %v1517 = vsel %vm1106, %v1514, 0
        %1519 = vmatprep.subr.mxu0 0.0
        %1520 = vmatpush1.msra.mxu0 0.0
        %1521 = vmatprep.subr.mxu0 0.0
        %1522 = vmatpush1.msra.mxu0 0.0
        %1523 = vmatprep.subr.mxu0 0.0
        %1524 = vmatpush1.msra.mxu0 0.0
        %1525 = vmatprep.subr.mxu0 0.0
        %1526 = vmatpush1.msra.mxu0 0.0
        %1527 = vmatprep.subr.mxu0 0.0
        %1528 = vmatpush1.msra.mxu0 0.0
        %1529 = vmatprep.subr.mxu0 0.0
        %1530 = vmatpush1.msra.mxu0 0.0
        %1531 = vmatprep.subr.mxu0 0.0
        %1532 = vmatpush1.msra.mxu0 0.0
        %1533 = vmatprep.subr.mxu0 0.0
        %1534 = vmatpush1.msra.mxu0 0.0
        %1535 = vmatprep.subr.mxu0 0.0
        %1536 = vmatpush1.msra.mxu0 %v1509
        %1537 = vmatprep.subr.mxu0 0.0
        %1538 = vmatpush1.msra.mxu0 %v1508
        %1539 = vmatprep.subr.mxu0 0.0
        %1540 = vmatpush1.msra.mxu0 %v1507
        %1541 = vmatprep.subr.mxu0 0.0
        %1542 = vmatpush1.msra.mxu0 %v1506
        %1543 = vmatprep.subr.mxu0 0.0
        %1544 = vmatpush1.msra.mxu0 %v1505
        %1545 = vmatprep.subr.mxu0 0.0
        %1546 = vmatpush1.msra.mxu0 %v1504
        %1547 = vmatprep.subr.mxu0 0.0
        %1548 = vmatpush1.msra.mxu0 %v1503
        %1549 = vmatprep.subr.mxu0 0.0
        %1550 = vmatpush1.msra.mxu0 %v1502
        %1551 = vmatprep.subr.mxu0 0.0
        %1552 = vmatpush2.msra.mxu0 0.0
        %1553 = vmatprep.subr.mxu0 0.0
        %1554 = vmatpush2.msra.mxu0 0.0
        %1555 = vmatprep.subr.mxu0 0.0
        %1556 = vmatpush2.msra.mxu0 0.0
        %1557 = vmatprep.subr.mxu0 0.0
        %1558 = vmatpush2.msra.mxu0 0.0
        %1559 = vmatprep.subr.mxu0 0.0
        %1560 = vmatpush2.msra.mxu0 0.0
        %1561 = vmatprep.subr.mxu0 0.0
        %1562 = vmatpush2.msra.mxu0 0.0
        %1563 = vmatprep.subr.mxu0 0.0
        %1564 = vmatpush2.msra.mxu0 0.0
        %1565 = vmatprep.subr.mxu0 0.0
        %1566 = vmatpush2.msra.mxu0 0.0
        %1567 = vmatprep.subr.mxu0 0.0
        %1568 = vmatpush2.msra.mxu0 0.0
        %1569 = vmatprep.subr.mxu0 0.0
        %1570 = vmatpush2.msra.mxu0 0.0
        %1571 = vmatprep.subr.mxu0 0.0
        %1572 = vmatpush2.msra.mxu0 0.0
        %1573 = vmatprep.subr.mxu0 0.0
        %1574 = vmatpush2.msra.mxu0 0.0
        %1575 = vmatprep.subr.mxu0 0.0
        %1576 = vmatpush2.msra.mxu0 0.0
        %1577 = vmatprep.subr.mxu0 0.0
        %1578 = vmatpush2.msra.mxu0 0.0
        %1579 = vmatprep.subr.mxu0 0.0
        %1580 = vmatpush2.msra.mxu0 0.0
        %1581 = vmatprep.subr.mxu0 0.0
        %1582 = vmatpush2.msra.mxu0 0.0
        %1583 = vmatprep.mubr.f32.mxu0 0.0
        %1584 = vmatmul.mubr.f32.gmra.mxu0 %v1515
        %v1585 = vpop.f32.mrf.mxu0
        %v1586 = vadd.f32 0.0, %v1585
        %v1587 = vpop.f32.mrf.mxu0
        %1588 = vmatprep.mubr.f32.mxu0 0.0
        %1589 = vmatmul.mubr.f32.gmra.mxu0 %v1517
        %v1590 = vpop.f32.mrf.mxu0
        %v1591 = vadd.f32 0.0, %v1590
        %v1592 = vpop.f32.mrf.mxu0
        %1593 = vdwg.mxu0
        %v1594 = vadd.f32 %v1499, %v1586
        %v1595 = vadd.f32 %v1500, %v1591
        %v1596 = vld [vmem:[%s6] sm:$0x1]
        %v1598 = vlaneseq
        %v1599 = vshrl.u32 %v1598, 7
        %v1600 = vsub.s32 0, %v1599
        %v1601 = vrot.slane %v1596, %v1600
        %v1603 = vadd.f32 %v1594, %v1601
        %v1604 = vadd.f32 %v1595, %v1601
        %v1605 = vmax.f32 %v1603, 0.0
        %v1606 = vmax.f32 %v1604, 0.0
        %v1607 = vpack.c.bf16 %v1606, %v1605
        %v1609 = vunpack.c.l.b16 %v1607
        %v1610 = vunpack.c.h.b16 %v1607
        %v1611 = vpack.c.b16 %v1609, %v1609
        %v1612 = vpack.c.b16 %v1610, %v1610
        %1615 = vst [vmem:[%s302] sm:$0xf] %v1611
        %1616 = vst [vmem:[%s302 + $0x4] sm:$0xf] %v1612
        %p1617 = scmp.lt.s32.totalorder %s20, 7
        %s1618 = scalar_select %p1617, %s20, 7
        %s1619 = smul.addr %s1618, 2
        %s1620 = smul.addr %s1619, 4
        %s1621 = scalar_lea.vmem %s7, %s1620
        // Predicated region
        $region57: #{cnn_forward.2} parent=47 // pred_check
          %p1622 = pneg %p190
        $region58: #{cnn_forward.2} parent=47 // pred_check_branch
          %1624 = sbr.rel (%p1622) target = $region60
        $region59: #{cnn_forward.2} parent=47 // pred_region
          _
        $region60: #{cnn_forward.2} parent=47 // pred_fallthru
          _
      $region48: #{cnn_forward.2} parent=5 // pred_fallthru
        _
      %p1625 = scmp.le.s32.totalorder 2, %s15
      // Predicated region
      $region61: #{cnn_forward.2} parent=5 // pred_check
        %p1626 = pneg %p1625
      $region62: #{cnn_forward.2} parent=5 // pred_check_branch
        %1628 = sbr.rel (%p1626) target = $region64
      $region63: #{cnn_forward.2} parent=5 // pred_region
        %s1629 = ssub.s32 %s15, 2
        // Predicated region
        $region65: #{cnn_forward.2} parent=63 // pred_check
          %p1630 = pneg %p196
        $region66: #{cnn_forward.2} parent=63 // pred_check_branch
          %1632 = sbr.rel (%p1630) target = $region68
        $region67: #{cnn_forward.2} parent=63 // pred_region
          %p1633 = scmp.lt.s32.totalorder %s21, 7
          %s1634 = scalar_select %p1633, %s21, 7
          %s1635 = smul.addr %s1634, 2
          %s1636 = smul.addr %s1635, 4
          %s1637 = scalar_lea.vmem %s7, %s1636
        $region68: #{cnn_forward.2} parent=63 // pred_fallthru
          _
      $region64: #{cnn_forward.2} parent=5 // pred_fallthru
        _
    $region6: #{cnn_forward.2} parent=1 // loop_footer
      %s19 = sadd.s32 1, %s15
    $region7: #{cnn_forward.2} parent=1 // loop_footer_branch
      %14 = sbr.rel target = $region3
    $region8: #{cnn_forward.2} parent=1 // loop_exit
      _
    %1638 = vsyncpa [#allocation5], 1
    %s1639 = scalar_lea.sflag [#allocation5], 1
    %1640 = vsyncpa %s1639, 1
    %1641 = vsyncpa [#allocation7], 1

// kernel: cnn_forward.3
$region0: #{cnn_forward.3}
  #allocation0 [shape = 'u32[]', space=smem, size = 0x4, offset = 0x4, fixed_abs, tag = 'smem constant byte address 0x4 - core index']
  #allocation1 [shape = 'u32[144,128]{1,0:T(1,128)}', space=vmem, size = 0x12000, scoped, tag = 'internal scratch']
  #allocation2 [shape = 'f32[8,128]{1,0:T(8,128)}', space=vmem, size = 0x1000, scoped, tag = 'scratch operand']
  %s0 = inlined_call_operand.vmem [shape: bf16[8,2048], index: 0, kind: input, shape index: {}]
  %s1 = inlined_call_operand.hbm [shape: bf16[2048,256], index: 1, kind: input, shape index: {}]
  %s2 = inlined_call_operand.vmem [shape: f32[1,256], index: 2, kind: input, shape index: {}]
  %s3 = inlined_call_operand.vmem [shape: f32[256,5], index: 3, kind: input, shape index: {}]
  %s4 = inlined_call_operand.vmem [shape: f32[2,8,5], index: 4, kind: output, shape index: {}]
  %s5 = sld [smem:[#allocation0]]
  $region61: #{cnn_forward.3} parent=0
    _
  %s7 = ssub.s32 1, %s5
  %s8 = scalar_select 0, %s7, %s5
  $region1: #{cnn_forward.3} parent=0
    #allocation3 [shape = 'u8[1048576]{0}', space=vmem, size = 0x100000, scoped, tag = 'input window, operand 1']
    #allocation4 [shape = 's32[2]{0}', space=sflag, size = 0x8, scoped, tag = 'scoped memory for cnn_forward.3']
    %9 = vsyncpa [#allocation4], 0
    %s10 = scalar_lea.sflag [#allocation4], 1
    %11 = vsyncpa %s10, 0
    loop: start=0, step=1, limit=4
    $region2: #{cnn_forward.3} parent=1 // loop_pre_header
      _
    $region3: #{cnn_forward.3} parent=1 // loop_header
      %s13 = sphi 0, %s17
      %p14 = scmp.ge.s32.totalorder %s13, 4
      %s20 = sphi 0, %s32
      %s21 = sphi 0, %s28
      %s22 = sphi 0, %s20
      %s23 = sphi 0, %s21
      %s24 = sphi 0, %s22
      %s25 = sphi 0, %s23
      %s35 = sphi 0, %s37
      %s38 = sphi 0, %s35
      %s39 = sphi 0, %s38
      %s55 = sphi 0, %s39
      %s63 = sphi 0, %s65
      %s66 = sphi 0, %s63
      %s67 = sphi 0, %s66
      %s83 = sphi 0, %s67
      %s89 = sphi 0, %s91
      %s92 = sphi 0, %s89
      %s93 = sphi 0, %s92
      %s109 = sphi 0, %s93
      %s115 = sphi 0, %s117
      %s118 = sphi 0, %s115
      %s119 = sphi 0, %s118
      %s135 = sphi 0, %s119
      %s141 = sphi 0, %s143
      %s144 = sphi 0, %s141
      %s145 = sphi 0, %s144
      %s161 = sphi 0, %s145
    $region4: #{cnn_forward.3} parent=1 // loop_header_branch
      %16 = sbr.rel (%p14) target = $region8
    $region5: #{cnn_forward.3} parent=1 // loop_body
      %s18 = ssub.s32 %s13, 1
      %s19 = ssub.s32 %s13, 2
      %s26 = sadd.s32 1, %s21
      %p27 = scmp.ge.s32.totalorder %s26, 1
      %s28 = scalar_select %p27, 0, %s26
      %s29 = sadd.s32 1, %s20
      %s30 = scalar_select %p27, %s29, %s20
      %p31 = scmp.ge.s32.totalorder %s30, 2
      %s32 = scalar_select %p31, 0, %s30
      %s33 = ssub.s32 %s21, %s28
      %p34 = scmp.eq.s32.totalorder %s33, 0
      %s36 = sadd.s32 %s35, 1
      %s37 = scalar_select %p34, %s35, %s36
      %p40 = pneg %p34
      %p41 = scmp.eq.s32.totalorder %s13, 1
      %p42 = por %p40, %p41
      %p43 = scmp.ne.s32.totalorder %s35, %s38
      %p44 = scmp.eq.s32.totalorder %s13, 0
      %p45 = por %p43, %p44
      %p46 = scmp.ne.s32.totalorder %s35, %s38
      %p47 = scmp.eq.s32.totalorder %s18, 1
      %p48 = por %p46, %p47
      %p49 = scmp.ne.s32.totalorder %s38, %s39
      %p50 = scmp.eq.s32.totalorder %s18, 0
      %p51 = por %p49, %p50
      %p52 = scmp.ne.s32.totalorder %s38, %s39
      %p53 = scmp.eq.s32.totalorder %s19, 1
      %p54 = por %p52, %p53
      %p56 = scmp.ne.s32.totalorder %s39, %s55
      %p57 = scmp.eq.s32.totalorder %s19, 0
      %p58 = por %p56, %p57
      %s59 = ssub.s32 %s21, %s28
      %s60 = ssub.s32 %s20, %s32
      %s61 = sor.u32 %s59, %s60
      %p62 = scmp.eq.s32.totalorder %s61, 0
      %s64 = sadd.s32 %s63, 1
      %s65 = scalar_select %p62, %s63, %s64
      %p68 = pneg %p62
      %p69 = scmp.eq.s32.totalorder %s13, 1
      %p70 = por %p68, %p69
      %p71 = scmp.ne.s32.totalorder %s63, %s66
      %p72 = scmp.eq.s32.totalorder %s13, 0
      %p73 = por %p71, %p72
      %p74 = scmp.ne.s32.totalorder %s63, %s66
      %p75 = scmp.eq.s32.totalorder %s18, 1
      %p76 = por %p74, %p75
      %p77 = scmp.ne.s32.totalorder %s66, %s67
      %p78 = scmp.eq.s32.totalorder %s18, 0
      %p79 = por %p77, %p78
      %p80 = scmp.ne.s32.totalorder %s66, %s67
      %p81 = scmp.eq.s32.totalorder %s19, 1
      %p82 = por %p80, %p81
      %p84 = scmp.ne.s32.totalorder %s67, %s83
      %p85 = scmp.eq.s32.totalorder %s19, 0
      %p86 = por %p84, %p85
      %s87 = ssub.s32 %s20, %s32
      %p88 = scmp.eq.s32.totalorder %s87, 0
      %s90 = sadd.s32 %s89, 1
      %s91 = scalar_select %p88, %s89, %s90
      %p94 = pneg %p88
      %p95 = scmp.eq.s32.totalorder %s13, 1
      %p96 = por %p94, %p95
      %p97 = scmp.ne.s32.totalorder %s89, %s92
      %p98 = scmp.eq.s32.totalorder %s13, 0
      %p99 = por %p97, %p98
      %p100 = scmp.ne.s32.totalorder %s89, %s92
      %p101 = scmp.eq.s32.totalorder %s18, 1
      %p102 = por %p100, %p101
      %p103 = scmp.ne.s32.totalorder %s92, %s93
      %p104 = scmp.eq.s32.totalorder %s18, 0
      %p105 = por %p103, %p104
      %p106 = scmp.ne.s32.totalorder %s92, %s93
      %p107 = scmp.eq.s32.totalorder %s19, 1
      %p108 = por %p106, %p107
      %p110 = scmp.ne.s32.totalorder %s93, %s109
      %p111 = scmp.eq.s32.totalorder %s19, 0
      %p112 = por %p110, %p111
      %s113 = ssub.s32 %s20, %s32
      %p114 = scmp.eq.s32.totalorder %s113, 0
      %s116 = sadd.s32 %s115, 1
      %s117 = scalar_select %p114, %s115, %s116
      %p120 = pneg %p114
      %p121 = scmp.eq.s32.totalorder %s13, 1
      %p122 = por %p120, %p121
      %p123 = scmp.ne.s32.totalorder %s115, %s118
      %p124 = scmp.eq.s32.totalorder %s13, 0
      %p125 = por %p123, %p124
      %p126 = scmp.ne.s32.totalorder %s115, %s118
      %p127 = scmp.eq.s32.totalorder %s18, 1
      %p128 = por %p126, %p127
      %p129 = scmp.ne.s32.totalorder %s118, %s119
      %p130 = scmp.eq.s32.totalorder %s18, 0
      %p131 = por %p129, %p130
      %p132 = scmp.ne.s32.totalorder %s118, %s119
      %p133 = scmp.eq.s32.totalorder %s19, 1
      %p134 = por %p132, %p133
      %p136 = scmp.ne.s32.totalorder %s119, %s135
      %p137 = scmp.eq.s32.totalorder %s19, 0
      %p138 = por %p136, %p137
      %s139 = ssub.s32 %s20, %s32
      %p140 = scmp.eq.s32.totalorder %s139, 0
      %s142 = sadd.s32 %s141, 1
      %s143 = scalar_select %p140, %s141, %s142
      %p146 = pneg %p140
      %p147 = scmp.eq.s32.totalorder %s13, 1
      %p148 = por %p146, %p147
      %p149 = scmp.ne.s32.totalorder %s141, %s144
      %p150 = scmp.eq.s32.totalorder %s13, 0
      %p151 = por %p149, %p150
      %p152 = scmp.ne.s32.totalorder %s141, %s144
      %p153 = scmp.eq.s32.totalorder %s18, 1
      %p154 = por %p152, %p153
      %p155 = scmp.ne.s32.totalorder %s144, %s145
      %p156 = scmp.eq.s32.totalorder %s18, 0
      %p157 = por %p155, %p156
      %p158 = scmp.ne.s32.totalorder %s144, %s145
      %p159 = scmp.eq.s32.totalorder %s19, 1
      %p160 = por %p158, %p159
      %p162 = scmp.ne.s32.totalorder %s145, %s161
      %p163 = scmp.eq.s32.totalorder %s19, 0
      %p164 = por %p162, %p163
      %p165 = scmp.le.s32.totalorder 1, %s13
      %p166 = scmp.lt.s32.totalorder %s13, 3
      %p167 = pnand %p165, %p166
      %p168 = pneg %p167
      // Predicated region
      $region9: #{cnn_forward.3} parent=5 // pred_check
        _
      $region10: #{cnn_forward.3} parent=5 // pred_check_branch
        %170 = sbr.rel (%p167) target = $region12
      $region11: #{cnn_forward.3} parent=5 // pred_region
        %s171 = ssub.s32 %s13, 1
        // Predicated region
        $region13: #{cnn_forward.3} parent=11 // pred_check
          %p172 = pneg %p51
        $region14: #{cnn_forward.3} parent=11 // pred_check_branch
          %174 = sbr.rel (%p172) target = $region16
        $region15: #{cnn_forward.3} parent=11 // pred_region
          %s175 = smul.u32 16, %s23
          %p176 = scmp.lt.s32.totalorder %s175, 15
          %s177 = scalar_select %p176, %s175, 15
          %s178 = smul.addr %s177, 4
          %s179 = scalar_lea.vmem %s0, %s178
          %s180 = smul.u32 16, %s23
        $region16: #{cnn_forward.3} parent=11 // pred_fallthru
          _
      $region12: #{cnn_forward.3} parent=5 // pred_fallthru
        _
      %p181 = scmp.lt.s32.totalorder %s13, 2
      // Predicated region
      $region17: #{cnn_forward.3} parent=5 // pred_check
        %p182 = pneg %p181
      $region18: #{cnn_forward.3} parent=5 // pred_check_branch
        %184 = sbr.rel (%p182) target = $region20
      $region19: #{cnn_forward.3} parent=5 // pred_region
        // Predicated region
        $region21: #{cnn_forward.3} parent=19 // pred_check
          %p185 = pneg %p73
        $region22: #{cnn_forward.3} parent=19 // pred_check_branch
          %187 = sbr.rel (%p185) target = $region24
        $region23: #{cnn_forward.3} parent=19 // pred_region
          %s188 = sand.u32 %s63, 1
          %s189 = scalar_lea.sflag [#allocation4], %s188
          %s190 = sand.u32 %s63, 1
          %s191 = smul.addr %s190, 1024
          %s192 = scalar_lea.vmem [#allocation3], %s191
          %s193 = smul.u32 256, %s21
          %s195 = ssub.s32 16384, 16384
          %196 = vsyncadd %s189, %s195
          %s197 = smul.addr %s193, 2
          %s198 = sadd.s32 %s20, %s197
          %s199 = smul.addr %s198, 64
          %s200 = scalar_lea.hbm %s1, %s199
          %s201 = sshll.u32 %s192, 4
          %s202 = int_to_ptr.vmem [resolvable:$true] %s201
          %207 = dma.hbm_to_vmem [thread:$0]  %s200, 16384, %s202, %s189, 128, 64, 4
        $region24: #{cnn_forward.3} parent=19 // pred_fallthru
          _
        // Predicated region
        $region25: #{cnn_forward.3} parent=19 // pred_check
          %p208 = pneg %p99
        $region26: #{cnn_forward.3} parent=19 // pred_check_branch
          %210 = sbr.rel (%p208) target = $region28
        $region27: #{cnn_forward.3} parent=19 // pred_region
          %p211 = scmp.lt.s32.totalorder %s20, 1
          %s212 = scalar_select %p211, %s20, 1
          %s213 = scalar_lea.vmem %s2, %s212
        $region28: #{cnn_forward.3} parent=19 // pred_fallthru
          _
        // Predicated region
        $region29: #{cnn_forward.3} parent=19 // pred_check
          %p214 = pneg %p125
        $region30: #{cnn_forward.3} parent=19 // pred_check_branch
          %216 = sbr.rel (%p214) target = $region32
        $region31: #{cnn_forward.3} parent=19 // pred_region
          %s217 = smul.u32 16, %s20
          %p218 = scmp.lt.s32.totalorder %s217, 31
          %s219 = scalar_select %p218, %s217, 31
          %s220 = smul.addr %s219, 8
          %s221 = scalar_lea.vmem %s3, %s220
          %s222 = smul.u32 16, %s20
        $region32: #{cnn_forward.3} parent=19 // pred_fallthru
          _
      $region20: #{cnn_forward.3} parent=5 // pred_fallthru
        _
      %p223 = scmp.le.s32.totalorder 1, %s13
      %p224 = scmp.lt.s32.totalorder %s13, 3
      %p225 = pnand %p223, %p224
      %p226 = pneg %p225
      // Predicated region
      $region33: #{cnn_forward.3} parent=5 // pred_check
        _
      $region34: #{cnn_forward.3} parent=5 // pred_check_branch
        %228 = sbr.rel (%p225) target = $region36
      $region35: #{cnn_forward.3} parent=5 // pred_region
        %s229 = ssub.s32 %s13, 1
        %s230 = sand.u32 %s66, 1
        %s231 = scalar_lea.sflag [#allocation4], %s230
        %s232 = sand.u32 %s66, 1
        %s233 = smul.addr %s232, 1024
        %s234 = scalar_lea.vmem [#allocation3], %s233
        // Predicated region
        $region37: #{cnn_forward.3} parent=35 // pred_check
          %p235 = pneg %p79
        $region38: #{cnn_forward.3} parent=35 // pred_check_branch
          %237 = sbr.rel (%p235) target = $region40
        $region39: #{cnn_forward.3} parent=35 // pred_region
          %238 = dma.done %s231, 16384
        $region40: #{cnn_forward.3} parent=35 // pred_fallthru
          _
        %s239 = smul.u32 16, %s23
        %p240 = scmp.lt.s32.totalorder %s239, 15
        %s241 = scalar_select %p240, %s239, 15
        %s242 = smul.addr %s241, 4
        %s243 = scalar_lea.vmem %s0, %s242
        %p244 = pneg %p51
        %p245 = pneg %p48
        %s246 = sand.u32 %s66, 1
        %s247 = scalar_lea.sflag [#allocation4], %s246
        %s248 = sand.u32 %s66, 1
        %s249 = smul.addr %s248, 1024
        %s250 = scalar_lea.vmem [#allocation3], %s249
        %p251 = pneg %p79
        %p252 = pneg %p76
        %p253 = scmp.lt.s32.totalorder %s22, 1
        %s254 = scalar_select %p253, %s22, 1
        %s255 = scalar_lea.vmem %s2, %s254
        %p256 = pneg %p105
        %p257 = pneg %p102
        %s258 = smul.u32 16, %s22
        %p259 = scmp.lt.s32.totalorder %s258, 31
        %s260 = scalar_select %p259, %s258, 31
        %s261 = smul.addr %s260, 8
        %s262 = scalar_lea.vmem %s3, %s261
        %p263 = pneg %p131
        %p264 = pneg %p128
        %p265 = pneg %p157
        %p266 = pneg %p154
        %p267 = scmp.lt.s32.totalorder %s22, 1
        %s268 = scalar_select %p267, %s22, 1
        %s269 = smul.addr %s268, 8
        %s270 = scalar_lea.vmem %s4, %s269
        %s271 = smul.u32 16, %s23
        %p272 = scmp.lt.s32.totalorder %s271, 15
        %s273 = scalar_select %p272, %s271, 15
        %s274 = smul.addr %s273, 4
        %s275 = scalar_lea.vmem %s0, %s274
        %s276 = smul.u32 16, %s23
        %s277 = smul.u32 256, %s23
        %p278 = scmp.lt.s32.totalorder %s22, 1
        %s279 = scalar_select %p278, %s22, 1
        %s280 = scalar_lea.vmem %s2, %s279
        %s281 = smul.u32 16, %s22
        %p282 = scmp.lt.s32.totalorder %s281, 31
        %s283 = scalar_select %p282, %s281, 31
        %s284 = smul.addr %s283, 8
        %s285 = scalar_lea.vmem %s3, %s284
        %s286 = smul.u32 16, %s22
        %p287 = scmp.lt.s32.totalorder %s22, 1
        %s288 = scalar_select %p287, %s22, 1
        %s289 = smul.addr %s288, 8
        %s290 = scalar_lea.vmem %s4, %s289
        %p292 = scmp.eq.s32.totalorder %s23, 0
        // Predicated region
        $region41: #{cnn_forward.3} parent=35 // pred_check
          %p293 = pneg %p292
        $region42: #{cnn_forward.3} parent=35 // pred_check_branch
          %295 = sbr.rel (%p293) target = $region44
        $region43: #{cnn_forward.3} parent=35 // pred_region
          %296 = vst [vmem:[#allocation2] sm:$0xff] 0.0
        $region44: #{cnn_forward.3} parent=35 // pred_fallthru
          _
        %v297 = vld [vmem:[#allocation2] sm:$0xff]
        %v298 = vld [vmem:[%s275] sm:$0xff]
        %v299 = vld [vmem:[%s275 + $0x8] sm:$0xff]
        %v300 = vld [vmem:[%s275 + $0x10] sm:$0xff]
        %v301 = vld [vmem:[%s275 + $0x18] sm:$0xff]
        %v302 = vld [vmem:[%s275 + $0x20] sm:$0xff]
        %v303 = vld [vmem:[%s275 + $0x28] sm:$0xff]
        %v304 = vld [vmem:[%s275 + $0x30] sm:$0xff]
        %v305 = vld [vmem:[%s275 + $0x38] sm:$0xff]
        %v306 = vld [vmem:[%s234] sm:$0xf]
        %v307 = vld [vmem:[%s234 + $0x4] sm:$0xf]
        %v308 = vld [vmem:[%s234 + $0x8] sm:$0xf]
        %v309 = vld [vmem:[%s234 + $0xc] sm:$0xf]
        %v310 = vld [vmem:[%s234 + $0x10] sm:$0xf]
        %v311 = vld [vmem:[%s234 + $0x14] sm:$0xf]
        %v312 = vld [vmem:[%s234 + $0x18] sm:$0xf]
        %v313 = vld [vmem:[%s234 + $0x1c] sm:$0xf]
        %v314 = vld [vmem:[%s234 + $0x20] sm:$0xf]
        %v315 = vld [vmem:[%s234 + $0x24] sm:$0xf]
        %v316 = vld [vmem:[%s234 + $0x28] sm:$0xf]
        %v317 = vld [vmem:[%s234 + $0x2c] sm:$0xf]
        %v318 = vld [vmem:[%s234 + $0x30] sm:$0xf]
        %v319 = vld [vmem:[%s234 + $0x34] sm:$0xf]
        %v320 = vld [vmem:[%s234 + $0x38] sm:$0xf]
        %v321 = vld [vmem:[%s234 + $0x3c] sm:$0xf]
        %v322 = vld [vmem:[%s234 + $0x40] sm:$0xf]
        %v323 = vld [vmem:[%s234 + $0x44] sm:$0xf]
        %v324 = vld [vmem:[%s234 + $0x48] sm:$0xf]
        %v325 = vld [vmem:[%s234 + $0x4c] sm:$0xf]
        %v326 = vld [vmem:[%s234 + $0x50] sm:$0xf]
        %v327 = vld [vmem:[%s234 + $0x54] sm:$0xf]
        %v328 = vld [vmem:[%s234 + $0x58] sm:$0xf]
        %v329 = vld [vmem:[%s234 + $0x5c] sm:$0xf]
        %v330 = vld [vmem:[%s234 + $0x60] sm:$0xf]
        %v331 = vld [vmem:[%s234 + $0x64] sm:$0xf]
        %v332 = vld [vmem:[%s234 + $0x68] sm:$0xf]
        %v333 = vld [vmem:[%s234 + $0x6c] sm:$0xf]
        %v334 = vld [vmem:[%s234 + $0x70] sm:$0xf]
        %v335 = vld [vmem:[%s234 + $0x74] sm:$0xf]
        %v336 = vld [vmem:[%s234 + $0x78] sm:$0xf]
        %v337 = vld [vmem:[%s234 + $0x7c] sm:$0xf]
        %v338 = vld [vmem:[%s234 + $0x80] sm:$0xf]
        %v339 = vld [vmem:[%s234 + $0x84] sm:$0xf]
        %v340 = vld [vmem:[%s234 + $0x88] sm:$0xf]
        %v341 = vld [vmem:[%s234 + $0x8c] sm:$0xf]
        %v342 = vld [vmem:[%s234 + $0x90] sm:$0xf]
        %v343 = vld [vmem:[%s234 + $0x94] sm:$0xf]
        %v344 = vld [vmem:[%s234 + $0x98] sm:$0xf]
        %v345 = vld [vmem:[%s234 + $0x9c] sm:$0xf]
        %v346 = vld [vmem:[%s234 + $0xa0] sm:$0xf]
        %v347 = vld [vmem:[%s234 + $0xa4] sm:$0xf]
        %v348 = vld [vmem:[%s234 + $0xa8] sm:$0xf]
        %v349 = vld [vmem:[%s234 + $0xac] sm:$0xf]
        %v350 = vld [vmem:[%s234 + $0xb0] sm:$0xf]
        %v351 = vld [vmem:[%s234 + $0xb4] sm:$0xf]
        %v352 = vld [vmem:[%s234 + $0xb8] sm:$0xf]
        %v353 = vld [vmem:[%s234 + $0xbc] sm:$0xf]
        %v354 = vld [vmem:[%s234 + $0xc0] sm:$0xf]
        %v355 = vld [vmem:[%s234 + $0xc4] sm:$0xf]
        %v356 = vld [vmem:[%s234 + $0xc8] sm:$0xf]
        %v357 = vld [vmem:[%s234 + $0xcc] sm:$0xf]
        %v358 = vld [vmem:[%s234 + $0xd0] sm:$0xf]
        %v359 = vld [vmem:[%s234 + $0xd4] sm:$0xf]
        %v360 = vld [vmem:[%s234 + $0xd8] sm:$0xf]
        %v361 = vld [vmem:[%s234 + $0xdc] sm:$0xf]
        %v362 = vld [vmem:[%s234 + $0xe0] sm:$0xf]
        %v363 = vld [vmem:[%s234 + $0xe4] sm:$0xf]
        %v364 = vld [vmem:[%s234 + $0xe8] sm:$0xf]
        %v365 = vld [vmem:[%s234 + $0xec] sm:$0xf]
        %v366 = vld [vmem:[%s234 + $0xf0] sm:$0xf]
        %v367 = vld [vmem:[%s234 + $0xf4] sm:$0xf]
        %v368 = vld [vmem:[%s234 + $0xf8] sm:$0xf]
        %v369 = vld [vmem:[%s234 + $0xfc] sm:$0xf]
        %v370 = vld [vmem:[%s234 + $0x100] sm:$0xf]
        %v371 = vld [vmem:[%s234 + $0x104] sm:$0xf]
        %v372 = vld [vmem:[%s234 + $0x108] sm:$0xf]
        %v373 = vld [vmem:[%s234 + $0x10c] sm:$0xf]
        %v374 = vld [vmem:[%s234 + $0x110] sm:$0xf]
        %v375 = vld [vmem:[%s234 + $0x114] sm:$0xf]
        %v376 = vld [vmem:[%s234 + $0x118] sm:$0xf]
        %v377 = vld [vmem:[%s234 + $0x11c] sm:$0xf]
        %v378 = vld [vmem:[%s234 + $0x120] sm:$0xf]
        %v379 = vld [vmem:[%s234 + $0x124] sm:$0xf]
        %v380 = vld [vmem:[%s234 + $0x128] sm:$0xf]
        %v381 = vld [vmem:[%s234 + $0x12c] sm:$0xf]
        %v382 = vld [vmem:[%s234 + $0x130] sm:$0xf]
        %v383 = vld [vmem:[%s234 + $0x134] sm:$0xf]
        %v384 = vld [vmem:[%s234 + $0x138] sm:$0xf]
        %v385 = vld [vmem:[%s234 + $0x13c] sm:$0xf]
        %v386 = vld [vmem:[%s234 + $0x140] sm:$0xf]
        %v387 = vld [vmem:[%s234 + $0x144] sm:$0xf]
        %v388 = vld [vmem:[%s234 + $0x148] sm:$0xf]
        %v389 = vld [vmem:[%s234 + $0x14c] sm:$0xf]
        %v390 = vld [vmem:[%s234 + $0x150] sm:$0xf]
        %v391 = vld [vmem:[%s234 + $0x154] sm:$0xf]
        %v392 = vld [vmem:[%s234 + $0x158] sm:$0xf]
        %v393 = vld [vmem:[%s234 + $0x15c] sm:$0xf]
        %v394 = vld [vmem:[%s234 + $0x160] sm:$0xf]
        %v395 = vld [vmem:[%s234 + $0x164] sm:$0xf]
        %v396 = vld [vmem:[%s234 + $0x168] sm:$0xf]
        %v397 = vld [vmem:[%s234 + $0x16c] sm:$0xf]
        %v398 = vld [vmem:[%s234 + $0x170] sm:$0xf]
        %v399 = vld [vmem:[%s234 + $0x174] sm:$0xf]
        %v400 = vld [vmem:[%s234 + $0x178] sm:$0xf]
        %v401 = vld [vmem:[%s234 + $0x17c] sm:$0xf]
        %v402 = vld [vmem:[%s234 + $0x180] sm:$0xf]
        %v403 = vld [vmem:[%s234 + $0x184] sm:$0xf]
        %v404 = vld [vmem:[%s234 + $0x188] sm:$0xf]
        %v405 = vld [vmem:[%s234 + $0x18c] sm:$0xf]
        %v406 = vld [vmem:[%s234 + $0x190] sm:$0xf]
        %v407 = vld [vmem:[%s234 + $0x194] sm:$0xf]
        %v408 = vld [vmem:[%s234 + $0x198] sm:$0xf]
        %v409 = vld [vmem:[%s234 + $0x19c] sm:$0xf]
        %v410 = vld [vmem:[%s234 + $0x1a0] sm:$0xf]
        %v411 = vld [vmem:[%s234 + $0x1a4] sm:$0xf]
        %v412 = vld [vmem:[%s234 + $0x1a8] sm:$0xf]
        %v413 = vld [vmem:[%s234 + $0x1ac] sm:$0xf]
        %v414 = vld [vmem:[%s234 + $0x1b0] sm:$0xf]
        %v415 = vld [vmem:[%s234 + $0x1b4] sm:$0xf]
        %v416 = vld [vmem:[%s234 + $0x1b8] sm:$0xf]
        %v417 = vld [vmem:[%s234 + $0x1bc] sm:$0xf]
        %v418 = vld [vmem:[%s234 + $0x1c0] sm:$0xf]
        %v419 = vld [vmem:[%s234 + $0x1c4] sm:$0xf]
        %v420 = vld [vmem:[%s234 + $0x1c8] sm:$0xf]
        %v421 = vld [vmem:[%s234 + $0x1cc] sm:$0xf]
        %v422 = vld [vmem:[%s234 + $0x1d0] sm:$0xf]
        %v423 = vld [vmem:[%s234 + $0x1d4] sm:$0xf]
        %v424 = vld [vmem:[%s234 + $0x1d8] sm:$0xf]
        %v425 = vld [vmem:[%s234 + $0x1dc] sm:$0xf]
        %v426 = vld [vmem:[%s234 + $0x1e0] sm:$0xf]
        %v427 = vld [vmem:[%s234 + $0x1e4] sm:$0xf]
        %v428 = vld [vmem:[%s234 + $0x1e8] sm:$0xf]
        %v429 = vld [vmem:[%s234 + $0x1ec] sm:$0xf]
        %v430 = vld [vmem:[%s234 + $0x1f0] sm:$0xf]
        %v431 = vld [vmem:[%s234 + $0x1f4] sm:$0xf]
        %v432 = vld [vmem:[%s234 + $0x1f8] sm:$0xf]
        %v433 = vld [vmem:[%s234 + $0x1fc] sm:$0xf]
        %v434 = vld [vmem:[%s234 + $0x200] sm:$0xf]
        %v435 = vld [vmem:[%s234 + $0x204] sm:$0xf]
        %v436 = vld [vmem:[%s234 + $0x208] sm:$0xf]
        %v437 = vld [vmem:[%s234 + $0x20c] sm:$0xf]
        %v438 = vld [vmem:[%s234 + $0x210] sm:$0xf]
        %v439 = vld [vmem:[%s234 + $0x214] sm:$0xf]
        %v440 = vld [vmem:[%s234 + $0x218] sm:$0xf]
        %v441 = vld [vmem:[%s234 + $0x21c] sm:$0xf]
        %v442 = vld [vmem:[%s234 + $0x220] sm:$0xf]
        %v443 = vld [vmem:[%s234 + $0x224] sm:$0xf]
        %v444 = vld [vmem:[%s234 + $0x228] sm:$0xf]
        %v445 = vld [vmem:[%s234 + $0x22c] sm:$0xf]
        %v446 = vld [vmem:[%s234 + $0x230] sm:$0xf]
        %v447 = vld [vmem:[%s234 + $0x234] sm:$0xf]
        %v448 = vld [vmem:[%s234 + $0x238] sm:$0xf]
        %v449 = vld [vmem:[%s234 + $0x23c] sm:$0xf]
        %v450 = vld [vmem:[%s234 + $0x240] sm:$0xf]
        %v451 = vld [vmem:[%s234 + $0x244] sm:$0xf]
        %v452 = vld [vmem:[%s234 + $0x248] sm:$0xf]
        %v453 = vld [vmem:[%s234 + $0x24c] sm:$0xf]
        %v454 = vld [vmem:[%s234 + $0x250] sm:$0xf]
        %v455 = vld [vmem:[%s234 + $0x254] sm:$0xf]
        %v456 = vld [vmem:[%s234 + $0x258] sm:$0xf]
        %v457 = vld [vmem:[%s234 + $0x25c] sm:$0xf]
        %v458 = vld [vmem:[%s234 + $0x260] sm:$0xf]
        %v459 = vld [vmem:[%s234 + $0x264] sm:$0xf]
        %v460 = vld [vmem:[%s234 + $0x268] sm:$0xf]
        %v461 = vld [vmem:[%s234 + $0x26c] sm:$0xf]
        %v462 = vld [vmem:[%s234 + $0x270] sm:$0xf]
        %v463 = vld [vmem:[%s234 + $0x274] sm:$0xf]
        %v464 = vld [vmem:[%s234 + $0x278] sm:$0xf]
        %v465 = vld [vmem:[%s234 + $0x27c] sm:$0xf]
        %v466 = vld [vmem:[%s234 + $0x280] sm:$0xf]
        %v467 = vld [vmem:[%s234 + $0x284] sm:$0xf]
        %v468 = vld [vmem:[%s234 + $0x288] sm:$0xf]
        %v469 = vld [vmem:[%s234 + $0x28c] sm:$0xf]
        %v470 = vld [vmem:[%s234 + $0x290] sm:$0xf]
        %v471 = vld [vmem:[%s234 + $0x294] sm:$0xf]
        %v472 = vld [vmem:[%s234 + $0x298] sm:$0xf]
        %v473 = vld [vmem:[%s234 + $0x29c] sm:$0xf]
        %v474 = vld [vmem:[%s234 + $0x2a0] sm:$0xf]
        %v475 = vld [vmem:[%s234 + $0x2a4] sm:$0xf]
        %v476 = vld [vmem:[%s234 + $0x2a8] sm:$0xf]
        %v477 = vld [vmem:[%s234 + $0x2ac] sm:$0xf]
        %v478 = vld [vmem:[%s234 + $0x2b0] sm:$0xf]
        %v479 = vld [vmem:[%s234 + $0x2b4] sm:$0xf]
        %v480 = vld [vmem:[%s234 + $0x2b8] sm:$0xf]
        %v481 = vld [vmem:[%s234 + $0x2bc] sm:$0xf]
        %v482 = vld [vmem:[%s234 + $0x2c0] sm:$0xf]
        %v483 = vld [vmem:[%s234 + $0x2c4] sm:$0xf]
        %v484 = vld [vmem:[%s234 + $0x2c8] sm:$0xf]
        %v485 = vld [vmem:[%s234 + $0x2cc] sm:$0xf]
        %v486 = vld [vmem:[%s234 + $0x2d0] sm:$0xf]
        %v487 = vld [vmem:[%s234 + $0x2d4] sm:$0xf]
        %v488 = vld [vmem:[%s234 + $0x2d8] sm:$0xf]
        %v489 = vld [vmem:[%s234 + $0x2dc] sm:$0xf]
        %v490 = vld [vmem:[%s234 + $0x2e0] sm:$0xf]
        %v491 = vld [vmem:[%s234 + $0x2e4] sm:$0xf]
        %v492 = vld [vmem:[%s234 + $0x2e8] sm:$0xf]
        %v493 = vld [vmem:[%s234 + $0x2ec] sm:$0xf]
        %v494 = vld [vmem:[%s234 + $0x2f0] sm:$0xf]
        %v495 = vld [vmem:[%s234 + $0x2f4] sm:$0xf]
        %v496 = vld [vmem:[%s234 + $0x2f8] sm:$0xf]
        %v497 = vld [vmem:[%s234 + $0x2fc] sm:$0xf]
        %v498 = vld [vmem:[%s234 + $0x300] sm:$0xf]
        %v499 = vld [vmem:[%s234 + $0x304] sm:$0xf]
        %v500 = vld [vmem:[%s234 + $0x308] sm:$0xf]
        %v501 = vld [vmem:[%s234 + $0x30c] sm:$0xf]
        %v502 = vld [vmem:[%s234 + $0x310] sm:$0xf]
        %v503 = vld [vmem:[%s234 + $0x314] sm:$0xf]
        %v504 = vld [vmem:[%s234 + $0x318] sm:$0xf]
        %v505 = vld [vmem:[%s234 + $0x31c] sm:$0xf]
        %v506 = vld [vmem:[%s234 + $0x320] sm:$0xf]
        %v507 = vld [vmem:[%s234 + $0x324] sm:$0xf]
        %v508 = vld [vmem:[%s234 + $0x328] sm:$0xf]
        %v509 = vld [vmem:[%s234 + $0x32c] sm:$0xf]
        %v510 = vld [vmem:[%s234 + $0x330] sm:$0xf]
        %v511 = vld [vmem:[%s234 + $0x334] sm:$0xf]
        %v512 = vld [vmem:[%s234 + $0x338] sm:$0xf]
        %v513 = vld [vmem:[%s234 + $0x33c] sm:$0xf]
        %v514 = vld [vmem:[%s234 + $0x340] sm:$0xf]
        %v515 = vld [vmem:[%s234 + $0x344] sm:$0xf]
        %v516 = vld [vmem:[%s234 + $0x348] sm:$0xf]
        %v517 = vld [vmem:[%s234 + $0x34c] sm:$0xf]
        %v518 = vld [vmem:[%s234 + $0x350] sm:$0xf]
        %v519 = vld [vmem:[%s234 + $0x354] sm:$0xf]
        %v520 = vld [vmem:[%s234 + $0x358] sm:$0xf]
        %v521 = vld [vmem:[%s234 + $0x35c] sm:$0xf]
        %v522 = vld [vmem:[%s234 + $0x360] sm:$0xf]
        %v523 = vld [vmem:[%s234 + $0x364] sm:$0xf]
        %v524 = vld [vmem:[%s234 + $0x368] sm:$0xf]
        %v525 = vld [vmem:[%s234 + $0x36c] sm:$0xf]
        %v526 = vld [vmem:[%s234 + $0x370] sm:$0xf]
        %v527 = vld [vmem:[%s234 + $0x374] sm:$0xf]
        %v528 = vld [vmem:[%s234 + $0x378] sm:$0xf]
        %v529 = vld [vmem:[%s234 + $0x37c] sm:$0xf]
        %v530 = vld [vmem:[%s234 + $0x380] sm:$0xf]
        %v531 = vld [vmem:[%s234 + $0x384] sm:$0xf]
        %v532 = vld [vmem:[%s234 + $0x388] sm:$0xf]
        %v533 = vld [vmem:[%s234 + $0x38c] sm:$0xf]
        %v534 = vld [vmem:[%s234 + $0x390] sm:$0xf]
        %v535 = vld [vmem:[%s234 + $0x394] sm:$0xf]
        %v536 = vld [vmem:[%s234 + $0x398] sm:$0xf]
        %v537 = vld [vmem:[%s234 + $0x39c] sm:$0xf]
        %v538 = vld [vmem:[%s234 + $0x3a0] sm:$0xf]
        %v539 = vld [vmem:[%s234 + $0x3a4] sm:$0xf]
        %v540 = vld [vmem:[%s234 + $0x3a8] sm:$0xf]
        %v541 = vld [vmem:[%s234 + $0x3ac] sm:$0xf]
        %v542 = vld [vmem:[%s234 + $0x3b0] sm:$0xf]
        %v543 = vld [vmem:[%s234 + $0x3b4] sm:$0xf]
        %v544 = vld [vmem:[%s234 + $0x3b8] sm:$0xf]
        %v545 = vld [vmem:[%s234 + $0x3bc] sm:$0xf]
        %v546 = vld [vmem:[%s234 + $0x3c0] sm:$0xf]
        %v547 = vld [vmem:[%s234 + $0x3c4] sm:$0xf]
        %v548 = vld [vmem:[%s234 + $0x3c8] sm:$0xf]
        %v549 = vld [vmem:[%s234 + $0x3cc] sm:$0xf]
        %v550 = vld [vmem:[%s234 + $0x3d0] sm:$0xf]
        %v551 = vld [vmem:[%s234 + $0x3d4] sm:$0xf]
        %v552 = vld [vmem:[%s234 + $0x3d8] sm:$0xf]
        %v553 = vld [vmem:[%s234 + $0x3dc] sm:$0xf]
        %v554 = vld [vmem:[%s234 + $0x3e0] sm:$0xf]
        %v555 = vld [vmem:[%s234 + $0x3e4] sm:$0xf]
        %v556 = vld [vmem:[%s234 + $0x3e8] sm:$0xf]
        %v557 = vld [vmem:[%s234 + $0x3ec] sm:$0xf]
        %v558 = vld [vmem:[%s234 + $0x3f0] sm:$0xf]
        %v559 = vld [vmem:[%s234 + $0x3f4] sm:$0xf]
        %v560 = vld [vmem:[%s234 + $0x3f8] sm:$0xf]
        %v561 = vld [vmem:[%s234 + $0x3fc] sm:$0xf]
        %v570 = vunpack.c.l.b16 %v298
        %v571 = vunpack.c.h.b16 %v298
        %v572 = vunpack.c.l.b16 %v299
        %v573 = vunpack.c.h.b16 %v299
        %v574 = vunpack.c.l.b16 %v300
        %v575 = vunpack.c.h.b16 %v300
        %v576 = vunpack.c.l.b16 %v301
        %v577 = vunpack.c.h.b16 %v301
        %v578 = vunpack.c.l.b16 %v302
        %v579 = vunpack.c.h.b16 %v302
        %v580 = vunpack.c.l.b16 %v303
        %v581 = vunpack.c.h.b16 %v303
        %v582 = vunpack.c.l.b16 %v304
        %v583 = vunpack.c.h.b16 %v304
        %v584 = vunpack.c.l.b16 %v305
        %v585 = vunpack.c.h.b16 %v305
        %v586 = vpack.c.b16 %v570, %v570
        %v587 = vpack.c.b16 %v571, %v571
        %v588 = vpack.c.b16 %v572, %v572
        %v589 = vpack.c.b16 %v573, %v573
        %v590 = vpack.c.b16 %v574, %v574
        %v591 = vpack.c.b16 %v575, %v575
        %v592 = vpack.c.b16 %v576, %v576
        %v593 = vpack.c.b16 %v577, %v577
        %v594 = vpack.c.b16 %v578, %v578
        %v595 = vpack.c.b16 %v579, %v579
        %v596 = vpack.c.b16 %v580, %v580
        %v597 = vpack.c.b16 %v581, %v581
        %v598 = vpack.c.b16 %v582, %v582
        %v599 = vpack.c.b16 %v583, %v583
        %v600 = vpack.c.b16 %v584, %v584
        %v601 = vpack.c.b16 %v585, %v585
        %v874 = vunpack.c.l.b16 %v306
        %v875 = vunpack.c.l.b16 %v307
        %v876 = vunpack.c.l.b16 %v308
        %v877 = vunpack.c.l.b16 %v309
        %v878 = vunpack.c.l.b16 %v310
        %v879 = vunpack.c.l.b16 %v311
        %v880 = vunpack.c.l.b16 %v312
        %v881 = vunpack.c.l.b16 %v313
        %v882 = vunpack.c.l.b16 %v314
        %v883 = vunpack.c.l.b16 %v315
        %v884 = vunpack.c.l.b16 %v316
        %v885 = vunpack.c.l.b16 %v317
        %v886 = vunpack.c.l.b16 %v318
        %v887 = vunpack.c.l.b16 %v319
        %v888 = vunpack.c.l.b16 %v320
        %v889 = vunpack.c.l.b16 %v321
        %v890 = vunpack.c.l.b16 %v322
        %v891 = vunpack.c.l.b16 %v323
        %v892 = vunpack.c.l.b16 %v324
        %v893 = vunpack.c.l.b16 %v325
        %v894 = vunpack.c.l.b16 %v326
        %v895 = vunpack.c.l.b16 %v327
        %v896 = vunpack.c.l.b16 %v328
        %v897 = vunpack.c.l.b16 %v329
        %v898 = vunpack.c.l.b16 %v330
        %v899 = vunpack.c.l.b16 %v331
        %v900 = vunpack.c.l.b16 %v332
        %v901 = vunpack.c.l.b16 %v333
        %v902 = vunpack.c.l.b16 %v334
        %v903 = vunpack.c.l.b16 %v335
        %v904 = vunpack.c.l.b16 %v336
        %v905 = vunpack.c.l.b16 %v337
        %v906 = vunpack.c.l.b16 %v338
        %v907 = vunpack.c.l.b16 %v339
        %v908 = vunpack.c.l.b16 %v340
        %v909 = vunpack.c.l.b16 %v341
        %v910 = vunpack.c.l.b16 %v342
        %v911 = vunpack.c.l.b16 %v343
        %v912 = vunpack.c.l.b16 %v344
        %v913 = vunpack.c.l.b16 %v345
        %v914 = vunpack.c.l.b16 %v346
        %v915 = vunpack.c.l.b16 %v347
        %v916 = vunpack.c.l.b16 %v348
        %v917 = vunpack.c.l.b16 %v349
        %v918 = vunpack.c.l.b16 %v350
        %v919 = vunpack.c.l.b16 %v351
        %v920 = vunpack.c.l.b16 %v352
        %v921 = vunpack.c.l.b16 %v353
        %v922 = vunpack.c.l.b16 %v354
        %v923 = vunpack.c.l.b16 %v355
        %v924 = vunpack.c.l.b16 %v356
        %v925 = vunpack.c.l.b16 %v357
        %v926 = vunpack.c.l.b16 %v358
        %v927 = vunpack.c.l.b16 %v359
        %v928 = vunpack.c.l.b16 %v360
        %v929 = vunpack.c.l.b16 %v361
        %v930 = vunpack.c.l.b16 %v362
        %v931 = vunpack.c.l.b16 %v363
        %v932 = vunpack.c.l.b16 %v364
        %v933 = vunpack.c.l.b16 %v365
        %v934 = vunpack.c.l.b16 %v366
        %v935 = vunpack.c.l.b16 %v367
        %v936 = vunpack.c.l.b16 %v368
        %v937 = vunpack.c.l.b16 %v369
        %v938 = vunpack.c.l.b16 %v370
        %v939 = vunpack.c.l.b16 %v371
        %v940 = vunpack.c.l.b16 %v372
        %v941 = vunpack.c.l.b16 %v373
        %v942 = vunpack.c.l.b16 %v374
        %v943 = vunpack.c.l.b16 %v375
        %v944 = vunpack.c.l.b16 %v376
        %v945 = vunpack.c.l.b16 %v377
        %v946 = vunpack.c.l.b16 %v378
        %v947 = vunpack.c.l.b16 %v379
        %v948 = vunpack.c.l.b16 %v380
        %v949 = vunpack.c.l.b16 %v381
        %v950 = vunpack.c.l.b16 %v382
        %v951 = vunpack.c.l.b16 %v383
        %v952 = vunpack.c.l.b16 %v384
        %v953 = vunpack.c.l.b16 %v385
        %v954 = vunpack.c.l.b16 %v386
        %v955 = vunpack.c.l.b16 %v387
        %v956 = vunpack.c.l.b16 %v388
        %v957 = vunpack.c.l.b16 %v389
        %v958 = vunpack.c.l.b16 %v390
        %v959 = vunpack.c.l.b16 %v391
        %v960 = vunpack.c.l.b16 %v392
        %v961 = vunpack.c.l.b16 %v393
        %v962 = vunpack.c.l.b16 %v394
        %v963 = vunpack.c.l.b16 %v395
        %v964 = vunpack.c.l.b16 %v396
        %v965 = vunpack.c.l.b16 %v397
        %v966 = vunpack.c.l.b16 %v398
        %v967 = vunpack.c.l.b16 %v399
        %v968 = vunpack.c.l.b16 %v400
        %v969 = vunpack.c.l.b16 %v401
        %v970 = vunpack.c.l.b16 %v402
        %v971 = vunpack.c.l.b16 %v403
        %v972 = vunpack.c.l.b16 %v404
        %v973 = vunpack.c.l.b16 %v405
        %v974 = vunpack.c.l.b16 %v406
        %v975 = vunpack.c.l.b16 %v407
        %v976 = vunpack.c.l.b16 %v408
        %v977 = vunpack.c.l.b16 %v409
        %v978 = vunpack.c.l.b16 %v410
        %v979 = vunpack.c.l.b16 %v411
        %v980 = vunpack.c.l.b16 %v412
        %v981 = vunpack.c.l.b16 %v413
        %v982 = vunpack.c.l.b16 %v414
        %v983 = vunpack.c.l.b16 %v415
        %v984 = vunpack.c.l.b16 %v416
        %v985 = vunpack.c.l.b16 %v417
        %v986 = vunpack.c.l.b16 %v418
        %v987 = vunpack.c.l.b16 %v419
        %v988 = vunpack.c.l.b16 %v420
        %v989 = vunpack.c.l.b16 %v421
        %v990 = vunpack.c.l.b16 %v422
        %v991 = vunpack.c.l.b16 %v423
        %v992 = vunpack.c.l.b16 %v424
        %v993 = vunpack.c.l.b16 %v425
        %v994 = vunpack.c.l.b16 %v426
        %v995 = vunpack.c.l.b16 %v427
        %v996 = vunpack.c.l.b16 %v428
        %v997 = vunpack.c.l.b16 %v429
        %v998 = vunpack.c.l.b16 %v430
        %v999 = vunpack.c.l.b16 %v431
        %v1000 = vunpack.c.l.b16 %v432
        %v1001 = vunpack.c.l.b16 %v433
        %v1002 = vunpack.c.l.b16 %v434
        %v1003 = vunpack.c.l.b16 %v435
        %v1004 = vunpack.c.l.b16 %v436
        %v1005 = vunpack.c.l.b16 %v437
        %v1006 = vunpack.c.l.b16 %v438
        %v1007 = vunpack.c.l.b16 %v439
        %v1008 = vunpack.c.l.b16 %v440
        %v1009 = vunpack.c.l.b16 %v441
        %v1010 = vunpack.c.l.b16 %v442
        %v1011 = vunpack.c.l.b16 %v443
        %v1012 = vunpack.c.l.b16 %v444
        %v1013 = vunpack.c.l.b16 %v445
        %v1014 = vunpack.c.l.b16 %v446
        %v1015 = vunpack.c.l.b16 %v447
        %v1016 = vunpack.c.l.b16 %v448
        %v1017 = vunpack.c.l.b16 %v449
        %v1018 = vunpack.c.l.b16 %v450
        %v1019 = vunpack.c.l.b16 %v451
        %v1020 = vunpack.c.l.b16 %v452
        %v1021 = vunpack.c.l.b16 %v453
        %v1022 = vunpack.c.l.b16 %v454
        %v1023 = vunpack.c.l.b16 %v455
        %v1024 = vunpack.c.l.b16 %v456
        %v1025 = vunpack.c.l.b16 %v457
        %v1026 = vunpack.c.l.b16 %v458
        %v1027 = vunpack.c.l.b16 %v459
        %v1028 = vunpack.c.l.b16 %v460
        %v1029 = vunpack.c.l.b16 %v461
        %v1030 = vunpack.c.l.b16 %v462
        %v1031 = vunpack.c.l.b16 %v463
        %v1032 = vunpack.c.l.b16 %v464
        %v1033 = vunpack.c.l.b16 %v465
        %v1034 = vunpack.c.l.b16 %v466
        %v1035 = vunpack.c.l.b16 %v467
        %v1036 = vunpack.c.l.b16 %v468
        %v1037 = vunpack.c.l.b16 %v469
        %v1038 = vunpack.c.l.b16 %v470
        %v1039 = vunpack.c.l.b16 %v471
        %v1040 = vunpack.c.l.b16 %v472
        %v1041 = vunpack.c.l.b16 %v473
        %v1042 = vunpack.c.l.b16 %v474
        %v1043 = vunpack.c.l.b16 %v475
        %v1044 = vunpack.c.l.b16 %v476
        %v1045 = vunpack.c.l.b16 %v477
        %v1046 = vunpack.c.l.b16 %v478
        %v1047 = vunpack.c.l.b16 %v479
        %v1048 = vunpack.c.l.b16 %v480
        %v1049 = vunpack.c.l.b16 %v481
        %v1050 = vunpack.c.l.b16 %v482
        %v1051 = vunpack.c.l.b16 %v483
        %v1052 = vunpack.c.l.b16 %v484
        %v1053 = vunpack.c.l.b16 %v485
        %v1054 = vunpack.c.l.b16 %v486
        %v1055 = vunpack.c.l.b16 %v487
        %v1056 = vunpack.c.l.b16 %v488
        %v1057 = vunpack.c.l.b16 %v489
        %v1058 = vunpack.c.l.b16 %v490
        %v1059 = vunpack.c.l.b16 %v491
        %v1060 = vunpack.c.l.b16 %v492
        %v1061 = vunpack.c.l.b16 %v493
        %v1062 = vunpack.c.l.b16 %v494
        %v1063 = vunpack.c.l.b16 %v495
        %v1064 = vunpack.c.l.b16 %v496
        %v1065 = vunpack.c.l.b16 %v497
        %v1066 = vunpack.c.l.b16 %v498
        %v1067 = vunpack.c.l.b16 %v499
        %v1068 = vunpack.c.l.b16 %v500
        %v1069 = vunpack.c.l.b16 %v501
        %v1070 = vunpack.c.l.b16 %v502
        %v1071 = vunpack.c.l.b16 %v503
        %v1072 = vunpack.c.l.b16 %v504
        %v1073 = vunpack.c.l.b16 %v505
        %v1074 = vunpack.c.l.b16 %v506
        %v1075 = vunpack.c.l.b16 %v507
        %v1076 = vunpack.c.l.b16 %v508
        %v1077 = vunpack.c.l.b16 %v509
        %v1078 = vunpack.c.l.b16 %v510
        %v1079 = vunpack.c.l.b16 %v511
        %v1080 = vunpack.c.l.b16 %v512
        %v1081 = vunpack.c.l.b16 %v513
        %v1082 = vunpack.c.l.b16 %v514
        %v1083 = vunpack.c.l.b16 %v515
        %v1084 = vunpack.c.l.b16 %v516
        %v1085 = vunpack.c.l.b16 %v517
        %v1086 = vunpack.c.l.b16 %v518
        %v1087 = vunpack.c.l.b16 %v519
        %v1088 = vunpack.c.l.b16 %v520
        %v1089 = vunpack.c.l.b16 %v521
        %v1090 = vunpack.c.l.b16 %v522
        %v1091 = vunpack.c.l.b16 %v523
        %v1092 = vunpack.c.l.b16 %v524
        %v1093 = vunpack.c.l.b16 %v525
        %v1094 = vunpack.c.l.b16 %v526
        %v1095 = vunpack.c.l.b16 %v527
        %v1096 = vunpack.c.l.b16 %v528
        %v1097 = vunpack.c.l.b16 %v529
        %v1098 = vunpack.c.l.b16 %v530
        %v1099 = vunpack.c.l.b16 %v531
        %v1100 = vunpack.c.l.b16 %v532
        %v1101 = vunpack.c.l.b16 %v533
        %v1102 = vunpack.c.l.b16 %v534
        %v1103 = vunpack.c.l.b16 %v535
        %v1104 = vunpack.c.l.b16 %v536
        %v1105 = vunpack.c.l.b16 %v537
        %v1106 = vunpack.c.l.b16 %v538
        %v1107 = vunpack.c.l.b16 %v539
        %v1108 = vunpack.c.l.b16 %v540
        %v1109 = vunpack.c.l.b16 %v541
        %v1110 = vunpack.c.l.b16 %v542
        %v1111 = vunpack.c.l.b16 %v543
        %v1112 = vunpack.c.l.b16 %v544
        %v1113 = vunpack.c.l.b16 %v545
        %v1114 = vunpack.c.l.b16 %v546
        %v1115 = vunpack.c.l.b16 %v547
        %v1116 = vunpack.c.l.b16 %v548
        %v1117 = vunpack.c.l.b16 %v549
        %v1118 = vunpack.c.l.b16 %v550
        %v1119 = vunpack.c.l.b16 %v551
        %v1120 = vunpack.c.l.b16 %v552
        %v1121 = vunpack.c.l.b16 %v553
        %v1122 = vunpack.c.l.b16 %v554
        %v1123 = vunpack.c.l.b16 %v555
        %v1124 = vunpack.c.l.b16 %v556
        %v1125 = vunpack.c.l.b16 %v557
        %v1126 = vunpack.c.l.b16 %v558
        %v1127 = vunpack.c.l.b16 %v559
        %v1128 = vunpack.c.l.b16 %v560
        %v1129 = vunpack.c.l.b16 %v561
        %v1130 = vpack.c.b16 %v875, %v874
        %v1131 = vpack.c.b16 %v877, %v876
        %v1132 = vpack.c.b16 %v879, %v878
        %v1133 = vpack.c.b16 %v881, %v880
        %v1134 = vpack.c.b16 %v883, %v882
        %v1135 = vpack.c.b16 %v885, %v884
        %v1136 = vpack.c.b16 %v887, %v886
        %v1137 = vpack.c.b16 %v889, %v888
        %v1138 = vpack.c.b16 %v891, %v890
        %v1139 = vpack.c.b16 %v893, %v892
        %v1140 = vpack.c.b16 %v895, %v894
        %v1141 = vpack.c.b16 %v897, %v896
        %v1142 = vpack.c.b16 %v899, %v898
        %v1143 = vpack.c.b16 %v901, %v900
        %v1144 = vpack.c.b16 %v903, %v902
        %v1145 = vpack.c.b16 %v905, %v904
        %v1146 = vpack.c.b16 %v907, %v906
        %v1147 = vpack.c.b16 %v909, %v908
        %v1148 = vpack.c.b16 %v911, %v910
        %v1149 = vpack.c.b16 %v913, %v912
        %v1150 = vpack.c.b16 %v915, %v914
        %v1151 = vpack.c.b16 %v917, %v916
        %v1152 = vpack.c.b16 %v919, %v918
        %v1153 = vpack.c.b16 %v921, %v920
        %v1154 = vpack.c.b16 %v923, %v922
        %v1155 = vpack.c.b16 %v925, %v924
        %v1156 = vpack.c.b16 %v927, %v926
        %v1157 = vpack.c.b16 %v929, %v928
        %v1158 = vpack.c.b16 %v931, %v930
        %v1159 = vpack.c.b16 %v933, %v932
        %v1160 = vpack.c.b16 %v935, %v934
        %v1161 = vpack.c.b16 %v937, %v936
        %v1162 = vpack.c.b16 %v939, %v938
        %v1163 = vpack.c.b16 %v941, %v940
        %v1164 = vpack.c.b16 %v943, %v942
        %v1165 = vpack.c.b16 %v945, %v944
        %v1166 = vpack.c.b16 %v947, %v946
        %v1167 = vpack.c.b16 %v949, %v948
        %v1168 = vpack.c.b16 %v951, %v950
        %v1169 = vpack.c.b16 %v953, %v952
        %v1170 = vpack.c.b16 %v955, %v954
        %v1171 = vpack.c.b16 %v957, %v956
        %v1172 = vpack.c.b16 %v959, %v958
        %v1173 = vpack.c.b16 %v961, %v960
        %v1174 = vpack.c.b16 %v963, %v962
        %v1175 = vpack.c.b16 %v965, %v964
        %v1176 = vpack.c.b16 %v967, %v966
        %v1177 = vpack.c.b16 %v969, %v968
        %v1178 = vpack.c.b16 %v971, %v970
        %v1179 = vpack.c.b16 %v973, %v972
        %v1180 = vpack.c.b16 %v975, %v974
        %v1181 = vpack.c.b16 %v977, %v976
        %v1182 = vpack.c.b16 %v979, %v978
        %v1183 = vpack.c.b16 %v981, %v980
        %v1184 = vpack.c.b16 %v983, %v982
        %v1185 = vpack.c.b16 %v985, %v984
        %v1186 = vpack.c.b16 %v987, %v986
        %v1187 = vpack.c.b16 %v989, %v988
        %v1188 = vpack.c.b16 %v991, %v990
        %v1189 = vpack.c.b16 %v993, %v992
        %v1190 = vpack.c.b16 %v995, %v994
        %v1191 = vpack.c.b16 %v997, %v996
        %v1192 = vpack.c.b16 %v999, %v998
        %v1193 = vpack.c.b16 %v1001, %v1000
        %v1194 = vpack.c.b16 %v1003, %v1002
        %v1195 = vpack.c.b16 %v1005, %v1004
        %v1196 = vpack.c.b16 %v1007, %v1006
        %v1197 = vpack.c.b16 %v1009, %v1008
        %v1198 = vpack.c.b16 %v1011, %v1010
        %v1199 = vpack.c.b16 %v1013, %v1012
        %v1200 = vpack.c.b16 %v1015, %v1014
        %v1201 = vpack.c.b16 %v1017, %v1016
        %v1202 = vpack.c.b16 %v1019, %v1018
        %v1203 = vpack.c.b16 %v1021, %v1020
        %v1204 = vpack.c.b16 %v1023, %v1022
        %v1205 = vpack.c.b16 %v1025, %v1024
        %v1206 = vpack.c.b16 %v1027, %v1026
        %v1207 = vpack.c.b16 %v1029, %v1028
        %v1208 = vpack.c.b16 %v1031, %v1030
        %v1209 = vpack.c.b16 %v1033, %v1032
        %v1210 = vpack.c.b16 %v1035, %v1034
        %v1211 = vpack.c.b16 %v1037, %v1036
        %v1212 = vpack.c.b16 %v1039, %v1038
        %v1213 = vpack.c.b16 %v1041, %v1040
        %v1214 = vpack.c.b16 %v1043, %v1042
        %v1215 = vpack.c.b16 %v1045, %v1044
        %v1216 = vpack.c.b16 %v1047, %v1046
        %v1217 = vpack.c.b16 %v1049, %v1048
        %v1218 = vpack.c.b16 %v1051, %v1050
        %v1219 = vpack.c.b16 %v1053, %v1052
        %v1220 = vpack.c.b16 %v1055, %v1054
        %v1221 = vpack.c.b16 %v1057, %v1056
        %v1222 = vpack.c.b16 %v1059, %v1058
        %v1223 = vpack.c.b16 %v1061, %v1060
        %v1224 = vpack.c.b16 %v1063, %v1062
        %v1225 = vpack.c.b16 %v1065, %v1064
        %v1226 = vpack.c.b16 %v1067, %v1066
        %v1227 = vpack.c.b16 %v1069, %v1068
        %v1228 = vpack.c.b16 %v1071, %v1070
        %v1229 = vpack.c.b16 %v1073, %v1072
        %v1230 = vpack.c.b16 %v1075, %v1074
        %v1231 = vpack.c.b16 %v1077, %v1076
        %v1232 = vpack.c.b16 %v1079, %v1078
        %v1233 = vpack.c.b16 %v1081, %v1080
        %v1234 = vpack.c.b16 %v1083, %v1082
        %v1235 = vpack.c.b16 %v1085, %v1084
        %v1236 = vpack.c.b16 %v1087, %v1086
        %v1237 = vpack.c.b16 %v1089, %v1088
        %v1238 = vpack.c.b16 %v1091, %v1090
        %v1239 = vpack.c.b16 %v1093, %v1092
        %v1240 = vpack.c.b16 %v1095, %v1094
        %v1241 = vpack.c.b16 %v1097, %v1096
        %v1242 = vpack.c.b16 %v1099, %v1098
        %v1243 = vpack.c.b16 %v1101, %v1100
        %v1244 = vpack.c.b16 %v1103, %v1102
        %v1245 = vpack.c.b16 %v1105, %v1104
        %v1246 = vpack.c.b16 %v1107, %v1106
        %v1247 = vpack.c.b16 %v1109, %v1108
        %v1248 = vpack.c.b16 %v1111, %v1110
        %v1249 = vpack.c.b16 %v1113, %v1112
        %v1250 = vpack.c.b16 %v1115, %v1114
        %v1251 = vpack.c.b16 %v1117, %v1116
        %v1252 = vpack.c.b16 %v1119, %v1118
        %v1253 = vpack.c.b16 %v1121, %v1120
        %v1254 = vpack.c.b16 %v1123, %v1122
        %v1255 = vpack.c.b16 %v1125, %v1124
        %v1256 = vpack.c.b16 %v1127, %v1126
        %v1257 = vpack.c.b16 %v1129, %v1128
        %1386 = vmatprep.subr.bf16.mxu0 0
        %1387 = vmatpush1.bf16.msra.mxu0 %v1137
        %1388 = vmatprep.subr.bf16.mxu0 0
        %1389 = vmatpush1.bf16.msra.mxu0 %v1136
        %1390 = vmatprep.subr.bf16.mxu0 0
        %1391 = vmatpush1.bf16.msra.mxu0 %v1135
        %1392 = vmatprep.subr.bf16.mxu0 0
        %1393 = vmatpush1.bf16.msra.mxu0 %v1134
        %1394 = vmatprep.subr.bf16.mxu0 0
        %1395 = vmatpush1.bf16.msra.mxu0 %v1133
        %1396 = vmatprep.subr.bf16.mxu0 0
        %1397 = vmatpush1.bf16.msra.mxu0 %v1132
        %1398 = vmatprep.subr.bf16.mxu0 0
        %1399 = vmatpush1.bf16.msra.mxu0 %v1131
        %1400 = vmatprep.subr.bf16.mxu0 0
        %1401 = vmatpush1.bf16.msra.mxu0 %v1130
        %1402 = vmatprep.subr.bf16.mxu0 0
        %1403 = vmatpush2.bf16.msra.mxu0 %v1145
        %1404 = vmatprep.subr.bf16.mxu0 0
        %1405 = vmatpush2.bf16.msra.mxu0 %v1144
        %1406 = vmatprep.subr.bf16.mxu0 0
        %1407 = vmatpush2.bf16.msra.mxu0 %v1143
        %1408 = vmatprep.subr.bf16.mxu0 0
        %1409 = vmatpush2.bf16.msra.mxu0 %v1142
        %1410 = vmatprep.subr.bf16.mxu0 0
        %1411 = vmatpush2.bf16.msra.mxu0 %v1141
        %1412 = vmatprep.subr.bf16.mxu0 0
        %1413 = vmatpush2.bf16.msra.mxu0 %v1140
        %1414 = vmatprep.subr.bf16.mxu0 0
        %1415 = vmatpush2.bf16.msra.mxu0 %v1139
        %1416 = vmatprep.subr.bf16.mxu0 0
        %1417 = vmatpush2.bf16.msra.mxu0 %v1138
        %1418 = vmatprep.mubr.bf16.mxu0 %v587
        %1419 = vmatmul.mubr.bf16.gmra.mxu0 %v586
        %v1420 = vpop.f32.mrf.mxu0
        %v1421 = vadd.f32 0.0, %v1420
        %v1422 = vpop.f32.mrf.mxu0
        %v1423 = vpop.f32.mrf.mxu0
        %v1424 = vpop.f32.mrf.mxu0
        %1425 = vdwg.mxu0
        %1426 = vmatprep.subr.bf16.mxu0 0
        %1427 = vmatpush1.bf16.msra.mxu0 %v1153
        %1428 = vmatprep.subr.bf16.mxu0 0
        %1429 = vmatpush1.bf16.msra.mxu0 %v1152
        %1430 = vmatprep.subr.bf16.mxu0 0
        %1431 = vmatpush1.bf16.msra.mxu0 %v1151
        %1432 = vmatprep.subr.bf16.mxu0 0
        %1433 = vmatpush1.bf16.msra.mxu0 %v1150
        %1434 = vmatprep.subr.bf16.mxu0 0
        %1435 = vmatpush1.bf16.msra.mxu0 %v1149
        %1436 = vmatprep.subr.bf16.mxu0 0
        %1437 = vmatpush1.bf16.msra.mxu0 %v1148
        %1438 = vmatprep.subr.bf16.mxu0 0
        %1439 = vmatpush1.bf16.msra.mxu0 %v1147
        %1440 = vmatprep.subr.bf16.mxu0 0
        %1441 = vmatpush1.bf16.msra.mxu0 %v1146
        %1442 = vmatprep.subr.bf16.mxu0 0
        %1443 = vmatpush2.bf16.msra.mxu0 %v1161
        %1444 = vmatprep.subr.bf16.mxu0 0
        %1445 = vmatpush2.bf16.msra.mxu0 %v1160
        %1446 = vmatprep.subr.bf16.mxu0 0
        %1447 = vmatpush2.bf16.msra.mxu0 %v1159
        %1448 = vmatprep.subr.bf16.mxu0 0
        %1449 = vmatpush2.bf16.msra.mxu0 %v1158
        %1450 = vmatprep.subr.bf16.mxu0 0
        %1451 = vmatpush2.bf16.msra.mxu0 %v1157
        %1452 = vmatprep.subr.bf16.mxu0 0
        %1453 = vmatpush2.bf16.msra.mxu0 %v1156
        %1454 = vmatprep.subr.bf16.mxu0 0
        %1455 = vmatpush2.bf16.msra.mxu0 %v1155
        %1456 = vmatprep.subr.bf16.mxu0 0
        %1457 = vmatpush2.bf16.msra.mxu0 %v1154
        %1458 = vmatprep.mubr.bf16.mxu0 %v589
        %1459 = vmatmul.mubr.bf16.gmra.mxu0 %v588
        %v1460 = vpop.f32.mrf.mxu0
        %v1461 = vadd.f32 %v1421, %v1460
        %v1462 = vpop.f32.mrf.mxu0
        %v1463 = vpop.f32.mrf.mxu0
        %v1464 = vpop.f32.mrf.mxu0
        %1465 = vdwg.mxu0
        %1466 = vmatprep.subr.bf16.mxu0 0
        %1467 = vmatpush1.bf16.msra.mxu0 %v1169
        %1468 = vmatprep.subr.bf16.mxu0 0
        %1469 = vmatpush1.bf16.msra.mxu0 %v1168
        %1470 = vmatprep.subr.bf16.mxu0 0
        %1471 = vmatpush1.bf16.msra.mxu0 %v1167
        %1472 = vmatprep.subr.bf16.mxu0 0
        %1473 = vmatpush1.bf16.msra.mxu0 %v1166
        %1474 = vmatprep.subr.bf16.mxu0 0
        %1475 = vmatpush1.bf16.msra.mxu0 %v1165
        %1476 = vmatprep.subr.bf16.mxu0 0
        %1477 = vmatpush1.bf16.msra.mxu0 %v1164
        %1478 = vmatprep.subr.bf16.mxu0 0
        %1479 = vmatpush1.bf16.msra.mxu0 %v1163
        %1480 = vmatprep.subr.bf16.mxu0 0
        %1481 = vmatpush1.bf16.msra.mxu0 %v1162
        %1482 = vmatprep.subr.bf16.mxu0 0
        %1483 = vmatpush2.bf16.msra.mxu0 %v1177
        %1484 = vmatprep.subr.bf16.mxu0 0
        %1485 = vmatpush2.bf16.msra.mxu0 %v1176
        %1486 = vmatprep.subr.bf16.mxu0 0
        %1487 = vmatpush2.bf16.msra.mxu0 %v1175
        %1488 = vmatprep.subr.bf16.mxu0 0
        %1489 = vmatpush2.bf16.msra.mxu0 %v1174
        %1490 = vmatprep.subr.bf16.mxu0 0
        %1491 = vmatpush2.bf16.msra.mxu0 %v1173
        %1492 = vmatprep.subr.bf16.mxu0 0
        %1493 = vmatpush2.bf16.msra.mxu0 %v1172
        %1494 = vmatprep.subr.bf16.mxu0 0
        %1495 = vmatpush2.bf16.msra.mxu0 %v1171
        %1496 = vmatprep.subr.bf16.mxu0 0
        %1497 = vmatpush2.bf16.msra.mxu0 %v1170
        %1498 = vmatprep.mubr.bf16.mxu0 %v591
        %1499 = vmatmul.mubr.bf16.gmra.mxu0 %v590
        %v1500 = vpop.f32.mrf.mxu0
        %v1501 = vadd.f32 %v1461, %v1500
        %v1502 = vpop.f32.mrf.mxu0
        %v1503 = vpop.f32.mrf.mxu0
        %v1504 = vpop.f32.mrf.mxu0
        %1505 = vdwg.mxu0
        %1506 = vmatprep.subr.bf16.mxu0 0
        %1507 = vmatpush1.bf16.msra.mxu0 %v1185
        %1508 = vmatprep.subr.bf16.mxu0 0
        %1509 = vmatpush1.bf16.msra.mxu0 %v1184
        %1510 = vmatprep.subr.bf16.mxu0 0
        %1511 = vmatpush1.bf16.msra.mxu0 %v1183
        %1512 = vmatprep.subr.bf16.mxu0 0
        %1513 = vmatpush1.bf16.msra.mxu0 %v1182
        %1514 = vmatprep.subr.bf16.mxu0 0
        %1515 = vmatpush1.bf16.msra.mxu0 %v1181
        %1516 = vmatprep.subr.bf16.mxu0 0
        %1517 = vmatpush1.bf16.msra.mxu0 %v1180
        %1518 = vmatprep.subr.bf16.mxu0 0
        %1519 = vmatpush1.bf16.msra.mxu0 %v1179
        %1520 = vmatprep.subr.bf16.mxu0 0
        %1521 = vmatpush1.bf16.msra.mxu0 %v1178
        %1522 = vmatprep.subr.bf16.mxu0 0
        %1523 = vmatpush2.bf16.msra.mxu0 %v1193
        %1524 = vmatprep.subr.bf16.mxu0 0
        %1525 = vmatpush2.bf16.msra.mxu0 %v1192
        %1526 = vmatprep.subr.bf16.mxu0 0
        %1527 = vmatpush2.bf16.msra.mxu0 %v1191
        %1528 = vmatprep.subr.bf16.mxu0 0
        %1529 = vmatpush2.bf16.msra.mxu0 %v1190
        %1530 = vmatprep.subr.bf16.mxu0 0
        %1531 = vmatpush2.bf16.msra.mxu0 %v1189
        %1532 = vmatprep.subr.bf16.mxu0 0
        %1533 = vmatpush2.bf16.msra.mxu0 %v1188
        %1534 = vmatprep.subr.bf16.mxu0 0
        %1535 = vmatpush2.bf16.msra.mxu0 %v1187
        %1536 = vmatprep.subr.bf16.mxu0 0
        %1537 = vmatpush2.bf16.msra.mxu0 %v1186
        %1538 = vmatprep.mubr.bf16.mxu0 %v593
        %1539 = vmatmul.mubr.bf16.gmra.mxu0 %v592
        %v1540 = vpop.f32.mrf.mxu0
        %v1541 = vadd.f32 %v1501, %v1540
        %v1542 = vpop.f32.mrf.mxu0
        %v1543 = vpop.f32.mrf.mxu0
        %v1544 = vpop.f32.mrf.mxu0
        %1545 = vdwg.mxu0
        %1546 = vmatprep.subr.bf16.mxu0 0
        %1547 = vmatpush1.bf16.msra.mxu0 %v1201
        %1548 = vmatprep.subr.bf16.mxu0 0
        %1549 = vmatpush1.bf16.msra.mxu0 %v1200
        %1550 = vmatprep.subr.bf16.mxu0 0
        %1551 = vmatpush1.bf16.msra.mxu0 %v1199
        %1552 = vmatprep.subr.bf16.mxu0 0
        %1553 = vmatpush1.bf16.msra.mxu0 %v1198
        %1554 = vmatprep.subr.bf16.mxu0 0
        %1555 = vmatpush1.bf16.msra.mxu0 %v1197
        %1556 = vmatprep.subr.bf16.mxu0 0
        %1557 = vmatpush1.bf16.msra.mxu0 %v1196
        %1558 = vmatprep.subr.bf16.mxu0 0
        %1559 = vmatpush1.bf16.msra.mxu0 %v1195
        %1560 = vmatprep.subr.bf16.mxu0 0
        %1561 = vmatpush1.bf16.msra.mxu0 %v1194
        %1562 = vmatprep.subr.bf16.mxu0 0
        %1563 = vmatpush2.bf16.msra.mxu0 %v1209
        %1564 = vmatprep.subr.bf16.mxu0 0
        %1565 = vmatpush2.bf16.msra.mxu0 %v1208
        %1566 = vmatprep.subr.bf16.mxu0 0
        %1567 = vmatpush2.bf16.msra.mxu0 %v1207
        %1568 = vmatprep.subr.bf16.mxu0 0
        %1569 = vmatpush2.bf16.msra.mxu0 %v1206
        %1570 = vmatprep.subr.bf16.mxu0 0
        %1571 = vmatpush2.bf16.msra.mxu0 %v1205
        %1572 = vmatprep.subr.bf16.mxu0 0
        %1573 = vmatpush2.bf16.msra.mxu0 %v1204
        %1574 = vmatprep.subr.bf16.mxu0 0
        %1575 = vmatpush2.bf16.msra.mxu0 %v1203
        %1576 = vmatprep.subr.bf16.mxu0 0
        %1577 = vmatpush2.bf16.msra.mxu0 %v1202
        %1578 = vmatprep.mubr.bf16.mxu0 %v595
        %1579 = vmatmul.mubr.bf16.gmra.mxu0 %v594
        %v1580 = vpop.f32.mrf.mxu0
        %v1581 = vadd.f32 %v1541, %v1580
        %v1582 = vpop.f32.mrf.mxu0
        %v1583 = vpop.f32.mrf.mxu0
        %v1584 = vpop.f32.mrf.mxu0
        %1585 = vdwg.mxu0
        %1586 = vmatprep.subr.bf16.mxu0 0
        %1587 = vmatpush1.bf16.msra.mxu0 %v1217
        %1588 = vmatprep.subr.bf16.mxu0 0
        %1589 = vmatpush1.bf16.msra.mxu0 %v1216
        %1590 = vmatprep.subr.bf16.mxu0 0
        %1591 = vmatpush1.bf16.msra.mxu0 %v1215
        %1592 = vmatprep.subr.bf16.mxu0 0
        %1593 = vmatpush1.bf16.msra.mxu0 %v1214
        %1594 = vmatprep.subr.bf16.mxu0 0
        %1595 = vmatpush1.bf16.msra.mxu0 %v1213
        %1596 = vmatprep.subr.bf16.mxu0 0
        %1597 = vmatpush1.bf16.msra.mxu0 %v1212
        %1598 = vmatprep.subr.bf16.mxu0 0
        %1599 = vmatpush1.bf16.msra.mxu0 %v1211
        %1600 = vmatprep.subr.bf16.mxu0 0
        %1601 = vmatpush1.bf16.msra.mxu0 %v1210
        %1602 = vmatprep.subr.bf16.mxu0 0
        %1603 = vmatpush2.bf16.msra.mxu0 %v1225
        %1604 = vmatprep.subr.bf16.mxu0 0
        %1605 = vmatpush2.bf16.msra.mxu0 %v1224
        %1606 = vmatprep.subr.bf16.mxu0 0
        %1607 = vmatpush2.bf16.msra.mxu0 %v1223
        %1608 = vmatprep.subr.bf16.mxu0 0
        %1609 = vmatpush2.bf16.msra.mxu0 %v1222
        %1610 = vmatprep.subr.bf16.mxu0 0
        %1611 = vmatpush2.bf16.msra.mxu0 %v1221
        %1612 = vmatprep.subr.bf16.mxu0 0
        %1613 = vmatpush2.bf16.msra.mxu0 %v1220
        %1614 = vmatprep.subr.bf16.mxu0 0
        %1615 = vmatpush2.bf16.msra.mxu0 %v1219
        %1616 = vmatprep.subr.bf16.mxu0 0
        %1617 = vmatpush2.bf16.msra.mxu0 %v1218
        %1618 = vmatprep.mubr.bf16.mxu0 %v597
        %1619 = vmatmul.mubr.bf16.gmra.mxu0 %v596
        %v1620 = vpop.f32.mrf.mxu0
        %v1621 = vadd.f32 %v1581, %v1620
        %v1622 = vpop.f32.mrf.mxu0
        %v1623 = vpop.f32.mrf.mxu0
        %v1624 = vpop.f32.mrf.mxu0
        %1625 = vdwg.mxu0
        %1626 = vmatprep.subr.bf16.mxu0 0
        %1627 = vmatpush1.bf16.msra.mxu0 %v1233
        %1628 = vmatprep.subr.bf16.mxu0 0
        %1629 = vmatpush1.bf16.msra.mxu0 %v1232
        %1630 = vmatprep.subr.bf16.mxu0 0
        %1631 = vmatpush1.bf16.msra.mxu0 %v1231
        %1632 = vmatprep.subr.bf16.mxu0 0
        %1633 = vmatpush1.bf16.msra.mxu0 %v1230
        %1634 = vmatprep.subr.bf16.mxu0 0
        %1635 = vmatpush1.bf16.msra.mxu0 %v1229
        %1636 = vmatprep.subr.bf16.mxu0 0
        %1637 = vmatpush1.bf16.msra.mxu0 %v1228
        %1638 = vmatprep.subr.bf16.mxu0 0
        %1639 = vmatpush1.bf16.msra.mxu0 %v1227
        %1640 = vmatprep.subr.bf16.mxu0 0
        %1641 = vmatpush1.bf16.msra.mxu0 %v1226
        %1642 = vmatprep.subr.bf16.mxu0 0
        %1643 = vmatpush2.bf16.msra.mxu0 %v1241
        %1644 = vmatprep.subr.bf16.mxu0 0
        %1645 = vmatpush2.bf16.msra.mxu0 %v1240
        %1646 = vmatprep.subr.bf16.mxu0 0
        %1647 = vmatpush2.bf16.msra.mxu0 %v1239
        %1648 = vmatprep.subr.bf16.mxu0 0
        %1649 = vmatpush2.bf16.msra.mxu0 %v1238
        %1650 = vmatprep.subr.bf16.mxu0 0
        %1651 = vmatpush2.bf16.msra.mxu0 %v1237
        %1652 = vmatprep.subr.bf16.mxu0 0
        %1653 = vmatpush2.bf16.msra.mxu0 %v1236
        %1654 = vmatprep.subr.bf16.mxu0 0
        %1655 = vmatpush2.bf16.msra.mxu0 %v1235
        %1656 = vmatprep.subr.bf16.mxu0 0
        %1657 = vmatpush2.bf16.msra.mxu0 %v1234
        %1658 = vmatprep.mubr.bf16.mxu0 %v599
        %1659 = vmatmul.mubr.bf16.gmra.mxu0 %v598
        %v1660 = vpop.f32.mrf.mxu0
        %v1661 = vadd.f32 %v1621, %v1660
        %v1662 = vpop.f32.mrf.mxu0
        %v1663 = vpop.f32.mrf.mxu0
        %v1664 = vpop.f32.mrf.mxu0
        %1665 = vdwg.mxu0
        %1666 = vmatprep.subr.bf16.mxu0 0
        %1667 = vmatpush1.bf16.msra.mxu0 %v1249
        %1668 = vmatprep.subr.bf16.mxu0 0
        %1669 = vmatpush1.bf16.msra.mxu0 %v1248
        %1670 = vmatprep.subr.bf16.mxu0 0
        %1671 = vmatpush1.bf16.msra.mxu0 %v1247
        %1672 = vmatprep.subr.bf16.mxu0 0
        %1673 = vmatpush1.bf16.msra.mxu0 %v1246
        %1674 = vmatprep.subr.bf16.mxu0 0
        %1675 = vmatpush1.bf16.msra.mxu0 %v1245
        %1676 = vmatprep.subr.bf16.mxu0 0
        %1677 = vmatpush1.bf16.msra.mxu0 %v1244
        %1678 = vmatprep.subr.bf16.mxu0 0
        %1679 = vmatpush1.bf16.msra.mxu0 %v1243
        %1680 = vmatprep.subr.bf16.mxu0 0
        %1681 = vmatpush1.bf16.msra.mxu0 %v1242
        %1682 = vmatprep.subr.bf16.mxu0 0
        %1683 = vmatpush2.bf16.msra.mxu0 %v1257
        %1684 = vmatprep.subr.bf16.mxu0 0
        %1685 = vmatpush2.bf16.msra.mxu0 %v1256
        %1686 = vmatprep.subr.bf16.mxu0 0
        %1687 = vmatpush2.bf16.msra.mxu0 %v1255
        %1688 = vmatprep.subr.bf16.mxu0 0
        %1689 = vmatpush2.bf16.msra.mxu0 %v1254
        %1690 = vmatprep.subr.bf16.mxu0 0
        %1691 = vmatpush2.bf16.msra.mxu0 %v1253
        %1692 = vmatprep.subr.bf16.mxu0 0
        %1693 = vmatpush2.bf16.msra.mxu0 %v1252
        %1694 = vmatprep.subr.bf16.mxu0 0
        %1695 = vmatpush2.bf16.msra.mxu0 %v1251
        %1696 = vmatprep.subr.bf16.mxu0 0
        %1697 = vmatpush2.bf16.msra.mxu0 %v1250
        %1698 = vmatprep.mubr.bf16.mxu0 %v601
        %1699 = vmatmul.mubr.bf16.gmra.mxu0 %v600
        %v1700 = vpop.f32.mrf.mxu0
        %v1701 = vadd.f32 %v1661, %v1700
        %v1702 = vpop.f32.mrf.mxu0
        %v1703 = vpop.f32.mrf.mxu0
        %v1704 = vpop.f32.mrf.mxu0
        %1705 = vdwg.mxu0
        %v1706 = vadd.f32 %v297, %v1701
        %1707 = vst [vmem:[#allocation2] sm:$0xff] %v1706
        // Predicated region
        $region45: #{cnn_forward.3} parent=35 // pred_check
          %p1708 = pneg %p292
        $region46: #{cnn_forward.3} parent=35 // pred_check_branch
          %1710 = sbr.rel (%p1708) target = $region48
        $region47: #{cnn_forward.3} parent=35 // pred_region
          %v1711 = vld [vmem:[#allocation2] sm:$0xff]
          %v1712 = vld [vmem:[%s280] sm:$0x1]
          %v1714 = vlaneseq
          %v1715 = vshrl.u32 %v1714, 7
          %v1716 = vsub.s32 0, %v1715
          %v1717 = vrot.slane %v1712, %v1716
          %v1719 = vadd.f32 %v1711, %v1717
          %v1720 = vmax.f32 %v1719, 0.0
          %v1721 = vld [vmem:[%s285] sm:$0xff]
          %v1722 = vld [vmem:[%s285 + $0x8] sm:$0xff]
          %v1723 = vld [vmem:[%s285 + $0x10] sm:$0xff]
          %v1724 = vld [vmem:[%s285 + $0x18] sm:$0xff]
          %v1725 = vld [vmem:[%s285 + $0x20] sm:$0xff]
          %v1726 = vld [vmem:[%s285 + $0x28] sm:$0xff]
          %v1727 = vld [vmem:[%s285 + $0x30] sm:$0xff]
          %v1728 = vld [vmem:[%s285 + $0x38] sm:$0xff]
          %v1729 = vld [vmem:[%s285 + $0x40] sm:$0xff]
          %v1730 = vld [vmem:[%s285 + $0x48] sm:$0xff]
          %v1731 = vld [vmem:[%s285 + $0x50] sm:$0xff]
          %v1732 = vld [vmem:[%s285 + $0x58] sm:$0xff]
          %v1733 = vld [vmem:[%s285 + $0x60] sm:$0xff]
          %v1734 = vld [vmem:[%s285 + $0x68] sm:$0xff]
          %v1735 = vld [vmem:[%s285 + $0x70] sm:$0xff]
          %v1736 = vld [vmem:[%s285 + $0x78] sm:$0xff]
          %1737 = vmatprep.subr.mxu0 0.0
          %1738 = vmatpush1.msra.mxu0 %v1736
          %1739 = vmatprep.subr.mxu0 0.0
          %1740 = vmatpush1.msra.mxu0 %v1735
          %1741 = vmatprep.subr.mxu0 0.0
          %1742 = vmatpush1.msra.mxu0 %v1734
          %1743 = vmatprep.subr.mxu0 0.0
          %1744 = vmatpush1.msra.mxu0 %v1733
          %1745 = vmatprep.subr.mxu0 0.0
          %1746 = vmatpush1.msra.mxu0 %v1732
          %1747 = vmatprep.subr.mxu0 0.0
          %1748 = vmatpush1.msra.mxu0 %v1731
          %1749 = vmatprep.subr.mxu0 0.0
          %1750 = vmatpush1.msra.mxu0 %v1730
          %1751 = vmatprep.subr.mxu0 0.0
          %1752 = vmatpush1.msra.mxu0 %v1729
          %1753 = vmatprep.subr.mxu0 0.0
          %1754 = vmatpush1.msra.mxu0 %v1728
          %1755 = vmatprep.subr.mxu0 0.0
          %1756 = vmatpush1.msra.mxu0 %v1727
          %1757 = vmatprep.subr.mxu0 0.0
          %1758 = vmatpush1.msra.mxu0 %v1726
          %1759 = vmatprep.subr.mxu0 0.0
          %1760 = vmatpush1.msra.mxu0 %v1725
          %1761 = vmatprep.subr.mxu0 0.0
          %1762 = vmatpush1.msra.mxu0 %v1724
          %1763 = vmatprep.subr.mxu0 0.0
          %1764 = vmatpush1.msra.mxu0 %v1723
          %1765 = vmatprep.subr.mxu0 0.0
          %1766 = vmatpush1.msra.mxu0 %v1722
          %1767 = vmatprep.subr.mxu0 0.0
          %1768 = vmatpush1.msra.mxu0 %v1721
          %1769 = vmatprep.subr.mxu0 0.0
          %1770 = vmatpush2.msra.mxu0 0.0
          %1771 = vmatprep.subr.mxu0 0.0
          %1772 = vmatpush2.msra.mxu0 0.0
          %1773 = vmatprep.subr.mxu0 0.0
          %1774 = vmatpush2.msra.mxu0 0.0
          %1775 = vmatprep.subr.mxu0 0.0
          %1776 = vmatpush2.msra.mxu0 0.0
          %1777 = vmatprep.subr.mxu0 0.0
          %1778 = vmatpush2.msra.mxu0 0.0
          %1779 = vmatprep.subr.mxu0 0.0
          %1780 = vmatpush2.msra.mxu0 0.0
          %1781 = vmatprep.subr.mxu0 0.0
          %1782 = vmatpush2.msra.mxu0 0.0
          %1783 = vmatprep.subr.mxu0 0.0
          %1784 = vmatpush2.msra.mxu0 0.0
          %1785 = vmatprep.subr.mxu0 0.0
          %1786 = vmatpush2.msra.mxu0 0.0
          %1787 = vmatprep.subr.mxu0 0.0
          %1788 = vmatpush2.msra.mxu0 0.0
          %1789 = vmatprep.subr.mxu0 0.0
          %1790 = vmatpush2.msra.mxu0 0.0
          %1791 = vmatprep.subr.mxu0 0.0
          %1792 = vmatpush2.msra.mxu0 0.0
          %1793 = vmatprep.subr.mxu0 0.0
          %1794 = vmatpush2.msra.mxu0 0.0
          %1795 = vmatprep.subr.mxu0 0.0
          %1796 = vmatpush2.msra.mxu0 0.0
          %1797 = vmatprep.subr.mxu0 0.0
          %1798 = vmatpush2.msra.mxu0 0.0
          %1799 = vmatprep.subr.mxu0 0.0
          %1800 = vmatpush2.msra.mxu0 0.0
          %1801 = vmatprep.mubr.f32.mxu0 0.0
          %1802 = vmatmul.mubr.f32.gmra.mxu0 %v1720
          %v1803 = vpop.f32.mrf.mxu0
          %v1804 = vadd.f32 0.0, %v1803
          %v1805 = vpop.f32.mrf.mxu0
          %1806 = vdwg.mxu0
          %vm1807 = vcmask 39936
          %1808 = vst.msk [vmem:[%s290] sm:$0xff] %vm1807, %v1804
        $region48: #{cnn_forward.3} parent=35 // pred_fallthru
          _
        %p1809 = scmp.lt.s32.totalorder %s22, 1
        %s1810 = scalar_select %p1809, %s22, 1
        %s1811 = smul.addr %s1810, 8
        %s1812 = scalar_lea.vmem %s4, %s1811
        // Predicated region
        $region49: #{cnn_forward.3} parent=35 // pred_check
          %p1813 = pneg %p154
        $region50: #{cnn_forward.3} parent=35 // pred_check_branch
          %1815 = sbr.rel (%p1813) target = $region52
        $region51: #{cnn_forward.3} parent=35 // pred_region
          _
        $region52: #{cnn_forward.3} parent=35 // pred_fallthru
          _
      $region36: #{cnn_forward.3} parent=5 // pred_fallthru
        _
      %p1816 = scmp.le.s32.totalorder 2, %s13
      // Predicated region
      $region53: #{cnn_forward.3} parent=5 // pred_check
        %p1817 = pneg %p1816
      $region54: #{cnn_forward.3} parent=5 // pred_check_branch
        %1819 = sbr.rel (%p1817) target = $region56
      $region55: #{cnn_forward.3} parent=5 // pred_region
        %s1820 = ssub.s32 %s13, 2
        // Predicated region
        $region57: #{cnn_forward.3} parent=55 // pred_check
          %p1821 = pneg %p160
        $region58: #{cnn_forward.3} parent=55 // pred_check_branch
          %1823 = sbr.rel (%p1821) target = $region60
        $region59: #{cnn_forward.3} parent=55 // pred_region
          %p1824 = scmp.lt.s32.totalorder %s24, 1
          %s1825 = scalar_select %p1824, %s24, 1
          %s1826 = smul.addr %s1825, 8
          %s1827 = scalar_lea.vmem %s4, %s1826
        $region60: #{cnn_forward.3} parent=55 // pred_fallthru
          _
      $region56: #{cnn_forward.3} parent=5 // pred_fallthru
        _
    $region6: #{cnn_forward.3} parent=1 // loop_footer
      %s17 = sadd.s32 1, %s13
    $region7: #{cnn_forward.3} parent=1 // loop_footer_branch
      %12 = sbr.rel target = $region3
    $region8: #{cnn_forward.3} parent=1 // loop_exit
      _
    %1828 = vsyncpa [#allocation4], 1
    %s1829 = scalar_lea.sflag [#allocation4], 1
    %1830 = vsyncpa %s1829, 1

</llo_original>
